<compile_context>
chip_gen: v5e
topology: v5e:2x2
jax: 0.10.0
libtpu: 0.0.40
codegen_flags: <defaults>
</compile_context>

<pallas_src>
import numpy as np

import jax
import jax.numpy as jnp
from jax.experimental import pallas as pl
from jax.experimental.pallas import tpu as pltpu

# ----------------------------- config (small, TPU friendly) -----------------------------
BS = 2              # batch size
L = 128             # sequence length
HID = 64            # bert hidden size
NH = 4              # attention heads
NE = 8              # min_height / max_height (entity slots in channel map)
EMB = 64            # emb_size
BLK = 16            # block_size
NUM_LABELS = 8      # bert_config.num_labels
C_PAD = 128         # lane-dense padded classifier width (sliced to NUM_LABELS in wrapper)
OFFSET = 1          # bert / roberta offset
EPS = 1e-5
TM = 64             # pairs tile per grid step (bf16 sublane friendly)
N_PAD_MIN = 128     # batch at least this many (padded) pairs per call


# ----------------------------- fused Pallas kernel -----------------------------
def fused_docre_kernel(att_ref, seq_ref, s_ref, t_ref, oh_ref,
                       head_w_ref, tail_w_ref, head_b_ref, tail_b_ref,
                       es_ref, et_ref, binw_ref, binb_ref,
                       out_ref, cm_ref):
    """Everything after the encoder + glue, fused.

    att_ref   : (BS, NH*NE, L)     f32   per-entity attention rows, head-major
    seq_ref   : (BS, L, HID)       bf16
    s_ref     : (TM, HID)          bf16  head entity embeddings (pair-gathered block)
    t_ref     : (TM, HID)          bf16  tail entity embeddings
    oh_ref    : (TM, BS*NE*NE)     bf16  one-hot pair -> flat channel-map row
    head_w_ref: (2*HID, EMB)       bf16  [s rows ; h_t rows]
    tail_w_ref: (2*HID, EMB)       bf16  [t rows ; h_t rows]
    head_b_ref: (1, EMB)           f32
    tail_b_ref: (1, EMB)           f32
    es_ref    : (EMB, EMB*BLK)     bf16  precomputed block-expansion selection for s
    et_ref    : (EMB, EMB*BLK)     bf16  precomputed block-expansion selection for t
    binw_ref  : (EMB*BLK, C_PAD)   bf16  classifier weight, zero-padded columns
    binb_ref  : (1, C_PAD)         f32   classifier bias, -1e30 on padded columns
    out_ref   : (TM, C_PAD)        f32   ATLoss.get_label output (padded)
    cm_ref    : (BS*NE*NE, HID)    f32   VMEM scratch: stacked per-batch channel maps
    """
    # ---- channel map (never leaves VMEM); normalization folded AFTER the matmul ----
    for b in range(BS):                                                   # static unroll (tiny BS)
        att_b = att_ref[b]                                                # (NH*NE, L) f32
        a0 = att_b[0:NE, :]
        acc = a0[:, None, :] * a0[None, :, :]                             # (NE, NE, L)
        for hd in range(1, NH):                                           # static unroll over heads
            a = att_b[hd * NE:(hd + 1) * NE, :]
            acc = acc + a[:, None, :] * a[None, :, :]
        acc2 = acc.reshape(NE * NE, L)
        # head-mean folded into normalization: (acc/NH) / (sum(acc)/NH + eps) == acc / (sum(acc)+NH*eps)
        denom = jnp.sum(acc2, axis=-1, keepdims=True) + NH * EPS          # (NE*NE, 1)
        cm_raw = jnp.dot(acc2.astype(jnp.bfloat16), seq_ref[b],
                         preferred_element_type=jnp.float32)              # (NE*NE, HID)
        cm_ref[b * NE * NE:(b + 1) * NE * NE, :] = cm_raw / denom         # exact divide (f32)

    # ---- single K=128 bf16 one-hot gather of h_t for this block of pairs ----
    h_t = jnp.dot(oh_ref[...], cm_ref[...].astype(jnp.bfloat16),
                  preferred_element_type=jnp.float32)                     # (TM, HID) f32
    ht_bf = h_t.astype(jnp.bfloat16)

    # ---- head / tail extractors (dense weights, no zero blocks, no lane-64 slice) ----
    head_w = head_w_ref[...]
    tail_w = tail_w_ref[...]
    pre_s = (jnp.dot(s_ref[...], head_w[:HID, :], preferred_element_type=jnp.float32)
             + jnp.dot(ht_bf, head_w[HID:, :], preferred_element_type=jnp.float32)
             + head_b_ref[...])
    pre_t = (jnp.dot(t_ref[...], tail_w[:HID, :], preferred_element_type=jnp.float32)
             + jnp.dot(ht_bf, tail_w[HID:, :], preferred_element_type=jnp.float32)
             + tail_b_ref[...])
    s_out = jnp.tanh(pre_s).astype(jnp.bfloat16)                          # (TM, EMB)
    t_out = jnp.tanh(pre_t).astype(jnp.bfloat16)

    # ---- bilinear block expansion via precomputed selection matmuls ----
    # bl[n, k*BLK*BLK + i*BLK + j] = s_out[n, k*BLK+i] * t_out[n, k*BLK+j]
    s_exp = jnp.dot(s_out, es_ref[...], preferred_element_type=jnp.float32)   # (TM, EMB*BLK)
    t_exp = jnp.dot(t_out, et_ref[...], preferred_element_type=jnp.float32)
    bl = (s_exp * t_exp).astype(jnp.bfloat16)

    # ---- classifier (lane-dense C=128) + ATLoss.get_label (num_labels = -1 path) ----
    logits = jnp.dot(bl, binw_ref[...], preferred_element_type=jnp.float32) + binb_ref[...]
    th = logits[:, 0:1]
    out = jnp.where(logits > th, 1.0, 0.0)                                # padded cols: -1e30 -> 0
    row_sum = jnp.sum(out, axis=1, keepdims=True)
    cidx = jax.lax.broadcasted_iota(jnp.int32, out.shape, 1)
    out = jnp.where(cidx == 0, jnp.where(row_sum == 0.0, 1.0, 0.0), out)
    out_ref[...] = out


# ----------------------------- host-side index preparation (numpy, trace-time) -----------------------------
def prepare_structure(batch_entity_pos, batch_sent_pos, hts):
    bs = len(batch_entity_pos)
    num_entity = max(len(ep) for ep in batch_entity_pos)
    m_max = max(max(len(e) for e in ep) for ep in batch_entity_pos)
    num_mention = max(sum(len(e) for e in ep) for ep in batch_entity_pos)
    num_sent = max(len(sp) for sp in batch_sent_pos)

    ent_tok = np.zeros((bs, num_entity, m_max), np.int32)
    ent_msk = np.zeros((bs, num_entity, m_max), np.float32)
    ment_tok = np.zeros((bs, num_mention), np.int32)
    ment_msk = np.zeros((bs, num_mention), np.float32)
    sent_tok = np.zeros((bs, num_sent), np.int32)
    sent_msk = np.zeros((bs, num_sent), np.float32)
    pad_idx = np.zeros((bs, NE), np.int32)

    for b, ep in enumerate(batch_entity_pos):
        mid = 0
        for e, ent in enumerate(ep):
            for m, (start, _end) in enumerate(ent):
                if start + OFFSET < L:                       # reference's truncation bounds check
                    ent_tok[b, e, m] = start + OFFSET
                    ent_msk[b, e, m] = 1.0
                    ment_tok[b, mid] = start + OFFSET
                    ment_msk[b, mid] = 1.0
                mid += 1
        pad_idx[b] = np.minimum(np.arange(NE), len(ep) - 1)  # pad with last entity's attention
    for b, sp in enumerate(batch_sent_pos):
        for s, pos in enumerate(sp):
            sent_tok[b, s] = pos[0] + OFFSET
            sent_msk[b, s] = 1.0

    pair_b, pair_h, pair_t = [], [], []
    for b, ht in enumerate(hts):
        for (h, t) in ht:
            pair_b.append(b); pair_h.append(h); pair_t.append(t)
    n_pairs = len(pair_b)
    n_pad = max(N_PAD_MIN, -(-n_pairs // TM) * TM)           # >=128 pairs per call, TM-aligned
    padn = n_pad - n_pairs
    pair_b = np.array(pair_b + [0] * padn, np.int32)
    pair_h = np.array(pair_h + [0] * padn, np.int32)
    pair_t = np.array(pair_t + [0] * padn, np.int32)
    pair_flat = pair_b * NE * NE + pair_h * NE + pair_t
    pair_oh = np.zeros((n_pad, bs * NE * NE), np.float32)    # padded rows stay all-zero
    pair_oh[np.arange(n_pairs), pair_flat[:n_pairs]] = 1.0

    idx = dict(ent_tok=ent_tok, ent_msk=ent_msk, ment_tok=ment_tok, ment_msk=ment_msk,
               sent_tok=sent_tok, sent_msk=sent_msk, pad_idx=pad_idx,
               pair_b=pair_b, pair_h=pair_h, pair_t=pair_t, pair_oh=pair_oh)
    return idx, n_pairs


def build_block_selection():
    """Host-precomputed selection matrices for the bilinear block expansion."""
    c = np.arange(EMB * BLK)
    s_idx = c // BLK                                # bl[:, c] takes s_out[:, k*BLK + i]
    t_idx = (c // (BLK * BLK)) * BLK + (c % BLK)    # bl[:, c] takes t_out[:, k*BLK + j]
    rows = np.arange(EMB)[:, None]
    e_s = (s_idx[None, :] == rows).astype(np.float32)
    e_t = (t_idx[None, :] == rows).astype(np.float32)
    return e_s, e_t


# ----------------------------- jitted forward core (vectorized glue + fused kernel) -----------------------------
def docre_core(seq_out, attention, params, idx):
    bs = seq_out.shape[0]
    barange = jnp.arange(bs)

    # mention / sentence embeddings: only consumed by the use_graph branch -> DCE'd under jit
    _mention_embed = seq_out[barange[:, None], idx["ment_tok"]] * idx["ment_msk"][..., None]
    _sent_embed = seq_out[barange[:, None], idx["sent_tok"]] * idx["sent_msk"][..., None]

    # entity embeddings: masked logsumexp over mention start tokens
    msk = idx["ent_msk"]                                                     # (BS, NEnt, Mmax)
    cnt = jnp.sum(msk, axis=2)
    ent_vecs = seq_out[barange[:, None, None], idx["ent_tok"]]               # (BS, NEnt, Mmax, HID)
    masked_vecs = jnp.where(msk[..., None] > 0, ent_vecs, jnp.float32(-1e30))
    mx = jnp.max(masked_vecs, axis=2)
    sum_exp = jnp.sum(jnp.exp(masked_vecs - mx[:, :, None, :]) * msk[..., None], axis=2)
    entity_embed = jnp.where(cnt[..., None] > 0, mx + jnp.log(sum_exp + 1e-30), 0.0)

    # per-entity attentions (mean over mentions), padded to NE by repeating the last entity,
    # relayouted to (BS, NH*NE, L) so the kernel tile is (8,128)-aligned
    att_t = jnp.transpose(attention, (0, 2, 1, 3))                           # (BS, L, NH, L)
    att_rows = att_t[barange[:, None, None], idx["ent_tok"]]                 # (BS, NEnt, Mmax, NH, L)
    e_att = (jnp.sum(att_rows * msk[..., None, None], axis=2)
             / jnp.maximum(cnt, 1.0)[..., None, None])                       # (BS, NEnt, NH, L)
    ent_att_pad = e_att[barange[:, None], idx["pad_idx"]]                    # (BS, NE, NH, L)
    att_flat = jnp.transpose(ent_att_pad, (0, 2, 1, 3)).reshape(bs, NH * NE, L)

    # pair-gathered head/tail entity embeddings; bf16 (only consumed as bf16 in-kernel)
    s_emb = entity_embed[idx["pair_b"], idx["pair_h"]].astype(jnp.bfloat16)  # (N_pad, HID)
    t_emb = entity_embed[idx["pair_b"], idx["pair_t"]].astype(jnp.bfloat16)
    seq_bf = seq_out.astype(jnp.bfloat16)
    pair_oh = idx["pair_oh"].astype(jnp.bfloat16)

    n_pad = s_emb.shape[0]

    labels = pl.pallas_call(
        fused_docre_kernel,
        out_shape=jax.ShapeDtypeStruct((n_pad, C_PAD), jnp.float32),
        grid_spec=pltpu.PrefetchScalarGridSpec(
            num_scalar_prefetch=0,
            grid=(n_pad // TM,),
            in_specs=[
                pl.BlockSpec((BS, NH * NE, L), lambda i: (0, 0, 0)),     # attention rows (f32)
                pl.BlockSpec((BS, L, HID), lambda i: (0, 0, 0)),         # sequence (bf16)
                pl.BlockSpec((TM, HID), lambda i: (i, 0)),               # head entity emb (bf16)
                pl.BlockSpec((TM, HID), lambda i: (i, 0)),               # tail entity emb (bf16)
                pl.BlockSpec((TM, BS * NE * NE), lambda i: (i, 0)),      # pair one-hot (bf16)
                pl.BlockSpec((2 * HID, EMB), lambda i: (0, 0)),          # head extractor W
                pl.BlockSpec((2 * HID, EMB), lambda i: (0, 0)),          # tail extractor W
                pl.BlockSpec((1, EMB), lambda i: (0, 0)),                # head extractor b
                pl.BlockSpec((1, EMB), lambda i: (0, 0)),                # tail extractor b
                pl.BlockSpec((EMB, EMB * BLK), lambda i: (0, 0)),        # E_s (precomputed)
                pl.BlockSpec((EMB, EMB * BLK), lambda i: (0, 0)),        # E_t (precomputed)
                pl.BlockSpec((EMB * BLK, C_PAD), lambda i: (0, 0)),      # classifier W (padded)
                pl.BlockSpec((1, C_PAD), lambda i: (0, 0)),              # classifier b (padded)
            ],
            out_specs=pl.BlockSpec((TM, C_PAD), lambda i: (i, 0)),
            scratch_shapes=[pltpu.VMEM((BS * NE * NE, HID), jnp.float32)],
        ),
        compiler_params=pltpu.CompilerParams(
            dimension_semantics=("parallel",)),                          # both TCs on v7x
    )(att_flat, seq_bf, s_emb, t_emb, pair_oh,
      params["head_w"], params["tail_w"], params["head_b"], params["tail_b"],
      params["e_s"], params["e_t"], params["bin_w"], params["bin_b"])
    return labels


# ----------------------------- parameter construction -----------------------------
def build_params(key):
    k_hw, k_hb, k_tw, k_tb, k_bw, k_bb = jax.random.split(key, 6)
    head_w = jax.random.normal(k_hw, (EMB, 2 * HID), jnp.float32) / jnp.sqrt(2.0 * HID)
    tail_w = jax.random.normal(k_tw, (EMB, 2 * HID), jnp.float32) / jnp.sqrt(2.0 * HID)
    head_b = jax.random.normal(k_hb, (EMB,), jnp.float32) * 0.01
    tail_b = jax.random.normal(k_tb, (EMB,), jnp.float32) * 0.01
    bin_w = jax.random.normal(k_bw, (NUM_LABELS, EMB * BLK), jnp.float32) / jnp.sqrt(float(EMB * BLK))
    bin_b = jax.random.normal(k_bb, (NUM_LABELS,), jnp.float32) * 0.01

    # lane-dense classifier padding: zero weights + (-1e30) bias on padded columns keep
    # ATLoss.get_label semantics identical after slicing back to NUM_LABELS.
    bin_w_pad = jnp.zeros((EMB * BLK, C_PAD), jnp.float32).at[:, :NUM_LABELS].set(bin_w.T)
    bin_b_pad = jnp.full((1, C_PAD), -1e30, jnp.float32).at[0, :NUM_LABELS].set(bin_b)

    e_s_np, e_t_np = build_block_selection()

    return {
        "head_w": head_w.T.astype(jnp.bfloat16),     # (2*HID, EMB): [s rows ; h_t rows]
        "tail_w": tail_w.T.astype(jnp.bfloat16),     # (2*HID, EMB): [t rows ; h_t rows]
        "head_b": head_b[None, :],                   # (1, EMB) f32
        "tail_b": tail_b[None, :],
        "e_s": jnp.asarray(e_s_np, jnp.bfloat16),    # (EMB, EMB*BLK)
        "e_t": jnp.asarray(e_t_np, jnp.bfloat16),
        "bin_w": bin_w_pad.astype(jnp.bfloat16),     # (EMB*BLK, C_PAD)
        "bin_b": bin_b_pad,                          # (1, C_PAD) f32
    }


# ----------------------------- main -----------------------------
if __name__ == "__main__":
    key = jax.random.PRNGKey(0)
    k_seq, k_att, k_par = jax.random.split(key, 3)

    # synthesized encoder outputs (stand-in for the external BERT model)
    sequence_output = jax.random.normal(k_seq, (BS, L, HID), jnp.float32)
    attention = jax.nn.softmax(
        jax.random.normal(k_att, (BS, NH, L, L), jnp.float32), axis=-1
    )
    params = build_params(k_par)

    # synthetic document structure (token positions are small python ints)
    batch_entity_pos = [
        [[(2, 3), (10, 11)], [(20, 21)], [(30, 31), (40, 41), (50, 51)], [(60, 61)]],
        [[(5, 6)], [(15, 16), (25, 26)], [(35, 36)]],
    ]
    batch_sent_pos = [
        [(0, 20), (20, 60), (60, 100)],
        [(0, 40), (40, 90)],
    ]
    hts = [
        [(0, 1), (1, 0), (0, 2), (2, 0), (1, 2), (2, 1), (0, 3), (3, 0)],
        [(0, 1), (1, 0), (0, 2), (2, 0), (1, 2), (2, 1)],
    ]

    idx_np, n_pairs = prepare_structure(batch_entity_pos, batch_sent_pos, hts)
    idx = {k: jnp.asarray(v) for k, v in idx_np.items()}

    fwd = jax.jit(docre_core)
    out_padded = jax.block_until_ready(fwd(sequence_output, attention, params, idx))
    out = out_padded[:n_pairs, :NUM_LABELS]

    assert out.shape == (sum(len(h) for h in hts), NUM_LABELS)
    print("KERNEL_OK")
</pallas_src>

<mosaic_0001>
module attributes {stable_mosaic.version = 11 : i64} {
  func.func @fused_docre_kernel(%arg0: i32, %arg1: memref<2x32x128xf32, #tpu.memory_space<vmem>>, %arg2: memref<2x128x64xbf16, #tpu.memory_space<vmem>>, %arg3: memref<64x64xbf16, #tpu.memory_space<vmem>>, %arg4: memref<64x64xbf16, #tpu.memory_space<vmem>>, %arg5: memref<64x128xbf16, #tpu.memory_space<vmem>>, %arg6: memref<128x64xbf16, #tpu.memory_space<vmem>>, %arg7: memref<128x64xbf16, #tpu.memory_space<vmem>>, %arg8: memref<1x64xf32, #tpu.memory_space<vmem>>, %arg9: memref<1x64xf32, #tpu.memory_space<vmem>>, %arg10: memref<64x1024xbf16, #tpu.memory_space<vmem>>, %arg11: memref<64x1024xbf16, #tpu.memory_space<vmem>>, %arg12: memref<1024x128xbf16, #tpu.memory_space<vmem>>, %arg13: memref<1x128xf32, #tpu.memory_space<vmem>>, %arg14: memref<64x128xf32, #tpu.memory_space<vmem>>, %arg15: memref<128x64xf32, #tpu.memory_space<vmem>>) attributes {dimension_semantics = [#tpu.dimension_semantics<parallel>], iteration_bounds = array<i64: 2>, scalar_prefetch = 0 : i64, scratch_operands = 1 : i64, tpu.core_type = #tpu.core_type<tc>, window_params = [{pipeline_mode = #tpu.pipeline_mode<synchronous>, transform_indices = @transform_0, window_bounds = array<i64: 2, 32, 128>}, {pipeline_mode = #tpu.pipeline_mode<synchronous>, transform_indices = @transform_1, window_bounds = array<i64: 2, 128, 64>}, {transform_indices = @transform_2, window_bounds = array<i64: 64, 64>}, {transform_indices = @transform_3, window_bounds = array<i64: 64, 64>}, {transform_indices = @transform_4, window_bounds = array<i64: 64, 128>}, {pipeline_mode = #tpu.pipeline_mode<synchronous>, transform_indices = @transform_5, window_bounds = array<i64: 128, 64>}, {pipeline_mode = #tpu.pipeline_mode<synchronous>, transform_indices = @transform_6, window_bounds = array<i64: 128, 64>}, {pipeline_mode = #tpu.pipeline_mode<synchronous>, transform_indices = @transform_7, window_bounds = array<i64: 1, 64>}, {pipeline_mode = #tpu.pipeline_mode<synchronous>, transform_indices = @transform_8, window_bounds = array<i64: 1, 64>}, {pipeline_mode = #tpu.pipeline_mode<synchronous>, transform_indices = @transform_9, window_bounds = array<i64: 64, 1024>}, {pipeline_mode = #tpu.pipeline_mode<synchronous>, transform_indices = @transform_10, window_bounds = array<i64: 64, 1024>}, {pipeline_mode = #tpu.pipeline_mode<synchronous>, transform_indices = @transform_11, window_bounds = array<i64: 1024, 128>}, {pipeline_mode = #tpu.pipeline_mode<synchronous>, transform_indices = @transform_12, window_bounds = array<i64: 1, 128>}, {transform_indices = @transform_13, window_bounds = array<i64: 64, 128>}]} {
    %c0 = arith.constant 0 : index
    %c0_0 = arith.constant 0 : index
    %c0_1 = arith.constant 0 : index
    %0 = vector.load %arg1[%c0, %c0_0, %c0_1] : memref<2x32x128xf32, #tpu.memory_space<vmem>>, vector<1x32x128xf32>
    %1 = vector.shape_cast %0 : vector<1x32x128xf32> to vector<32x128xf32>
    %2 = vector.extract_strided_slice %1 {offsets = [0, 0], sizes = [8, 128], strides = [1, 1]} : vector<32x128xf32> to vector<8x128xf32>
    %3 = vector.shape_cast %2 : vector<8x128xf32> to vector<8x1x128xf32>
    %4 = vector.shape_cast %2 : vector<8x128xf32> to vector<1x8x128xf32>
    %5 = vector.broadcast %3 : vector<8x1x128xf32> to vector<8x8x128xf32>
    %6 = vector.broadcast %4 : vector<1x8x128xf32> to vector<8x8x128xf32>
    %7 = arith.mulf %5, %6 : vector<8x8x128xf32>
    %8 = vector.extract_strided_slice %1 {offsets = [8, 0], sizes = [8, 128], strides = [1, 1]} : vector<32x128xf32> to vector<8x128xf32>
    %9 = vector.shape_cast %8 : vector<8x128xf32> to vector<8x1x128xf32>
    %10 = vector.shape_cast %8 : vector<8x128xf32> to vector<1x8x128xf32>
    %11 = vector.broadcast %9 : vector<8x1x128xf32> to vector<8x8x128xf32>
    %12 = vector.broadcast %10 : vector<1x8x128xf32> to vector<8x8x128xf32>
    %13 = arith.mulf %11, %12 : vector<8x8x128xf32>
    %14 = arith.addf %7, %13 : vector<8x8x128xf32>
    %15 = vector.extract_strided_slice %1 {offsets = [16, 0], sizes = [8, 128], strides = [1, 1]} : vector<32x128xf32> to vector<8x128xf32>
    %16 = vector.shape_cast %15 : vector<8x128xf32> to vector<8x1x128xf32>
    %17 = vector.shape_cast %15 : vector<8x128xf32> to vector<1x8x128xf32>
    %18 = vector.broadcast %16 : vector<8x1x128xf32> to vector<8x8x128xf32>
    %19 = vector.broadcast %17 : vector<1x8x128xf32> to vector<8x8x128xf32>
    %20 = arith.mulf %18, %19 : vector<8x8x128xf32>
    %21 = arith.addf %14, %20 : vector<8x8x128xf32>
    %22 = vector.extract_strided_slice %1 {offsets = [24, 0], sizes = [8, 128], strides = [1, 1]} : vector<32x128xf32> to vector<8x128xf32>
    %23 = vector.shape_cast %22 : vector<8x128xf32> to vector<8x1x128xf32>
    %24 = vector.shape_cast %22 : vector<8x128xf32> to vector<1x8x128xf32>
    %25 = vector.broadcast %23 : vector<8x1x128xf32> to vector<8x8x128xf32>
    %26 = vector.broadcast %24 : vector<1x8x128xf32> to vector<8x8x128xf32>
    %27 = arith.mulf %25, %26 : vector<8x8x128xf32>
    %28 = arith.addf %21, %27 : vector<8x8x128xf32>
    %29 = vector.shape_cast %28 : vector<8x8x128xf32> to vector<64x128xf32>
    %cst = arith.constant dense<0.000000e+00> : vector<64xf32>
    %30 = vector.multi_reduction <add>, %29, %cst [1] : vector<64x128xf32> to vector<64xf32>
    %31 = vector.shape_cast %30 : vector<64xf32> to vector<64x1xf32>
    %cst_2 = arith.constant 4.000000e-05 : f32
    %32 = vector.broadcast %cst_2 : f32 to vector<64x1xf32>
    %33 = arith.addf %31, %32 : vector<64x1xf32>
    %34 = arith.truncf %29 : vector<64x128xf32> to vector<64x128xbf16>
    %c0_3 = arith.constant 0 : index
    %c0_4 = arith.constant 0 : index
    %c0_5 = arith.constant 0 : index
    %35 = vector.load %arg2[%c0_3, %c0_4, %c0_5] : memref<2x128x64xbf16, #tpu.memory_space<vmem>>, vector<1x128x64xbf16>
    %36 = vector.shape_cast %35 : vector<1x128x64xbf16> to vector<128x64xbf16>
    %cst_6 = arith.constant dense<0.000000e+00> : vector<64x64xf32>
    %37 = tpu.matmul %34, %36, %cst_6 {dimension_numbers = #tpu.dot_dimension_numbers<[1], [0], [0], [1], [0, 0, 1, 1], [], []>} : vector<64x128xbf16>, vector<128x64xbf16>, vector<64x64xf32> -> vector<64x64xf32>
    %38 = vector.broadcast %33 : vector<64x1xf32> to vector<64x64xf32>
    %39 = arith.divf %37, %38 : vector<64x64xf32>
    %c0_7 = arith.constant 0 : index
    %c0_8 = arith.constant 0 : index
    %40 = vector.load %arg15[%c0_7, %c0_8] : memref<128x64xf32, #tpu.memory_space<vmem>>, vector<64x64xf32>
    tpu.vector_store %arg15[%c0_7, %c0_8], %39 {strides = array<i32>} : memref<128x64xf32, #tpu.memory_space<vmem>>, vector<64x64xf32>,
    %c1 = arith.constant 1 : index
    %c0_9 = arith.constant 0 : index
    %c0_10 = arith.constant 0 : index
    %41 = vector.load %arg1[%c1, %c0_9, %c0_10] : memref<2x32x128xf32, #tpu.memory_space<vmem>>, vector<1x32x128xf32>
    %42 = vector.shape_cast %41 : vector<1x32x128xf32> to vector<32x128xf32>
    %43 = vector.extract_strided_slice %42 {offsets = [0, 0], sizes = [8, 128], strides = [1, 1]} : vector<32x128xf32> to vector<8x128xf32>
    %44 = vector.shape_cast %43 : vector<8x128xf32> to vector<8x1x128xf32>
    %45 = vector.shape_cast %43 : vector<8x128xf32> to vector<1x8x128xf32>
    %46 = vector.broadcast %44 : vector<8x1x128xf32> to vector<8x8x128xf32>
    %47 = vector.broadcast %45 : vector<1x8x128xf32> to vector<8x8x128xf32>
    %48 = arith.mulf %46, %47 : vector<8x8x128xf32>
    %49 = vector.extract_strided_slice %42 {offsets = [8, 0], sizes = [8, 128], strides = [1, 1]} : vector<32x128xf32> to vector<8x128xf32>
    %50 = vector.shape_cast %49 : vector<8x128xf32> to vector<8x1x128xf32>
    %51 = vector.shape_cast %49 : vector<8x128xf32> to vector<1x8x128xf32>
    %52 = vector.broadcast %50 : vector<8x1x128xf32> to vector<8x8x128xf32>
    %53 = vector.broadcast %51 : vector<1x8x128xf32> to vector<8x8x128xf32>
    %54 = arith.mulf %52, %53 : vector<8x8x128xf32>
    %55 = arith.addf %48, %54 : vector<8x8x128xf32>
    %56 = vector.extract_strided_slice %42 {offsets = [16, 0], sizes = [8, 128], strides = [1, 1]} : vector<32x128xf32> to vector<8x128xf32>
    %57 = vector.shape_cast %56 : vector<8x128xf32> to vector<8x1x128xf32>
    %58 = vector.shape_cast %56 : vector<8x128xf32> to vector<1x8x128xf32>
    %59 = vector.broadcast %57 : vector<8x1x128xf32> to vector<8x8x128xf32>
    %60 = vector.broadcast %58 : vector<1x8x128xf32> to vector<8x8x128xf32>
    %61 = arith.mulf %59, %60 : vector<8x8x128xf32>
    %62 = arith.addf %55, %61 : vector<8x8x128xf32>
    %63 = vector.extract_strided_slice %42 {offsets = [24, 0], sizes = [8, 128], strides = [1, 1]} : vector<32x128xf32> to vector<8x128xf32>
    %64 = vector.shape_cast %63 : vector<8x128xf32> to vector<8x1x128xf32>
    %65 = vector.shape_cast %63 : vector<8x128xf32> to vector<1x8x128xf32>
    %66 = vector.broadcast %64 : vector<8x1x128xf32> to vector<8x8x128xf32>
    %67 = vector.broadcast %65 : vector<1x8x128xf32> to vector<8x8x128xf32>
    %68 = arith.mulf %66, %67 : vector<8x8x128xf32>
    %69 = arith.addf %62, %68 : vector<8x8x128xf32>
    %70 = vector.shape_cast %69 : vector<8x8x128xf32> to vector<64x128xf32>
    %cst_11 = arith.constant dense<0.000000e+00> : vector<64xf32>
    %71 = vector.multi_reduction <add>, %70, %cst_11 [1] : vector<64x128xf32> to vector<64xf32>
    %72 = vector.shape_cast %71 : vector<64xf32> to vector<64x1xf32>
    %cst_12 = arith.constant 4.000000e-05 : f32
    %73 = vector.broadcast %cst_12 : f32 to vector<64x1xf32>
    %74 = arith.addf %72, %73 : vector<64x1xf32>
    %75 = arith.truncf %70 : vector<64x128xf32> to vector<64x128xbf16>
    %c1_13 = arith.constant 1 : index
    %c0_14 = arith.constant 0 : index
    %c0_15 = arith.constant 0 : index
    %76 = vector.load %arg2[%c1_13, %c0_14, %c0_15] : memref<2x128x64xbf16, #tpu.memory_space<vmem>>, vector<1x128x64xbf16>
    %77 = vector.shape_cast %76 : vector<1x128x64xbf16> to vector<128x64xbf16>
    %cst_16 = arith.constant dense<0.000000e+00> : vector<64x64xf32>
    %78 = tpu.matmul %75, %77, %cst_16 {dimension_numbers = #tpu.dot_dimension_numbers<[1], [0], [0], [1], [0, 0, 1, 1], [], []>} : vector<64x128xbf16>, vector<128x64xbf16>, vector<64x64xf32> -> vector<64x64xf32>
    %79 = vector.broadcast %74 : vector<64x1xf32> to vector<64x64xf32>
    %80 = arith.divf %78, %79 : vector<64x64xf32>
    %c64 = arith.constant 64 : index
    %c0_17 = arith.constant 0 : index
    %81 = vector.load %arg15[%c64, %c0_17] : memref<128x64xf32, #tpu.memory_space<vmem>>, vector<64x64xf32>
    tpu.vector_store %arg15[%c64, %c0_17], %80 {strides = array<i32>} : memref<128x64xf32, #tpu.memory_space<vmem>>, vector<64x64xf32>,
    %c0_18 = arith.constant 0 : index
    %c0_19 = arith.constant 0 : index
    %82 = vector.load %arg5[%c0_18, %c0_19] : memref<64x128xbf16, #tpu.memory_space<vmem>>, vector<64x128xbf16>
    %c0_20 = arith.constant 0 : index
    %c0_21 = arith.constant 0 : index
    %83 = vector.load %arg15[%c0_20, %c0_21] : memref<128x64xf32, #tpu.memory_space<vmem>>, vector<128x64xf32>
    %84 = arith.truncf %83 : vector<128x64xf32> to vector<128x64xbf16>
    %cst_22 = arith.constant dense<0.000000e+00> : vector<64x64xf32>
    %85 = tpu.matmul %82, %84, %cst_22 {dimension_numbers = #tpu.dot_dimension_numbers<[1], [0], [0], [1], [0, 0, 1, 1], [], []>} : vector<64x128xbf16>, vector<128x64xbf16>, vector<64x64xf32> -> vector<64x64xf32>
    %86 = arith.truncf %85 : vector<64x64xf32> to vector<64x64xbf16>
    %c0_23 = arith.constant 0 : index
    %c0_24 = arith.constant 0 : index
    %87 = vector.load %arg6[%c0_23, %c0_24] : memref<128x64xbf16, #tpu.memory_space<vmem>>, vector<128x64xbf16>
    %c0_25 = arith.constant 0 : index
    %c0_26 = arith.constant 0 : index
    %88 = vector.load %arg7[%c0_25, %c0_26] : memref<128x64xbf16, #tpu.memory_space<vmem>>, vector<128x64xbf16>
    %c0_27 = arith.constant 0 : index
    %c0_28 = arith.constant 0 : index
    %89 = vector.load %arg3[%c0_27, %c0_28] : memref<64x64xbf16, #tpu.memory_space<vmem>>, vector<64x64xbf16>
    %90 = vector.extract_strided_slice %87 {offsets = [0, 0], sizes = [64, 64], strides = [1, 1]} : vector<128x64xbf16> to vector<64x64xbf16>
    %cst_29 = arith.constant dense<0.000000e+00> : vector<64x64xf32>
    %91 = tpu.matmul %89, %90, %cst_29 {dimension_numbers = #tpu.dot_dimension_numbers<[1], [0], [0], [1], [0, 0, 1, 1], [], []>} : vector<64x64xbf16>, vector<64x64xbf16>, vector<64x64xf32> -> vector<64x64xf32>
    %92 = vector.extract_strided_slice %87 {offsets = [64, 0], sizes = [64, 64], strides = [1, 1]} : vector<128x64xbf16> to vector<64x64xbf16>
    %cst_30 = arith.constant dense<0.000000e+00> : vector<64x64xf32>
    %93 = tpu.matmul %86, %92, %cst_30 {dimension_numbers = #tpu.dot_dimension_numbers<[1], [0], [0], [1], [0, 0, 1, 1], [], []>} : vector<64x64xbf16>, vector<64x64xbf16>, vector<64x64xf32> -> vector<64x64xf32>
    %94 = arith.addf %91, %93 : vector<64x64xf32>
    %c0_31 = arith.constant 0 : index
    %c0_32 = arith.constant 0 : index
    %95 = vector.load %arg8[%c0_31, %c0_32] : memref<1x64xf32, #tpu.memory_space<vmem>>, vector<1x64xf32>
    %96 = vector.broadcast %95 : vector<1x64xf32> to vector<64x64xf32>
    %97 = arith.addf %94, %96 : vector<64x64xf32>
    %c0_33 = arith.constant 0 : index
    %c0_34 = arith.constant 0 : index
    %98 = vector.load %arg4[%c0_33, %c0_34] : memref<64x64xbf16, #tpu.memory_space<vmem>>, vector<64x64xbf16>
    %99 = vector.extract_strided_slice %88 {offsets = [0, 0], sizes = [64, 64], strides = [1, 1]} : vector<128x64xbf16> to vector<64x64xbf16>
    %cst_35 = arith.constant dense<0.000000e+00> : vector<64x64xf32>
    %100 = tpu.matmul %98, %99, %cst_35 {dimension_numbers = #tpu.dot_dimension_numbers<[1], [0], [0], [1], [0, 0, 1, 1], [], []>} : vector<64x64xbf16>, vector<64x64xbf16>, vector<64x64xf32> -> vector<64x64xf32>
    %101 = vector.extract_strided_slice %88 {offsets = [64, 0], sizes = [64, 64], strides = [1, 1]} : vector<128x64xbf16> to vector<64x64xbf16>
    %cst_36 = arith.constant dense<0.000000e+00> : vector<64x64xf32>
    %102 = tpu.matmul %86, %101, %cst_36 {dimension_numbers = #tpu.dot_dimension_numbers<[1], [0], [0], [1], [0, 0, 1, 1], [], []>} : vector<64x64xbf16>, vector<64x64xbf16>, vector<64x64xf32> -> vector<64x64xf32>
    %103 = arith.addf %100, %102 : vector<64x64xf32>
    %c0_37 = arith.constant 0 : index
    %c0_38 = arith.constant 0 : index
    %104 = vector.load %arg9[%c0_37, %c0_38] : memref<1x64xf32, #tpu.memory_space<vmem>>, vector<1x64xf32>
    %105 = vector.broadcast %104 : vector<1x64xf32> to vector<64x64xf32>
    %106 = arith.addf %103, %105 : vector<64x64xf32>
    %107 = math.tanh %97 : vector<64x64xf32>
    %108 = arith.truncf %107 : vector<64x64xf32> to vector<64x64xbf16>
    %109 = math.tanh %106 : vector<64x64xf32>
    %110 = arith.truncf %109 : vector<64x64xf32> to vector<64x64xbf16>
    %c0_39 = arith.constant 0 : index
    %c0_40 = arith.constant 0 : index
    %111 = vector.load %arg10[%c0_39, %c0_40] : memref<64x1024xbf16, #tpu.memory_space<vmem>>, vector<64x1024xbf16>
    %cst_41 = arith.constant dense<0.000000e+00> : vector<64x1024xf32>
    %112 = tpu.matmul %108, %111, %cst_41 {dimension_numbers = #tpu.dot_dimension_numbers<[1], [0], [0], [1], [0, 0, 1, 1], [], []>} : vector<64x64xbf16>, vector<64x1024xbf16>, vector<64x1024xf32> -> vector<64x1024xf32>
    %c0_42 = arith.constant 0 : index
    %c0_43 = arith.constant 0 : index
    %113 = vector.load %arg11[%c0_42, %c0_43] : memref<64x1024xbf16, #tpu.memory_space<vmem>>, vector<64x1024xbf16>
    %cst_44 = arith.constant dense<0.000000e+00> : vector<64x1024xf32>
    %114 = tpu.matmul %110, %113, %cst_44 {dimension_numbers = #tpu.dot_dimension_numbers<[1], [0], [0], [1], [0, 0, 1, 1], [], []>} : vector<64x64xbf16>, vector<64x1024xbf16>, vector<64x1024xf32> -> vector<64x1024xf32>
    %115 = arith.mulf %112, %114 : vector<64x1024xf32>
    %116 = arith.truncf %115 : vector<64x1024xf32> to vector<64x1024xbf16>
    %c0_45 = arith.constant 0 : index
    %c0_46 = arith.constant 0 : index
    %117 = vector.load %arg12[%c0_45, %c0_46] : memref<1024x128xbf16, #tpu.memory_space<vmem>>, vector<1024x128xbf16>
    %cst_47 = arith.constant dense<0.000000e+00> : vector<64x128xf32>
    %118 = tpu.matmul %116, %117, %cst_47 {dimension_numbers = #tpu.dot_dimension_numbers<[1], [0], [0], [1], [0, 0, 1, 1], [], []>} : vector<64x1024xbf16>, vector<1024x128xbf16>, vector<64x128xf32> -> vector<64x128xf32>
    %c0_48 = arith.constant 0 : index
    %c0_49 = arith.constant 0 : index
    %119 = vector.load %arg13[%c0_48, %c0_49] : memref<1x128xf32, #tpu.memory_space<vmem>>, vector<1x128xf32>
    %120 = vector.broadcast %119 : vector<1x128xf32> to vector<64x128xf32>
    %121 = arith.addf %118, %120 : vector<64x128xf32>
    %122 = vector.extract_strided_slice %121 {offsets = [0, 0], sizes = [64, 1], strides = [1, 1]} : vector<64x128xf32> to vector<64x1xf32>
    %123 = vector.broadcast %122 : vector<64x1xf32> to vector<64x128xf32>
    %124 = arith.cmpf ogt, %121, %123 : vector<64x128xf32>
    %cst_50 = arith.constant 1.000000e+00 : f32
    %cst_51 = arith.constant 0.000000e+00 : f32
    %125 = vector.broadcast %cst_50 : f32 to vector<64x128xf32>
    %126 = vector.broadcast %cst_51 : f32 to vector<64x128xf32>
    %127 = arith.select %124, %125, %126 : vector<64x128xi1>, vector<64x128xf32>
    %cst_52 = arith.constant dense<0.000000e+00> : vector<64xf32>
    %128 = vector.multi_reduction <add>, %127, %cst_52 [1] : vector<64x128xf32> to vector<64xf32>
    %129 = vector.shape_cast %128 : vector<64xf32> to vector<64x1xf32>
    %130 = tpu.iota {dimensions = array<i32: 1>} : vector<64x128xi32>
    %c0_i32 = arith.constant 0 : i32
    %131 = vector.broadcast %c0_i32 : i32 to vector<64x128xi32>
    %132 = arith.cmpi eq, %130, %131 : vector<64x128xi32>
    %cst_53 = arith.constant 0.000000e+00 : f32
    %133 = vector.broadcast %cst_53 : f32 to vector<64x1xf32>
    %134 = arith.cmpf oeq, %129, %133 : vector<64x1xf32>
    %cst_54 = arith.constant 1.000000e+00 : f32
    %cst_55 = arith.constant 0.000000e+00 : f32
    %135 = vector.broadcast %cst_54 : f32 to vector<64x1xf32>
    %136 = vector.broadcast %cst_55 : f32 to vector<64x1xf32>
    %137 = arith.select %134, %135, %136 : vector<64x1xi1>, vector<64x1xf32>
    %138 = vector.shape_cast %137 : vector<64x1xf32> to vector<64x1xf32>
    %139 = vector.broadcast %138 : vector<64x1xf32> to vector<64x128xf32>
    %140 = arith.select %132, %139, %127 : vector<64x128xi1>, vector<64x128xf32>
    %c0_56 = arith.constant 0 : index
    %c0_57 = arith.constant 0 : index
    %141 = vector.load %arg14[%c0_56, %c0_57] : memref<64x128xf32, #tpu.memory_space<vmem>>, vector<64x128xf32>
    tpu.vector_store %arg14[%c0_56, %c0_57], %140 {strides = array<i32>} : memref<64x128xf32, #tpu.memory_space<vmem>>, vector<64x128xf32>,
    return
  }
  func.func @transform_0(%arg0: i32) -> (i32, i32, i32) {
    %c0_i32 = arith.constant 0 : i32
    %c0_i32_0 = arith.constant 0 : i32
    %c0_i32_1 = arith.constant 0 : i32
    %c0_i32_2 = arith.constant 0 : i32
    return %c0_i32, %c0_i32_0, %c0_i32_1 : i32, i32, i32
  }
  func.func @transform_1(%arg0: i32) -> (i32, i32, i32) {
    %c0_i32 = arith.constant 0 : i32
    %c0_i32_0 = arith.constant 0 : i32
    %c0_i32_1 = arith.constant 0 : i32
    %c0_i32_2 = arith.constant 0 : i32
    return %c0_i32, %c0_i32_0, %c0_i32_1 : i32, i32, i32
  }
  func.func @transform_2(%arg0: i32) -> (i32, i32) {
    %c0_i32 = arith.constant 0 : i32
    %c0_i32_0 = arith.constant 0 : i32
    return %arg0, %c0_i32 : i32, i32
  }
  func.func @transform_3(%arg0: i32) -> (i32, i32) {
    %c0_i32 = arith.constant 0 : i32
    %c0_i32_0 = arith.constant 0 : i32
    return %arg0, %c0_i32 : i32, i32
  }
  func.func @transform_4(%arg0: i32) -> (i32, i32) {
    %c0_i32 = arith.constant 0 : i32
    %c0_i32_0 = arith.constant 0 : i32
    return %arg0, %c0_i32 : i32, i32
  }
  func.func @transform_5(%arg0: i32) -> (i32, i32) {
    %c0_i32 = arith.constant 0 : i32
    %c0_i32_0 = arith.constant 0 : i32
    %c0_i32_1 = arith.constant 0 : i32
    return %c0_i32, %c0_i32_0 : i32, i32
  }
  func.func @transform_6(%arg0: i32) -> (i32, i32) {
    %c0_i32 = arith.constant 0 : i32
    %c0_i32_0 = arith.constant 0 : i32
    %c0_i32_1 = arith.constant 0 : i32
    return %c0_i32, %c0_i32_0 : i32, i32
  }
  func.func @transform_7(%arg0: i32) -> (i32, i32) {
    %c0_i32 = arith.constant 0 : i32
    %c0_i32_0 = arith.constant 0 : i32
    %c0_i32_1 = arith.constant 0 : i32
    return %c0_i32, %c0_i32_0 : i32, i32
  }
  func.func @transform_8(%arg0: i32) -> (i32, i32) {
    %c0_i32 = arith.constant 0 : i32
    %c0_i32_0 = arith.constant 0 : i32
    %c0_i32_1 = arith.constant 0 : i32
    return %c0_i32, %c0_i32_0 : i32, i32
  }
  func.func @transform_9(%arg0: i32) -> (i32, i32) {
    %c0_i32 = arith.constant 0 : i32
    %c0_i32_0 = arith.constant 0 : i32
    %c0_i32_1 = arith.constant 0 : i32
    return %c0_i32, %c0_i32_0 : i32, i32
  }
  func.func @transform_10(%arg0: i32) -> (i32, i32) {
    %c0_i32 = arith.constant 0 : i32
    %c0_i32_0 = arith.constant 0 : i32
    %c0_i32_1 = arith.constant 0 : i32
    return %c0_i32, %c0_i32_0 : i32, i32
  }
  func.func @transform_11(%arg0: i32) -> (i32, i32) {
    %c0_i32 = arith.constant 0 : i32
    %c0_i32_0 = arith.constant 0 : i32
    %c0_i32_1 = arith.constant 0 : i32
    return %c0_i32, %c0_i32_0 : i32, i32
  }
  func.func @transform_12(%arg0: i32) -> (i32, i32) {
    %c0_i32 = arith.constant 0 : i32
    %c0_i32_0 = arith.constant 0 : i32
    %c0_i32_1 = arith.constant 0 : i32
    return %c0_i32, %c0_i32_0 : i32, i32
  }
  func.func @transform_13(%arg0: i32) -> (i32, i32) {
    %c0_i32 = arith.constant 0 : i32
    %c0_i32_0 = arith.constant 0 : i32
    return %arg0, %c0_i32 : i32, i32
  }
}

</mosaic_0001>

<llo_original>
// kernel: docre_core.1
$region0: #{docre_core.1}
  #allocation0 [shape = 'u32[]', space=smem, size = 0x4, offset = 0x4, fixed_abs, tag = 'smem constant byte address 0x4 - core index']
  #allocation1 [shape = 'u32[72,128]{1,0:T(1,128)}', space=vmem, size = 0x9000, scoped, tag = 'internal scratch']
  #allocation2 [shape = 'f32[128,64]{1,0:T(8,128)}', space=vmem, size = 0x10000, scoped, tag = 'scratch operand']
  %s0 = inlined_call_operand.vmem [shape: f32[2,32,128], index: 0, kind: input, shape index: {}]
  %s1 = inlined_call_operand.vmem [shape: bf16[2,128,64], index: 1, kind: input, shape index: {}]
  %s2 = inlined_call_operand.vmem [shape: bf16[128,64], index: 2, kind: input, shape index: {}]
  %s3 = inlined_call_operand.vmem [shape: bf16[128,64], index: 3, kind: input, shape index: {}]
  %s4 = inlined_call_operand.vmem [shape: bf16[128,128], index: 4, kind: input, shape index: {}]
  %s5 = inlined_call_operand.vmem [shape: bf16[128,64], index: 5, kind: input, shape index: {}]
  %s6 = inlined_call_operand.vmem [shape: bf16[128,64], index: 6, kind: input, shape index: {}]
  %s7 = inlined_call_operand.vmem [shape: f32[1,64], index: 7, kind: input, shape index: {}]
  %s8 = inlined_call_operand.vmem [shape: f32[1,64], index: 8, kind: input, shape index: {}]
  %s9 = inlined_call_operand.vmem [shape: bf16[64,1024], index: 9, kind: input, shape index: {}]
  %s10 = inlined_call_operand.vmem [shape: bf16[64,1024], index: 10, kind: input, shape index: {}]
  %s11 = inlined_call_operand.vmem [shape: bf16[1024,128], index: 11, kind: input, shape index: {}]
  %s12 = inlined_call_operand.vmem [shape: f32[1,128], index: 12, kind: input, shape index: {}]
  %s13 = inlined_call_operand.hbm [shape: f32[128,128], index: 13, kind: output, shape index: {}]
  %s14 = sld [smem:[#allocation0]]
  $region85: #{docre_core.1} parent=0
    _
  %s16 = ssub.s32 1, %s14
  %s17 = scalar_select 0, %s16, %s14
  $region1: #{docre_core.1} parent=0
    #allocation3 [shape = 'u8[65536]{0}', space=vmem, size = 0x10000, scoped, tag = 'output window, operand 0']
    #allocation4 [shape = 's32[2]{0}', space=sflag, size = 0x8, scoped, tag = 'scoped memory for docre_core.1']
    %18 = vsyncpa [#allocation4], 0
    %s19 = scalar_lea.sflag [#allocation4], 1
    %20 = vsyncpa %s19, 0
    loop: start=0, step=1, limit=4
    $region2: #{docre_core.1} parent=1 // loop_pre_header
      _
    $region3: #{docre_core.1} parent=1 // loop_header
      %s22 = sphi 0, %s26
      %p23 = scmp.ge.s32.totalorder %s22, 4
      %s30 = sphi 0, %s30
      %s32 = sphi 0, %s30
      %s33 = sphi 0, %s32
      %s47 = sphi 0, %s33
      %s51 = sphi 0, %s51
      %s53 = sphi 0, %s51
      %s54 = sphi 0, %s53
      %s68 = sphi 0, %s54
      %s74 = sphi 0, %s76
      %s77 = sphi 0, %s74
      %s78 = sphi 0, %s77
      %s94 = sphi 0, %s78
      %s100 = sphi 0, %s102
      %s103 = sphi 0, %s100
      %s104 = sphi 0, %s103
      %s120 = sphi 0, %s104
      %s126 = sphi 0, %s128
      %s129 = sphi 0, %s126
      %s130 = sphi 0, %s129
      %s146 = sphi 0, %s130
      %s150 = sphi 0, %s150
      %s152 = sphi 0, %s150
      %s153 = sphi 0, %s152
      %s167 = sphi 0, %s153
      %s171 = sphi 0, %s171
      %s173 = sphi 0, %s171
      %s174 = sphi 0, %s173
      %s188 = sphi 0, %s174
      %s192 = sphi 0, %s192
      %s194 = sphi 0, %s192
      %s195 = sphi 0, %s194
      %s209 = sphi 0, %s195
      %s213 = sphi 0, %s213
      %s215 = sphi 0, %s213
      %s216 = sphi 0, %s215
      %s230 = sphi 0, %s216
      %s234 = sphi 0, %s234
      %s236 = sphi 0, %s234
      %s237 = sphi 0, %s236
      %s251 = sphi 0, %s237
      %s255 = sphi 0, %s255
      %s257 = sphi 0, %s255
      %s258 = sphi 0, %s257
      %s272 = sphi 0, %s258
      %s276 = sphi 0, %s276
      %s278 = sphi 0, %s276
      %s279 = sphi 0, %s278
      %s293 = sphi 0, %s279
      %s297 = sphi 0, %s297
      %s299 = sphi 0, %s297
      %s300 = sphi 0, %s299
      %s314 = sphi 0, %s300
      %s320 = sphi 0, %s322
      %s323 = sphi 0, %s320
      %s324 = sphi 0, %s323
      %s340 = sphi 0, %s324
    $region4: #{docre_core.1} parent=1 // loop_header_branch
      %25 = sbr.rel (%p23) target = $region8
    $region5: #{docre_core.1} parent=1 // loop_body
      %s27 = ssub.s32 %s22, 1
      %s28 = ssub.s32 %s22, 2
      %s29 = sadd.s32 %s22, 1
      %s31 = sadd.s32 %s30, 1
      %p34 = scmp.eq.s32.totalorder %s22, 1
      %p35 = scmp.ne.s32.totalorder %s30, %s32
      %p36 = scmp.eq.s32.totalorder %s22, 0
      %p37 = por %p35, %p36
      %p38 = scmp.ne.s32.totalorder %s30, %s32
      %p39 = scmp.eq.s32.totalorder %s27, 1
      %p40 = por %p38, %p39
      %p41 = scmp.ne.s32.totalorder %s32, %s33
      %p42 = scmp.eq.s32.totalorder %s27, 0
      %p43 = por %p41, %p42
      %p44 = scmp.ne.s32.totalorder %s32, %s33
      %p45 = scmp.eq.s32.totalorder %s28, 1
      %p46 = por %p44, %p45
      %p48 = scmp.ne.s32.totalorder %s33, %s47
      %p49 = scmp.eq.s32.totalorder %s28, 0
      %p50 = por %p48, %p49
      %s52 = sadd.s32 %s51, 1
      %p55 = scmp.eq.s32.totalorder %s22, 1
      %p56 = scmp.ne.s32.totalorder %s51, %s53
      %p57 = scmp.eq.s32.totalorder %s22, 0
      %p58 = por %p56, %p57
      %p59 = scmp.ne.s32.totalorder %s51, %s53
      %p60 = scmp.eq.s32.totalorder %s27, 1
      %p61 = por %p59, %p60
      %p62 = scmp.ne.s32.totalorder %s53, %s54
      %p63 = scmp.eq.s32.totalorder %s27, 0
      %p64 = por %p62, %p63
      %p65 = scmp.ne.s32.totalorder %s53, %s54
      %p66 = scmp.eq.s32.totalorder %s28, 1
      %p67 = por %p65, %p66
      %p69 = scmp.ne.s32.totalorder %s54, %s68
      %p70 = scmp.eq.s32.totalorder %s28, 0
      %p71 = por %p69, %p70
      %s72 = ssub.s32 %s22, %s29
      %p73 = scmp.eq.s32.totalorder %s72, 0
      %s75 = sadd.s32 %s74, 1
      %s76 = scalar_select %p73, %s74, %s75
      %p79 = pneg %p73
      %p80 = scmp.eq.s32.totalorder %s22, 1
      %p81 = por %p79, %p80
      %p82 = scmp.ne.s32.totalorder %s74, %s77
      %p83 = scmp.eq.s32.totalorder %s22, 0
      %p84 = por %p82, %p83
      %p85 = scmp.ne.s32.totalorder %s74, %s77
      %p86 = scmp.eq.s32.totalorder %s27, 1
      %p87 = por %p85, %p86
      %p88 = scmp.ne.s32.totalorder %s77, %s78
      %p89 = scmp.eq.s32.totalorder %s27, 0
      %p90 = por %p88, %p89
      %p91 = scmp.ne.s32.totalorder %s77, %s78
      %p92 = scmp.eq.s32.totalorder %s28, 1
      %p93 = por %p91, %p92
      %p95 = scmp.ne.s32.totalorder %s78, %s94
      %p96 = scmp.eq.s32.totalorder %s28, 0
      %p97 = por %p95, %p96
      %s98 = ssub.s32 %s22, %s29
      %p99 = scmp.eq.s32.totalorder %s98, 0
      %s101 = sadd.s32 %s100, 1
      %s102 = scalar_select %p99, %s100, %s101
      %p105 = pneg %p99
      %p106 = scmp.eq.s32.totalorder %s22, 1
      %p107 = por %p105, %p106
      %p108 = scmp.ne.s32.totalorder %s100, %s103
      %p109 = scmp.eq.s32.totalorder %s22, 0
      %p110 = por %p108, %p109
      %p111 = scmp.ne.s32.totalorder %s100, %s103
      %p112 = scmp.eq.s32.totalorder %s27, 1
      %p113 = por %p111, %p112
      %p114 = scmp.ne.s32.totalorder %s103, %s104
      %p115 = scmp.eq.s32.totalorder %s27, 0
      %p116 = por %p114, %p115
      %p117 = scmp.ne.s32.totalorder %s103, %s104
      %p118 = scmp.eq.s32.totalorder %s28, 1
      %p119 = por %p117, %p118
      %p121 = scmp.ne.s32.totalorder %s104, %s120
      %p122 = scmp.eq.s32.totalorder %s28, 0
      %p123 = por %p121, %p122
      %s124 = ssub.s32 %s22, %s29
      %p125 = scmp.eq.s32.totalorder %s124, 0
      %s127 = sadd.s32 %s126, 1
      %s128 = scalar_select %p125, %s126, %s127
      %p131 = pneg %p125
      %p132 = scmp.eq.s32.totalorder %s22, 1
      %p133 = por %p131, %p132
      %p134 = scmp.ne.s32.totalorder %s126, %s129
      %p135 = scmp.eq.s32.totalorder %s22, 0
      %p136 = por %p134, %p135
      %p137 = scmp.ne.s32.totalorder %s126, %s129
      %p138 = scmp.eq.s32.totalorder %s27, 1
      %p139 = por %p137, %p138
      %p140 = scmp.ne.s32.totalorder %s129, %s130
      %p141 = scmp.eq.s32.totalorder %s27, 0
      %p142 = por %p140, %p141
      %p143 = scmp.ne.s32.totalorder %s129, %s130
      %p144 = scmp.eq.s32.totalorder %s28, 1
      %p145 = por %p143, %p144
      %p147 = scmp.ne.s32.totalorder %s130, %s146
      %p148 = scmp.eq.s32.totalorder %s28, 0
      %p149 = por %p147, %p148
      %s151 = sadd.s32 %s150, 1
      %p154 = scmp.eq.s32.totalorder %s22, 1
      %p155 = scmp.ne.s32.totalorder %s150, %s152
      %p156 = scmp.eq.s32.totalorder %s22, 0
      %p157 = por %p155, %p156
      %p158 = scmp.ne.s32.totalorder %s150, %s152
      %p159 = scmp.eq.s32.totalorder %s27, 1
      %p160 = por %p158, %p159
      %p161 = scmp.ne.s32.totalorder %s152, %s153
      %p162 = scmp.eq.s32.totalorder %s27, 0
      %p163 = por %p161, %p162
      %p164 = scmp.ne.s32.totalorder %s152, %s153
      %p165 = scmp.eq.s32.totalorder %s28, 1
      %p166 = por %p164, %p165
      %p168 = scmp.ne.s32.totalorder %s153, %s167
      %p169 = scmp.eq.s32.totalorder %s28, 0
      %p170 = por %p168, %p169
      %s172 = sadd.s32 %s171, 1
      %p175 = scmp.eq.s32.totalorder %s22, 1
      %p176 = scmp.ne.s32.totalorder %s171, %s173
      %p177 = scmp.eq.s32.totalorder %s22, 0
      %p178 = por %p176, %p177
      %p179 = scmp.ne.s32.totalorder %s171, %s173
      %p180 = scmp.eq.s32.totalorder %s27, 1
      %p181 = por %p179, %p180
      %p182 = scmp.ne.s32.totalorder %s173, %s174
      %p183 = scmp.eq.s32.totalorder %s27, 0
      %p184 = por %p182, %p183
      %p185 = scmp.ne.s32.totalorder %s173, %s174
      %p186 = scmp.eq.s32.totalorder %s28, 1
      %p187 = por %p185, %p186
      %p189 = scmp.ne.s32.totalorder %s174, %s188
      %p190 = scmp.eq.s32.totalorder %s28, 0
      %p191 = por %p189, %p190
      %s193 = sadd.s32 %s192, 1
      %p196 = scmp.eq.s32.totalorder %s22, 1
      %p197 = scmp.ne.s32.totalorder %s192, %s194
      %p198 = scmp.eq.s32.totalorder %s22, 0
      %p199 = por %p197, %p198
      %p200 = scmp.ne.s32.totalorder %s192, %s194
      %p201 = scmp.eq.s32.totalorder %s27, 1
      %p202 = por %p200, %p201
      %p203 = scmp.ne.s32.totalorder %s194, %s195
      %p204 = scmp.eq.s32.totalorder %s27, 0
      %p205 = por %p203, %p204
      %p206 = scmp.ne.s32.totalorder %s194, %s195
      %p207 = scmp.eq.s32.totalorder %s28, 1
      %p208 = por %p206, %p207
      %p210 = scmp.ne.s32.totalorder %s195, %s209
      %p211 = scmp.eq.s32.totalorder %s28, 0
      %p212 = por %p210, %p211
      %s214 = sadd.s32 %s213, 1
      %p217 = scmp.eq.s32.totalorder %s22, 1
      %p218 = scmp.ne.s32.totalorder %s213, %s215
      %p219 = scmp.eq.s32.totalorder %s22, 0
      %p220 = por %p218, %p219
      %p221 = scmp.ne.s32.totalorder %s213, %s215
      %p222 = scmp.eq.s32.totalorder %s27, 1
      %p223 = por %p221, %p222
      %p224 = scmp.ne.s32.totalorder %s215, %s216
      %p225 = scmp.eq.s32.totalorder %s27, 0
      %p226 = por %p224, %p225
      %p227 = scmp.ne.s32.totalorder %s215, %s216
      %p228 = scmp.eq.s32.totalorder %s28, 1
      %p229 = por %p227, %p228
      %p231 = scmp.ne.s32.totalorder %s216, %s230
      %p232 = scmp.eq.s32.totalorder %s28, 0
      %p233 = por %p231, %p232
      %s235 = sadd.s32 %s234, 1
      %p238 = scmp.eq.s32.totalorder %s22, 1
      %p239 = scmp.ne.s32.totalorder %s234, %s236
      %p240 = scmp.eq.s32.totalorder %s22, 0
      %p241 = por %p239, %p240
      %p242 = scmp.ne.s32.totalorder %s234, %s236
      %p243 = scmp.eq.s32.totalorder %s27, 1
      %p244 = por %p242, %p243
      %p245 = scmp.ne.s32.totalorder %s236, %s237
      %p246 = scmp.eq.s32.totalorder %s27, 0
      %p247 = por %p245, %p246
      %p248 = scmp.ne.s32.totalorder %s236, %s237
      %p249 = scmp.eq.s32.totalorder %s28, 1
      %p250 = por %p248, %p249
      %p252 = scmp.ne.s32.totalorder %s237, %s251
      %p253 = scmp.eq.s32.totalorder %s28, 0
      %p254 = por %p252, %p253
      %s256 = sadd.s32 %s255, 1
      %p259 = scmp.eq.s32.totalorder %s22, 1
      %p260 = scmp.ne.s32.totalorder %s255, %s257
      %p261 = scmp.eq.s32.totalorder %s22, 0
      %p262 = por %p260, %p261
      %p263 = scmp.ne.s32.totalorder %s255, %s257
      %p264 = scmp.eq.s32.totalorder %s27, 1
      %p265 = por %p263, %p264
      %p266 = scmp.ne.s32.totalorder %s257, %s258
      %p267 = scmp.eq.s32.totalorder %s27, 0
      %p268 = por %p266, %p267
      %p269 = scmp.ne.s32.totalorder %s257, %s258
      %p270 = scmp.eq.s32.totalorder %s28, 1
      %p271 = por %p269, %p270
      %p273 = scmp.ne.s32.totalorder %s258, %s272
      %p274 = scmp.eq.s32.totalorder %s28, 0
      %p275 = por %p273, %p274
      %s277 = sadd.s32 %s276, 1
      %p280 = scmp.eq.s32.totalorder %s22, 1
      %p281 = scmp.ne.s32.totalorder %s276, %s278
      %p282 = scmp.eq.s32.totalorder %s22, 0
      %p283 = por %p281, %p282
      %p284 = scmp.ne.s32.totalorder %s276, %s278
      %p285 = scmp.eq.s32.totalorder %s27, 1
      %p286 = por %p284, %p285
      %p287 = scmp.ne.s32.totalorder %s278, %s279
      %p288 = scmp.eq.s32.totalorder %s27, 0
      %p289 = por %p287, %p288
      %p290 = scmp.ne.s32.totalorder %s278, %s279
      %p291 = scmp.eq.s32.totalorder %s28, 1
      %p292 = por %p290, %p291
      %p294 = scmp.ne.s32.totalorder %s279, %s293
      %p295 = scmp.eq.s32.totalorder %s28, 0
      %p296 = por %p294, %p295
      %s298 = sadd.s32 %s297, 1
      %p301 = scmp.eq.s32.totalorder %s22, 1
      %p302 = scmp.ne.s32.totalorder %s297, %s299
      %p303 = scmp.eq.s32.totalorder %s22, 0
      %p304 = por %p302, %p303
      %p305 = scmp.ne.s32.totalorder %s297, %s299
      %p306 = scmp.eq.s32.totalorder %s27, 1
      %p307 = por %p305, %p306
      %p308 = scmp.ne.s32.totalorder %s299, %s300
      %p309 = scmp.eq.s32.totalorder %s27, 0
      %p310 = por %p308, %p309
      %p311 = scmp.ne.s32.totalorder %s299, %s300
      %p312 = scmp.eq.s32.totalorder %s28, 1
      %p313 = por %p311, %p312
      %p315 = scmp.ne.s32.totalorder %s300, %s314
      %p316 = scmp.eq.s32.totalorder %s28, 0
      %p317 = por %p315, %p316
      %s318 = ssub.s32 %s22, %s29
      %p319 = scmp.eq.s32.totalorder %s318, 0
      %s321 = sadd.s32 %s320, 1
      %s322 = scalar_select %p319, %s320, %s321
      %p325 = pneg %p319
      %p326 = scmp.eq.s32.totalorder %s22, 1
      %p327 = por %p325, %p326
      %p328 = scmp.ne.s32.totalorder %s320, %s323
      %p329 = scmp.eq.s32.totalorder %s22, 0
      %p330 = por %p328, %p329
      %p331 = scmp.ne.s32.totalorder %s320, %s323
      %p332 = scmp.eq.s32.totalorder %s27, 1
      %p333 = por %p331, %p332
      %p334 = scmp.ne.s32.totalorder %s323, %s324
      %p335 = scmp.eq.s32.totalorder %s27, 0
      %p336 = por %p334, %p335
      %p337 = scmp.ne.s32.totalorder %s323, %s324
      %p338 = scmp.eq.s32.totalorder %s28, 1
      %p339 = por %p337, %p338
      %p341 = scmp.ne.s32.totalorder %s324, %s340
      %p342 = scmp.eq.s32.totalorder %s28, 0
      %p343 = por %p341, %p342
      %p344 = scmp.le.s32.totalorder 1, %s22
      %p345 = scmp.lt.s32.totalorder %s22, 3
      %p346 = pnand %p344, %p345
      %p347 = pneg %p346
      // Predicated region
      $region9: #{docre_core.1} parent=5 // pred_check
        _
      $region10: #{docre_core.1} parent=5 // pred_check_branch
        %349 = sbr.rel (%p346) target = $region12
      $region11: #{docre_core.1} parent=5 // pred_region
        %s350 = ssub.s32 %s22, 1
        // Predicated region
        $region13: #{docre_core.1} parent=11 // pred_check
          %p351 = pneg %p43
        $region14: #{docre_core.1} parent=11 // pred_check_branch
          %353 = sbr.rel (%p351) target = $region16
        $region15: #{docre_core.1} parent=11 // pred_region
          _
        $region16: #{docre_core.1} parent=11 // pred_fallthru
          _
        // Predicated region
        $region17: #{docre_core.1} parent=11 // pred_check
          %p354 = pneg %p64
        $region18: #{docre_core.1} parent=11 // pred_check_branch
          %356 = sbr.rel (%p354) target = $region20
        $region19: #{docre_core.1} parent=11 // pred_region
          _
        $region20: #{docre_core.1} parent=11 // pred_fallthru
          _
        // Predicated region
        $region21: #{docre_core.1} parent=11 // pred_check
          %p357 = pneg %p163
        $region22: #{docre_core.1} parent=11 // pred_check_branch
          %359 = sbr.rel (%p357) target = $region24
        $region23: #{docre_core.1} parent=11 // pred_region
          _
        $region24: #{docre_core.1} parent=11 // pred_fallthru
          _
        // Predicated region
        $region25: #{docre_core.1} parent=11 // pred_check
          %p360 = pneg %p184
        $region26: #{docre_core.1} parent=11 // pred_check_branch
          %362 = sbr.rel (%p360) target = $region28
        $region27: #{docre_core.1} parent=11 // pred_region
          _
        $region28: #{docre_core.1} parent=11 // pred_fallthru
          _
        // Predicated region
        $region29: #{docre_core.1} parent=11 // pred_check
          %p363 = pneg %p205
        $region30: #{docre_core.1} parent=11 // pred_check_branch
          %365 = sbr.rel (%p363) target = $region32
        $region31: #{docre_core.1} parent=11 // pred_region
          _
        $region32: #{docre_core.1} parent=11 // pred_fallthru
          _
        // Predicated region
        $region33: #{docre_core.1} parent=11 // pred_check
          %p366 = pneg %p226
        $region34: #{docre_core.1} parent=11 // pred_check_branch
          %368 = sbr.rel (%p366) target = $region36
        $region35: #{docre_core.1} parent=11 // pred_region
          _
        $region36: #{docre_core.1} parent=11 // pred_fallthru
          _
        // Predicated region
        $region37: #{docre_core.1} parent=11 // pred_check
          %p369 = pneg %p247
        $region38: #{docre_core.1} parent=11 // pred_check_branch
          %371 = sbr.rel (%p369) target = $region40
        $region39: #{docre_core.1} parent=11 // pred_region
          _
        $region40: #{docre_core.1} parent=11 // pred_fallthru
          _
        // Predicated region
        $region41: #{docre_core.1} parent=11 // pred_check
          %p372 = pneg %p268
        $region42: #{docre_core.1} parent=11 // pred_check_branch
          %374 = sbr.rel (%p372) target = $region44
        $region43: #{docre_core.1} parent=11 // pred_region
          _
        $region44: #{docre_core.1} parent=11 // pred_fallthru
          _
        // Predicated region
        $region45: #{docre_core.1} parent=11 // pred_check
          %p375 = pneg %p289
        $region46: #{docre_core.1} parent=11 // pred_check_branch
          %377 = sbr.rel (%p375) target = $region48
        $region47: #{docre_core.1} parent=11 // pred_region
          _
        $region48: #{docre_core.1} parent=11 // pred_fallthru
          _
        // Predicated region
        $region49: #{docre_core.1} parent=11 // pred_check
          %p378 = pneg %p310
        $region50: #{docre_core.1} parent=11 // pred_check_branch
          %380 = sbr.rel (%p378) target = $region52
        $region51: #{docre_core.1} parent=11 // pred_region
          _
        $region52: #{docre_core.1} parent=11 // pred_fallthru
          _
      $region12: #{docre_core.1} parent=5 // pred_fallthru
        _
      %p381 = scmp.lt.s32.totalorder %s22, 2
      // Predicated region
      $region53: #{docre_core.1} parent=5 // pred_check
        %p382 = pneg %p381
      $region54: #{docre_core.1} parent=5 // pred_check_branch
        %384 = sbr.rel (%p382) target = $region56
      $region55: #{docre_core.1} parent=5 // pred_region
        // Predicated region
        $region57: #{docre_core.1} parent=55 // pred_check
          %p385 = pneg %p84
        $region58: #{docre_core.1} parent=55 // pred_check_branch
          %387 = sbr.rel (%p385) target = $region60
        $region59: #{docre_core.1} parent=55 // pred_region
          %s388 = smul.u32 8, %s22
          %p389 = scmp.lt.s32.totalorder %s388, 15
          %s390 = scalar_select %p389, %s388, 15
          %s391 = smul.addr %s390, 4
          %s392 = scalar_lea.vmem %s2, %s391
          %s393 = smul.u32 8, %s22
        $region60: #{docre_core.1} parent=55 // pred_fallthru
          _
        // Predicated region
        $region61: #{docre_core.1} parent=55 // pred_check
          %p394 = pneg %p110
        $region62: #{docre_core.1} parent=55 // pred_check_branch
          %396 = sbr.rel (%p394) target = $region64
        $region63: #{docre_core.1} parent=55 // pred_region
          %s397 = smul.u32 8, %s22
          %p398 = scmp.lt.s32.totalorder %s397, 15
          %s399 = scalar_select %p398, %s397, 15
          %s400 = smul.addr %s399, 4
          %s401 = scalar_lea.vmem %s3, %s400
          %s402 = smul.u32 8, %s22
        $region64: #{docre_core.1} parent=55 // pred_fallthru
          _
        // Predicated region
        $region65: #{docre_core.1} parent=55 // pred_check
          %p403 = pneg %p136
        $region66: #{docre_core.1} parent=55 // pred_check_branch
          %405 = sbr.rel (%p403) target = $region68
        $region67: #{docre_core.1} parent=55 // pred_region
          %s406 = smul.u32 8, %s22
          %p407 = scmp.lt.s32.totalorder %s406, 15
          %s408 = scalar_select %p407, %s406, 15
          %s409 = smul.addr %s408, 4
          %s410 = scalar_lea.vmem %s4, %s409
          %s411 = smul.u32 8, %s22
        $region68: #{docre_core.1} parent=55 // pred_fallthru
          _
      $region56: #{docre_core.1} parent=5 // pred_fallthru
        _
      %p412 = scmp.le.s32.totalorder 1, %s22
      %p413 = scmp.lt.s32.totalorder %s22, 3
      %p414 = pnand %p412, %p413
      %p415 = pneg %p414
      // Predicated region
      $region69: #{docre_core.1} parent=5 // pred_check
        _
      $region70: #{docre_core.1} parent=5 // pred_check_branch
        %417 = sbr.rel (%p414) target = $region72
      $region71: #{docre_core.1} parent=5 // pred_region
        %s418 = ssub.s32 %s22, 1
        %p419 = pneg %p43
        %p420 = pneg %p40
        %p421 = pneg %p64
        %p422 = pneg %p61
        %s423 = smul.u32 8, %s27
        %p424 = scmp.lt.s32.totalorder %s423, 15
        %s425 = scalar_select %p424, %s423, 15
        %s426 = smul.addr %s425, 4
        %s427 = scalar_lea.vmem %s2, %s426
        %p428 = pneg %p90
        %p429 = pneg %p87
        %s430 = smul.u32 8, %s27
        %p431 = scmp.lt.s32.totalorder %s430, 15
        %s432 = scalar_select %p431, %s430, 15
        %s433 = smul.addr %s432, 4
        %s434 = scalar_lea.vmem %s3, %s433
        %p435 = pneg %p116
        %p436 = pneg %p113
        %s437 = smul.u32 8, %s27
        %p438 = scmp.lt.s32.totalorder %s437, 15
        %s439 = scalar_select %p438, %s437, 15
        %s440 = smul.addr %s439, 4
        %s441 = scalar_lea.vmem %s4, %s440
        %p442 = pneg %p142
        %p443 = pneg %p139
        %p444 = pneg %p163
        %p445 = pneg %p160
        %p446 = pneg %p184
        %p447 = pneg %p181
        %p448 = pneg %p205
        %p449 = pneg %p202
        %p450 = pneg %p226
        %p451 = pneg %p223
        %p452 = pneg %p247
        %p453 = pneg %p244
        %p454 = pneg %p268
        %p455 = pneg %p265
        %p456 = pneg %p289
        %p457 = pneg %p286
        %p458 = pneg %p310
        %p459 = pneg %p307
        %p460 = pneg %p336
        %p461 = pneg %p333
        %s462 = sand.u32 %s323, 1
        %s463 = scalar_lea.sflag [#allocation4], %s462
        %s464 = sand.u32 %s323, 1
        %s465 = smul.addr %s464, 64
        %s466 = scalar_lea.vmem [#allocation3], %s465
        %s467 = smul.u32 8, %s27
        %p468 = scmp.lt.s32.totalorder %s467, 15
        %s469 = scalar_select %p468, %s467, 15
        %s470 = smul.addr %s469, 4
        %s471 = scalar_lea.vmem %s2, %s470
        %s472 = smul.u32 8, %s27
        %s473 = smul.u32 8, %s27
        %p474 = scmp.lt.s32.totalorder %s473, 15
        %s475 = scalar_select %p474, %s473, 15
        %s476 = smul.addr %s475, 4
        %s477 = scalar_lea.vmem %s3, %s476
        %s478 = smul.u32 8, %s27
        %s479 = smul.u32 8, %s27
        %p480 = scmp.lt.s32.totalorder %s479, 15
        %s481 = scalar_select %p480, %s479, 15
        %s482 = smul.addr %s481, 4
        %s483 = scalar_lea.vmem %s4, %s482
        %s484 = smul.u32 8, %s27
        %s485 = smul.u32 8, %s27
        %v487 = vld [vmem:[%s0] sm:$0xff]
        %v488 = vld [vmem:[%s0 + $0x8] sm:$0xff]
        %v489 = vld [vmem:[%s0 + $0x10] sm:$0xff]
        %v490 = vld [vmem:[%s0 + $0x18] sm:$0xff]
        %v492 = vrot.slane %v487, 1
        %v493 = vrot.slane %v487, 2
        %v494 = vrot.slane %v487, 3
        %v495 = vrot.slane %v487, 4
        %v496 = vrot.slane %v487, 5
        %v497 = vrot.slane %v487, 6
        %v498 = vrot.slane %v487, 7
        %v499 = vperm.slane %v487, 0
        %v500 = vperm.slane %v492, 0
        %v501 = vperm.slane %v493, 0
        %v502 = vperm.slane %v494, 0
        %v503 = vperm.slane %v495, 0
        %v504 = vperm.slane %v496, 0
        %v505 = vperm.slane %v497, 0
        %v506 = vperm.slane %v498, 0
        %v515 = vmul.f32 %v499, %v487
        %v516 = vmul.f32 %v500, %v487
        %v517 = vmul.f32 %v501, %v487
        %v518 = vmul.f32 %v502, %v487
        %v519 = vmul.f32 %v503, %v487
        %v520 = vmul.f32 %v504, %v487
        %v521 = vmul.f32 %v505, %v487
        %v522 = vmul.f32 %v506, %v487
        %v524 = vrot.slane %v488, 1
        %v525 = vrot.slane %v488, 2
        %v526 = vrot.slane %v488, 3
        %v527 = vrot.slane %v488, 4
        %v528 = vrot.slane %v488, 5
        %v529 = vrot.slane %v488, 6
        %v530 = vrot.slane %v488, 7
        %v531 = vperm.slane %v488, 0
        %v532 = vperm.slane %v524, 0
        %v533 = vperm.slane %v525, 0
        %v534 = vperm.slane %v526, 0
        %v535 = vperm.slane %v527, 0
        %v536 = vperm.slane %v528, 0
        %v537 = vperm.slane %v529, 0
        %v538 = vperm.slane %v530, 0
        %v547 = vmul.f32 %v531, %v488
        %v548 = vmul.f32 %v532, %v488
        %v549 = vmul.f32 %v533, %v488
        %v550 = vmul.f32 %v534, %v488
        %v551 = vmul.f32 %v535, %v488
        %v552 = vmul.f32 %v536, %v488
        %v553 = vmul.f32 %v537, %v488
        %v554 = vmul.f32 %v538, %v488
        %v555 = vadd.f32 %v515, %v547
        %v556 = vadd.f32 %v516, %v548
        %v557 = vadd.f32 %v517, %v549
        %v558 = vadd.f32 %v518, %v550
        %v559 = vadd.f32 %v519, %v551
        %v560 = vadd.f32 %v520, %v552
        %v561 = vadd.f32 %v521, %v553
        %v562 = vadd.f32 %v522, %v554
        %v564 = vrot.slane %v489, 1
        %v565 = vrot.slane %v489, 2
        %v566 = vrot.slane %v489, 3
        %v567 = vrot.slane %v489, 4
        %v568 = vrot.slane %v489, 5
        %v569 = vrot.slane %v489, 6
        %v570 = vrot.slane %v489, 7
        %v571 = vperm.slane %v489, 0
        %v572 = vperm.slane %v564, 0
        %v573 = vperm.slane %v565, 0
        %v574 = vperm.slane %v566, 0
        %v575 = vperm.slane %v567, 0
        %v576 = vperm.slane %v568, 0
        %v577 = vperm.slane %v569, 0
        %v578 = vperm.slane %v570, 0
        %v587 = vmul.f32 %v571, %v489
        %v588 = vmul.f32 %v572, %v489
        %v589 = vmul.f32 %v573, %v489
        %v590 = vmul.f32 %v574, %v489
        %v591 = vmul.f32 %v575, %v489
        %v592 = vmul.f32 %v576, %v489
        %v593 = vmul.f32 %v577, %v489
        %v594 = vmul.f32 %v578, %v489
        %v595 = vadd.f32 %v555, %v587
        %v596 = vadd.f32 %v556, %v588
        %v597 = vadd.f32 %v557, %v589
        %v598 = vadd.f32 %v558, %v590
        %v599 = vadd.f32 %v559, %v591
        %v600 = vadd.f32 %v560, %v592
        %v601 = vadd.f32 %v561, %v593
        %v602 = vadd.f32 %v562, %v594
        %v604 = vrot.slane %v490, 1
        %v605 = vrot.slane %v490, 2
        %v606 = vrot.slane %v490, 3
        %v607 = vrot.slane %v490, 4
        %v608 = vrot.slane %v490, 5
        %v609 = vrot.slane %v490, 6
        %v610 = vrot.slane %v490, 7
        %v611 = vperm.slane %v490, 0
        %v612 = vperm.slane %v604, 0
        %v613 = vperm.slane %v605, 0
        %v614 = vperm.slane %v606, 0
        %v615 = vperm.slane %v607, 0
        %v616 = vperm.slane %v608, 0
        %v617 = vperm.slane %v609, 0
        %v618 = vperm.slane %v610, 0
        %v627 = vmul.f32 %v611, %v490
        %v628 = vmul.f32 %v612, %v490
        %v629 = vmul.f32 %v613, %v490
        %v630 = vmul.f32 %v614, %v490
        %v631 = vmul.f32 %v615, %v490
        %v632 = vmul.f32 %v616, %v490
        %v633 = vmul.f32 %v617, %v490
        %v634 = vmul.f32 %v618, %v490
        %v635 = vadd.f32 %v595, %v627
        %v636 = vadd.f32 %v596, %v628
        %v637 = vadd.f32 %v597, %v629
        %v638 = vadd.f32 %v598, %v630
        %v639 = vadd.f32 %v599, %v631
        %v640 = vadd.f32 %v600, %v632
        %v641 = vadd.f32 %v601, %v633
        %v642 = vadd.f32 %v602, %v634
        %643 = vadd.xlane.f32.xlu0 %v635
        %v644 = vpop.xlane.xlu0 %643
        %645 = vadd.xlane.f32.xlu0 %v636
        %v646 = vpop.xlane.xlu0 %645
        %647 = vadd.xlane.f32.xlu0 %v637
        %v648 = vpop.xlane.xlu0 %647
        %649 = vadd.xlane.f32.xlu0 %v638
        %v650 = vpop.xlane.xlu0 %649
        %651 = vadd.xlane.f32.xlu0 %v639
        %v652 = vpop.xlane.xlu0 %651
        %653 = vadd.xlane.f32.xlu0 %v640
        %v654 = vpop.xlane.xlu0 %653
        %655 = vadd.xlane.f32.xlu0 %v641
        %v656 = vpop.xlane.xlu0 %655
        %657 = vadd.xlane.f32.xlu0 %v642
        %v658 = vpop.xlane.xlu0 %657
        %v659 = vadd.f32 %v644, 4e-05
        %v660 = vadd.f32 %v646, 4e-05
        %v661 = vadd.f32 %v648, 4e-05
        %v662 = vadd.f32 %v650, 4e-05
        %v663 = vadd.f32 %v652, 4e-05
        %v664 = vadd.f32 %v654, 4e-05
        %v665 = vadd.f32 %v656, 4e-05
        %v666 = vadd.f32 %v658, 4e-05
        %v667 = vpack.c.bf16 %v636, %v635
        %v668 = vpack.c.bf16 %v638, %v637
        %v669 = vpack.c.bf16 %v640, %v639
        %v670 = vpack.c.bf16 %v642, %v641
        %v671 = vld [vmem:[%s1] sm:$0xf]
        %v672 = vld [vmem:[%s1 + $0x4] sm:$0xf]
        %v673 = vld [vmem:[%s1 + $0x8] sm:$0xf]
        %v674 = vld [vmem:[%s1 + $0xc] sm:$0xf]
        %v675 = vld [vmem:[%s1 + $0x10] sm:$0xf]
        %v676 = vld [vmem:[%s1 + $0x14] sm:$0xf]
        %v677 = vld [vmem:[%s1 + $0x18] sm:$0xf]
        %v678 = vld [vmem:[%s1 + $0x1c] sm:$0xf]
        %v679 = vld [vmem:[%s1 + $0x20] sm:$0xf]
        %v680 = vld [vmem:[%s1 + $0x24] sm:$0xf]
        %v681 = vld [vmem:[%s1 + $0x28] sm:$0xf]
        %v682 = vld [vmem:[%s1 + $0x2c] sm:$0xf]
        %v683 = vld [vmem:[%s1 + $0x30] sm:$0xf]
        %v684 = vld [vmem:[%s1 + $0x34] sm:$0xf]
        %v685 = vld [vmem:[%s1 + $0x38] sm:$0xf]
        %v686 = vld [vmem:[%s1 + $0x3c] sm:$0xf]
        %v703 = vunpack.c.l.b16 %v671
        %v704 = vunpack.c.l.b16 %v672
        %v705 = vunpack.c.l.b16 %v673
        %v706 = vunpack.c.l.b16 %v674
        %v707 = vunpack.c.l.b16 %v675
        %v708 = vunpack.c.l.b16 %v676
        %v709 = vunpack.c.l.b16 %v677
        %v710 = vunpack.c.l.b16 %v678
        %v711 = vunpack.c.l.b16 %v679
        %v712 = vunpack.c.l.b16 %v680
        %v713 = vunpack.c.l.b16 %v681
        %v714 = vunpack.c.l.b16 %v682
        %v715 = vunpack.c.l.b16 %v683
        %v716 = vunpack.c.l.b16 %v684
        %v717 = vunpack.c.l.b16 %v685
        %v718 = vunpack.c.l.b16 %v686
        %v719 = vpack.c.b16 %v704, %v703
        %v720 = vpack.c.b16 %v706, %v705
        %v721 = vpack.c.b16 %v708, %v707
        %v722 = vpack.c.b16 %v710, %v709
        %v723 = vpack.c.b16 %v712, %v711
        %v724 = vpack.c.b16 %v714, %v713
        %v725 = vpack.c.b16 %v716, %v715
        %v726 = vpack.c.b16 %v718, %v717
        %735 = vmatpush.bf16.msra.mxu0 %v726
        %736 = vmatpush.bf16.msra.mxu0 %v725
        %737 = vmatpush.bf16.msra.mxu0 %v724
        %738 = vmatpush.bf16.msra.mxu0 %v723
        %739 = vmatpush.bf16.msra.mxu0 %v722
        %740 = vmatpush.bf16.msra.mxu0 %v721
        %741 = vmatpush.bf16.msra.mxu0 %v720
        %742 = vmatpush.bf16.msra.mxu0 %v719
        %743 = vmatmul.bf16.gmra.mxu0 %v667
        %v744 = vpop.f32.mrf.mxu0
        %v745 = vadd.f32 0.0, %v744
        %v746 = vpop.f32.mrf.mxu0
        %v747 = vadd.f32 0.0, %v746
        %748 = vmatmul.bf16.gmra.mxu0 %v668
        %v749 = vpop.f32.mrf.mxu0
        %v750 = vadd.f32 0.0, %v749
        %v751 = vpop.f32.mrf.mxu0
        %v752 = vadd.f32 0.0, %v751
        %753 = vmatmul.bf16.gmra.mxu0 %v669
        %v754 = vpop.f32.mrf.mxu0
        %v755 = vadd.f32 0.0, %v754
        %v756 = vpop.f32.mrf.mxu0
        %v757 = vadd.f32 0.0, %v756
        %758 = vmatmul.bf16.gmra.mxu0 %v670
        %v759 = vpop.f32.mrf.mxu0
        %v760 = vadd.f32 0.0, %v759
        %v761 = vpop.f32.mrf.mxu0
        %v762 = vadd.f32 0.0, %v761
        %763 = vdwg.mxu0
        %v764 = vrcp.pop %v659
        %v765 = vmul.f32 %v659, %v764
        %v766 = vsub.f32 1.0, %v765
        %v767 = vmul.f32 %v764, %v766
        %v768 = vadd.f32 %v764, %v767
        %vm769 = vweird.f32 %v659
        %vm770 = vweird.f32 %v764
        %vm771 = vmor %vm769, %vm770
        %v772 = vsel %vm771, %v764, %v768
        %v773 = vand.u32 2147483647, %v659
        %vm774 = vcmp.eq.f32.partialorder %v773, 8.507059e+37
        %v775 = vand.u32 %v659, 2147483648
        %v776 = vor.u32 1.1754944e-38, %v775
        %v777 = vsel %vm774, %v776, %v772
        %v778 = vmul.f32 %v745, %v777
        %v779 = vrcp.pop %v660
        %v780 = vmul.f32 %v660, %v779
        %v781 = vsub.f32 1.0, %v780
        %v782 = vmul.f32 %v779, %v781
        %v783 = vadd.f32 %v779, %v782
        %vm784 = vweird.f32 %v660
        %vm785 = vweird.f32 %v779
        %vm786 = vmor %vm784, %vm785
        %v787 = vsel %vm786, %v779, %v783
        %v788 = vand.u32 2147483647, %v660
        %vm789 = vcmp.eq.f32.partialorder %v788, 8.507059e+37
        %v790 = vand.u32 %v660, 2147483648
        %v791 = vor.u32 1.1754944e-38, %v790
        %v792 = vsel %vm789, %v791, %v787
        %v793 = vmul.f32 %v747, %v792
        %v794 = vrcp.pop %v661
        %v795 = vmul.f32 %v661, %v794
        %v796 = vsub.f32 1.0, %v795
        %v797 = vmul.f32 %v794, %v796
        %v798 = vadd.f32 %v794, %v797
        %vm799 = vweird.f32 %v661
        %vm800 = vweird.f32 %v794
        %vm801 = vmor %vm799, %vm800
        %v802 = vsel %vm801, %v794, %v798
        %v803 = vand.u32 2147483647, %v661
        %vm804 = vcmp.eq.f32.partialorder %v803, 8.507059e+37
        %v805 = vand.u32 %v661, 2147483648
        %v806 = vor.u32 1.1754944e-38, %v805
        %v807 = vsel %vm804, %v806, %v802
        %v808 = vmul.f32 %v750, %v807
        %v809 = vrcp.pop %v662
        %v810 = vmul.f32 %v662, %v809
        %v811 = vsub.f32 1.0, %v810
        %v812 = vmul.f32 %v809, %v811
        %v813 = vadd.f32 %v809, %v812
        %vm814 = vweird.f32 %v662
        %vm815 = vweird.f32 %v809
        %vm816 = vmor %vm814, %vm815
        %v817 = vsel %vm816, %v809, %v813
        %v818 = vand.u32 2147483647, %v662
        %vm819 = vcmp.eq.f32.partialorder %v818, 8.507059e+37
        %v820 = vand.u32 %v662, 2147483648
        %v821 = vor.u32 1.1754944e-38, %v820
        %v822 = vsel %vm819, %v821, %v817
        %v823 = vmul.f32 %v752, %v822
        %v824 = vrcp.pop %v663
        %v825 = vmul.f32 %v663, %v824
        %v826 = vsub.f32 1.0, %v825
        %v827 = vmul.f32 %v824, %v826
        %v828 = vadd.f32 %v824, %v827
        %vm829 = vweird.f32 %v663
        %vm830 = vweird.f32 %v824
        %vm831 = vmor %vm829, %vm830
        %v832 = vsel %vm831, %v824, %v828
        %v833 = vand.u32 2147483647, %v663
        %vm834 = vcmp.eq.f32.partialorder %v833, 8.507059e+37
        %v835 = vand.u32 %v663, 2147483648
        %v836 = vor.u32 1.1754944e-38, %v835
        %v837 = vsel %vm834, %v836, %v832
        %v838 = vmul.f32 %v755, %v837
        %v839 = vrcp.pop %v664
        %v840 = vmul.f32 %v664, %v839
        %v841 = vsub.f32 1.0, %v840
        %v842 = vmul.f32 %v839, %v841
        %v843 = vadd.f32 %v839, %v842
        %vm844 = vweird.f32 %v664
        %vm845 = vweird.f32 %v839
        %vm846 = vmor %vm844, %vm845
        %v847 = vsel %vm846, %v839, %v843
        %v848 = vand.u32 2147483647, %v664
        %vm849 = vcmp.eq.f32.partialorder %v848, 8.507059e+37
        %v850 = vand.u32 %v664, 2147483648
        %v851 = vor.u32 1.1754944e-38, %v850
        %v852 = vsel %vm849, %v851, %v847
        %v853 = vmul.f32 %v757, %v852
        %v854 = vrcp.pop %v665
        %v855 = vmul.f32 %v665, %v854
        %v856 = vsub.f32 1.0, %v855
        %v857 = vmul.f32 %v854, %v856
        %v858 = vadd.f32 %v854, %v857
        %vm859 = vweird.f32 %v665
        %vm860 = vweird.f32 %v854
        %vm861 = vmor %vm859, %vm860
        %v862 = vsel %vm861, %v854, %v858
        %v863 = vand.u32 2147483647, %v665
        %vm864 = vcmp.eq.f32.partialorder %v863, 8.507059e+37
        %v865 = vand.u32 %v665, 2147483648
        %v866 = vor.u32 1.1754944e-38, %v865
        %v867 = vsel %vm864, %v866, %v862
        %v868 = vmul.f32 %v760, %v867
        %v869 = vrcp.pop %v666
        %v870 = vmul.f32 %v666, %v869
        %v871 = vsub.f32 1.0, %v870
        %v872 = vmul.f32 %v869, %v871
        %v873 = vadd.f32 %v869, %v872
        %vm874 = vweird.f32 %v666
        %vm875 = vweird.f32 %v869
        %vm876 = vmor %vm874, %vm875
        %v877 = vsel %vm876, %v869, %v873
        %v878 = vand.u32 2147483647, %v666
        %vm879 = vcmp.eq.f32.partialorder %v878, 8.507059e+37
        %v880 = vand.u32 %v666, 2147483648
        %v881 = vor.u32 1.1754944e-38, %v880
        %v882 = vsel %vm879, %v881, %v877
        %v883 = vmul.f32 %v762, %v882
        %vm884 = vcmask 523264
        %885 = vst.msk [vmem:[#allocation2] sm:$0xff] %vm884, %v778
        %886 = vst.msk [vmem:[#allocation2 + $0x8] sm:$0xff] %vm884, %v793
        %887 = vst.msk [vmem:[#allocation2 + $0x10] sm:$0xff] %vm884, %v808
        %888 = vst.msk [vmem:[#allocation2 + $0x18] sm:$0xff] %vm884, %v823
        %889 = vst.msk [vmem:[#allocation2 + $0x20] sm:$0xff] %vm884, %v838
        %890 = vst.msk [vmem:[#allocation2 + $0x28] sm:$0xff] %vm884, %v853
        %891 = vst.msk [vmem:[#allocation2 + $0x30] sm:$0xff] %vm884, %v868
        %892 = vst.msk [vmem:[#allocation2 + $0x38] sm:$0xff] %vm884, %v883
        %s893 = scalar_lea.vmem %s0, 32
        %v894 = vld [vmem:[%s893] sm:$0xff]
        %v895 = vld [vmem:[%s893 + $0x8] sm:$0xff]
        %v896 = vld [vmem:[%s893 + $0x10] sm:$0xff]
        %v897 = vld [vmem:[%s893 + $0x18] sm:$0xff]
        %v899 = vrot.slane %v894, 1
        %v900 = vrot.slane %v894, 2
        %v901 = vrot.slane %v894, 3
        %v902 = vrot.slane %v894, 4
        %v903 = vrot.slane %v894, 5
        %v904 = vrot.slane %v894, 6
        %v905 = vrot.slane %v894, 7
        %v906 = vperm.slane %v894, 0
        %v907 = vperm.slane %v899, 0
        %v908 = vperm.slane %v900, 0
        %v909 = vperm.slane %v901, 0
        %v910 = vperm.slane %v902, 0
        %v911 = vperm.slane %v903, 0
        %v912 = vperm.slane %v904, 0
        %v913 = vperm.slane %v905, 0
        %v922 = vmul.f32 %v906, %v894
        %v923 = vmul.f32 %v907, %v894
        %v924 = vmul.f32 %v908, %v894
        %v925 = vmul.f32 %v909, %v894
        %v926 = vmul.f32 %v910, %v894
        %v927 = vmul.f32 %v911, %v894
        %v928 = vmul.f32 %v912, %v894
        %v929 = vmul.f32 %v913, %v894
        %v931 = vrot.slane %v895, 1
        %v932 = vrot.slane %v895, 2
        %v933 = vrot.slane %v895, 3
        %v934 = vrot.slane %v895, 4
        %v935 = vrot.slane %v895, 5
        %v936 = vrot.slane %v895, 6
        %v937 = vrot.slane %v895, 7
        %v938 = vperm.slane %v895, 0
        %v939 = vperm.slane %v931, 0
        %v940 = vperm.slane %v932, 0
        %v941 = vperm.slane %v933, 0
        %v942 = vperm.slane %v934, 0
        %v943 = vperm.slane %v935, 0
        %v944 = vperm.slane %v936, 0
        %v945 = vperm.slane %v937, 0
        %v954 = vmul.f32 %v938, %v895
        %v955 = vmul.f32 %v939, %v895
        %v956 = vmul.f32 %v940, %v895
        %v957 = vmul.f32 %v941, %v895
        %v958 = vmul.f32 %v942, %v895
        %v959 = vmul.f32 %v943, %v895
        %v960 = vmul.f32 %v944, %v895
        %v961 = vmul.f32 %v945, %v895
        %v962 = vadd.f32 %v922, %v954
        %v963 = vadd.f32 %v923, %v955
        %v964 = vadd.f32 %v924, %v956
        %v965 = vadd.f32 %v925, %v957
        %v966 = vadd.f32 %v926, %v958
        %v967 = vadd.f32 %v927, %v959
        %v968 = vadd.f32 %v928, %v960
        %v969 = vadd.f32 %v929, %v961
        %v971 = vrot.slane %v896, 1
        %v972 = vrot.slane %v896, 2
        %v973 = vrot.slane %v896, 3
        %v974 = vrot.slane %v896, 4
        %v975 = vrot.slane %v896, 5
        %v976 = vrot.slane %v896, 6
        %v977 = vrot.slane %v896, 7
        %v978 = vperm.slane %v896, 0
        %v979 = vperm.slane %v971, 0
        %v980 = vperm.slane %v972, 0
        %v981 = vperm.slane %v973, 0
        %v982 = vperm.slane %v974, 0
        %v983 = vperm.slane %v975, 0
        %v984 = vperm.slane %v976, 0
        %v985 = vperm.slane %v977, 0
        %v994 = vmul.f32 %v978, %v896
        %v995 = vmul.f32 %v979, %v896
        %v996 = vmul.f32 %v980, %v896
        %v997 = vmul.f32 %v981, %v896
        %v998 = vmul.f32 %v982, %v896
        %v999 = vmul.f32 %v983, %v896
        %v1000 = vmul.f32 %v984, %v896
        %v1001 = vmul.f32 %v985, %v896
        %v1002 = vadd.f32 %v962, %v994
        %v1003 = vadd.f32 %v963, %v995
        %v1004 = vadd.f32 %v964, %v996
        %v1005 = vadd.f32 %v965, %v997
        %v1006 = vadd.f32 %v966, %v998
        %v1007 = vadd.f32 %v967, %v999
        %v1008 = vadd.f32 %v968, %v1000
        %v1009 = vadd.f32 %v969, %v1001
        %v1011 = vrot.slane %v897, 1
        %v1012 = vrot.slane %v897, 2
        %v1013 = vrot.slane %v897, 3
        %v1014 = vrot.slane %v897, 4
        %v1015 = vrot.slane %v897, 5
        %v1016 = vrot.slane %v897, 6
        %v1017 = vrot.slane %v897, 7
        %v1018 = vperm.slane %v897, 0
        %v1019 = vperm.slane %v1011, 0
        %v1020 = vperm.slane %v1012, 0
        %v1021 = vperm.slane %v1013, 0
        %v1022 = vperm.slane %v1014, 0
        %v1023 = vperm.slane %v1015, 0
        %v1024 = vperm.slane %v1016, 0
        %v1025 = vperm.slane %v1017, 0
        %v1034 = vmul.f32 %v1018, %v897
        %v1035 = vmul.f32 %v1019, %v897
        %v1036 = vmul.f32 %v1020, %v897
        %v1037 = vmul.f32 %v1021, %v897
        %v1038 = vmul.f32 %v1022, %v897
        %v1039 = vmul.f32 %v1023, %v897
        %v1040 = vmul.f32 %v1024, %v897
        %v1041 = vmul.f32 %v1025, %v897
        %v1042 = vadd.f32 %v1002, %v1034
        %v1043 = vadd.f32 %v1003, %v1035
        %v1044 = vadd.f32 %v1004, %v1036
        %v1045 = vadd.f32 %v1005, %v1037
        %v1046 = vadd.f32 %v1006, %v1038
        %v1047 = vadd.f32 %v1007, %v1039
        %v1048 = vadd.f32 %v1008, %v1040
        %v1049 = vadd.f32 %v1009, %v1041
        %1050 = vadd.xlane.f32.xlu0 %v1042
        %v1051 = vpop.xlane.xlu0 %1050
        %1052 = vadd.xlane.f32.xlu0 %v1043
        %v1053 = vpop.xlane.xlu0 %1052
        %1054 = vadd.xlane.f32.xlu0 %v1044
        %v1055 = vpop.xlane.xlu0 %1054
        %1056 = vadd.xlane.f32.xlu0 %v1045
        %v1057 = vpop.xlane.xlu0 %1056
        %1058 = vadd.xlane.f32.xlu0 %v1046
        %v1059 = vpop.xlane.xlu0 %1058
        %1060 = vadd.xlane.f32.xlu0 %v1047
        %v1061 = vpop.xlane.xlu0 %1060
        %1062 = vadd.xlane.f32.xlu0 %v1048
        %v1063 = vpop.xlane.xlu0 %1062
        %1064 = vadd.xlane.f32.xlu0 %v1049
        %v1065 = vpop.xlane.xlu0 %1064
        %v1066 = vadd.f32 %v1051, 4e-05
        %v1067 = vadd.f32 %v1053, 4e-05
        %v1068 = vadd.f32 %v1055, 4e-05
        %v1069 = vadd.f32 %v1057, 4e-05
        %v1070 = vadd.f32 %v1059, 4e-05
        %v1071 = vadd.f32 %v1061, 4e-05
        %v1072 = vadd.f32 %v1063, 4e-05
        %v1073 = vadd.f32 %v1065, 4e-05
        %v1074 = vpack.c.bf16 %v1043, %v1042
        %v1075 = vpack.c.bf16 %v1045, %v1044
        %v1076 = vpack.c.bf16 %v1047, %v1046
        %v1077 = vpack.c.bf16 %v1049, %v1048
        %s1078 = scalar_lea.vmem %s1, 64
        %v1079 = vld [vmem:[%s1078] sm:$0xf]
        %v1080 = vld [vmem:[%s1078 + $0x4] sm:$0xf]
        %v1081 = vld [vmem:[%s1078 + $0x8] sm:$0xf]
        %v1082 = vld [vmem:[%s1078 + $0xc] sm:$0xf]
        %v1083 = vld [vmem:[%s1078 + $0x10] sm:$0xf]
        %v1084 = vld [vmem:[%s1078 + $0x14] sm:$0xf]
        %v1085 = vld [vmem:[%s1078 + $0x18] sm:$0xf]
        %v1086 = vld [vmem:[%s1078 + $0x1c] sm:$0xf]
        %v1087 = vld [vmem:[%s1078 + $0x20] sm:$0xf]
        %v1088 = vld [vmem:[%s1078 + $0x24] sm:$0xf]
        %v1089 = vld [vmem:[%s1078 + $0x28] sm:$0xf]
        %v1090 = vld [vmem:[%s1078 + $0x2c] sm:$0xf]
        %v1091 = vld [vmem:[%s1078 + $0x30] sm:$0xf]
        %v1092 = vld [vmem:[%s1078 + $0x34] sm:$0xf]
        %v1093 = vld [vmem:[%s1078 + $0x38] sm:$0xf]
        %v1094 = vld [vmem:[%s1078 + $0x3c] sm:$0xf]
        %v1111 = vunpack.c.l.b16 %v1079
        %v1112 = vunpack.c.l.b16 %v1080
        %v1113 = vunpack.c.l.b16 %v1081
        %v1114 = vunpack.c.l.b16 %v1082
        %v1115 = vunpack.c.l.b16 %v1083
        %v1116 = vunpack.c.l.b16 %v1084
        %v1117 = vunpack.c.l.b16 %v1085
        %v1118 = vunpack.c.l.b16 %v1086
        %v1119 = vunpack.c.l.b16 %v1087
        %v1120 = vunpack.c.l.b16 %v1088
        %v1121 = vunpack.c.l.b16 %v1089
        %v1122 = vunpack.c.l.b16 %v1090
        %v1123 = vunpack.c.l.b16 %v1091
        %v1124 = vunpack.c.l.b16 %v1092
        %v1125 = vunpack.c.l.b16 %v1093
        %v1126 = vunpack.c.l.b16 %v1094
        %v1127 = vpack.c.b16 %v1112, %v1111
        %v1128 = vpack.c.b16 %v1114, %v1113
        %v1129 = vpack.c.b16 %v1116, %v1115
        %v1130 = vpack.c.b16 %v1118, %v1117
        %v1131 = vpack.c.b16 %v1120, %v1119
        %v1132 = vpack.c.b16 %v1122, %v1121
        %v1133 = vpack.c.b16 %v1124, %v1123
        %v1134 = vpack.c.b16 %v1126, %v1125
        %1143 = vmatpush.bf16.msra.mxu0 %v1134
        %1144 = vmatpush.bf16.msra.mxu0 %v1133
        %1145 = vmatpush.bf16.msra.mxu0 %v1132
        %1146 = vmatpush.bf16.msra.mxu0 %v1131
        %1147 = vmatpush.bf16.msra.mxu0 %v1130
        %1148 = vmatpush.bf16.msra.mxu0 %v1129
        %1149 = vmatpush.bf16.msra.mxu0 %v1128
        %1150 = vmatpush.bf16.msra.mxu0 %v1127
        %1151 = vmatmul.bf16.gmra.mxu0 %v1074
        %v1152 = vpop.f32.mrf.mxu0
        %v1153 = vadd.f32 0.0, %v1152
        %v1154 = vpop.f32.mrf.mxu0
        %v1155 = vadd.f32 0.0, %v1154
        %1156 = vmatmul.bf16.gmra.mxu0 %v1075
        %v1157 = vpop.f32.mrf.mxu0
        %v1158 = vadd.f32 0.0, %v1157
        %v1159 = vpop.f32.mrf.mxu0
        %v1160 = vadd.f32 0.0, %v1159
        %1161 = vmatmul.bf16.gmra.mxu0 %v1076
        %v1162 = vpop.f32.mrf.mxu0
        %v1163 = vadd.f32 0.0, %v1162
        %v1164 = vpop.f32.mrf.mxu0
        %v1165 = vadd.f32 0.0, %v1164
        %1166 = vmatmul.bf16.gmra.mxu0 %v1077
        %v1167 = vpop.f32.mrf.mxu0
        %v1168 = vadd.f32 0.0, %v1167
        %v1169 = vpop.f32.mrf.mxu0
        %v1170 = vadd.f32 0.0, %v1169
        %1171 = vdwg.mxu0
        %v1172 = vrcp.pop %v1066
        %v1173 = vmul.f32 %v1066, %v1172
        %v1174 = vsub.f32 1.0, %v1173
        %v1175 = vmul.f32 %v1172, %v1174
        %v1176 = vadd.f32 %v1172, %v1175
        %vm1177 = vweird.f32 %v1066
        %vm1178 = vweird.f32 %v1172
        %vm1179 = vmor %vm1177, %vm1178
        %v1180 = vsel %vm1179, %v1172, %v1176
        %v1181 = vand.u32 2147483647, %v1066
        %vm1182 = vcmp.eq.f32.partialorder %v1181, 8.507059e+37
        %v1183 = vand.u32 %v1066, 2147483648
        %v1184 = vor.u32 1.1754944e-38, %v1183
        %v1185 = vsel %vm1182, %v1184, %v1180
        %v1186 = vmul.f32 %v1153, %v1185
        %v1187 = vrcp.pop %v1067
        %v1188 = vmul.f32 %v1067, %v1187
        %v1189 = vsub.f32 1.0, %v1188
        %v1190 = vmul.f32 %v1187, %v1189
        %v1191 = vadd.f32 %v1187, %v1190
        %vm1192 = vweird.f32 %v1067
        %vm1193 = vweird.f32 %v1187
        %vm1194 = vmor %vm1192, %vm1193
        %v1195 = vsel %vm1194, %v1187, %v1191
        %v1196 = vand.u32 2147483647, %v1067
        %vm1197 = vcmp.eq.f32.partialorder %v1196, 8.507059e+37
        %v1198 = vand.u32 %v1067, 2147483648
        %v1199 = vor.u32 1.1754944e-38, %v1198
        %v1200 = vsel %vm1197, %v1199, %v1195
        %v1201 = vmul.f32 %v1155, %v1200
        %v1202 = vrcp.pop %v1068
        %v1203 = vmul.f32 %v1068, %v1202
        %v1204 = vsub.f32 1.0, %v1203
        %v1205 = vmul.f32 %v1202, %v1204
        %v1206 = vadd.f32 %v1202, %v1205
        %vm1207 = vweird.f32 %v1068
        %vm1208 = vweird.f32 %v1202
        %vm1209 = vmor %vm1207, %vm1208
        %v1210 = vsel %vm1209, %v1202, %v1206
        %v1211 = vand.u32 2147483647, %v1068
        %vm1212 = vcmp.eq.f32.partialorder %v1211, 8.507059e+37
        %v1213 = vand.u32 %v1068, 2147483648
        %v1214 = vor.u32 1.1754944e-38, %v1213
        %v1215 = vsel %vm1212, %v1214, %v1210
        %v1216 = vmul.f32 %v1158, %v1215
        %v1217 = vrcp.pop %v1069
        %v1218 = vmul.f32 %v1069, %v1217
        %v1219 = vsub.f32 1.0, %v1218
        %v1220 = vmul.f32 %v1217, %v1219
        %v1221 = vadd.f32 %v1217, %v1220
        %vm1222 = vweird.f32 %v1069
        %vm1223 = vweird.f32 %v1217
        %vm1224 = vmor %vm1222, %vm1223
        %v1225 = vsel %vm1224, %v1217, %v1221
        %v1226 = vand.u32 2147483647, %v1069
        %vm1227 = vcmp.eq.f32.partialorder %v1226, 8.507059e+37
        %v1228 = vand.u32 %v1069, 2147483648
        %v1229 = vor.u32 1.1754944e-38, %v1228
        %v1230 = vsel %vm1227, %v1229, %v1225
        %v1231 = vmul.f32 %v1160, %v1230
        %v1232 = vrcp.pop %v1070
        %v1233 = vmul.f32 %v1070, %v1232
        %v1234 = vsub.f32 1.0, %v1233
        %v1235 = vmul.f32 %v1232, %v1234
        %v1236 = vadd.f32 %v1232, %v1235
        %vm1237 = vweird.f32 %v1070
        %vm1238 = vweird.f32 %v1232
        %vm1239 = vmor %vm1237, %vm1238
        %v1240 = vsel %vm1239, %v1232, %v1236
        %v1241 = vand.u32 2147483647, %v1070
        %vm1242 = vcmp.eq.f32.partialorder %v1241, 8.507059e+37
        %v1243 = vand.u32 %v1070, 2147483648
        %v1244 = vor.u32 1.1754944e-38, %v1243
        %v1245 = vsel %vm1242, %v1244, %v1240
        %v1246 = vmul.f32 %v1163, %v1245
        %v1247 = vrcp.pop %v1071
        %v1248 = vmul.f32 %v1071, %v1247
        %v1249 = vsub.f32 1.0, %v1248
        %v1250 = vmul.f32 %v1247, %v1249
        %v1251 = vadd.f32 %v1247, %v1250
        %vm1252 = vweird.f32 %v1071
        %vm1253 = vweird.f32 %v1247
        %vm1254 = vmor %vm1252, %vm1253
        %v1255 = vsel %vm1254, %v1247, %v1251
        %v1256 = vand.u32 2147483647, %v1071
        %vm1257 = vcmp.eq.f32.partialorder %v1256, 8.507059e+37
        %v1258 = vand.u32 %v1071, 2147483648
        %v1259 = vor.u32 1.1754944e-38, %v1258
        %v1260 = vsel %vm1257, %v1259, %v1255
        %v1261 = vmul.f32 %v1165, %v1260
        %v1262 = vrcp.pop %v1072
        %v1263 = vmul.f32 %v1072, %v1262
        %v1264 = vsub.f32 1.0, %v1263
        %v1265 = vmul.f32 %v1262, %v1264
        %v1266 = vadd.f32 %v1262, %v1265
        %vm1267 = vweird.f32 %v1072
        %vm1268 = vweird.f32 %v1262
        %vm1269 = vmor %vm1267, %vm1268
        %v1270 = vsel %vm1269, %v1262, %v1266
        %v1271 = vand.u32 2147483647, %v1072
        %vm1272 = vcmp.eq.f32.partialorder %v1271, 8.507059e+37
        %v1273 = vand.u32 %v1072, 2147483648
        %v1274 = vor.u32 1.1754944e-38, %v1273
        %v1275 = vsel %vm1272, %v1274, %v1270
        %v1276 = vmul.f32 %v1168, %v1275
        %v1277 = vrcp.pop %v1073
        %v1278 = vmul.f32 %v1073, %v1277
        %v1279 = vsub.f32 1.0, %v1278
        %v1280 = vmul.f32 %v1277, %v1279
        %v1281 = vadd.f32 %v1277, %v1280
        %vm1282 = vweird.f32 %v1073
        %vm1283 = vweird.f32 %v1277
        %vm1284 = vmor %vm1282, %vm1283
        %v1285 = vsel %vm1284, %v1277, %v1281
        %v1286 = vand.u32 2147483647, %v1073
        %vm1287 = vcmp.eq.f32.partialorder %v1286, 8.507059e+37
        %v1288 = vand.u32 %v1073, 2147483648
        %v1289 = vor.u32 1.1754944e-38, %v1288
        %v1290 = vsel %vm1287, %v1289, %v1285
        %v1291 = vmul.f32 %v1170, %v1290
        %1292 = vst.msk [vmem:[#allocation2 + $0x40] sm:$0xff] %vm884, %v1186
        %1293 = vst.msk [vmem:[#allocation2 + $0x48] sm:$0xff] %vm884, %v1201
        %1294 = vst.msk [vmem:[#allocation2 + $0x50] sm:$0xff] %vm884, %v1216
        %1295 = vst.msk [vmem:[#allocation2 + $0x58] sm:$0xff] %vm884, %v1231
        %1296 = vst.msk [vmem:[#allocation2 + $0x60] sm:$0xff] %vm884, %v1246
        %1297 = vst.msk [vmem:[#allocation2 + $0x68] sm:$0xff] %vm884, %v1261
        %1298 = vst.msk [vmem:[#allocation2 + $0x70] sm:$0xff] %vm884, %v1276
        %1299 = vst.msk [vmem:[#allocation2 + $0x78] sm:$0xff] %vm884, %v1291
        %v1300 = vld [vmem:[%s483] sm:$0xf]
        %v1301 = vld [vmem:[%s483 + $0x4] sm:$0xf]
        %v1302 = vld [vmem:[%s483 + $0x8] sm:$0xf]
        %v1303 = vld [vmem:[%s483 + $0xc] sm:$0xf]
        %v1304 = vld [vmem:[%s483 + $0x10] sm:$0xf]
        %v1305 = vld [vmem:[%s483 + $0x14] sm:$0xf]
        %v1306 = vld [vmem:[%s483 + $0x18] sm:$0xf]
        %v1307 = vld [vmem:[%s483 + $0x1c] sm:$0xf]
        %v1308 = vld [vmem:[#allocation2] sm:$0xff]
        %v1309 = vld [vmem:[#allocation2 + $0x8] sm:$0xff]
        %v1310 = vld [vmem:[#allocation2 + $0x10] sm:$0xff]
        %v1311 = vld [vmem:[#allocation2 + $0x18] sm:$0xff]
        %v1312 = vld [vmem:[#allocation2 + $0x20] sm:$0xff]
        %v1313 = vld [vmem:[#allocation2 + $0x28] sm:$0xff]
        %v1314 = vld [vmem:[#allocation2 + $0x30] sm:$0xff]
        %v1315 = vld [vmem:[#allocation2 + $0x38] sm:$0xff]
        %v1316 = vld [vmem:[#allocation2 + $0x40] sm:$0xff]
        %v1317 = vld [vmem:[#allocation2 + $0x48] sm:$0xff]
        %v1318 = vld [vmem:[#allocation2 + $0x50] sm:$0xff]
        %v1319 = vld [vmem:[#allocation2 + $0x58] sm:$0xff]
        %v1320 = vld [vmem:[#allocation2 + $0x60] sm:$0xff]
        %v1321 = vld [vmem:[#allocation2 + $0x68] sm:$0xff]
        %v1322 = vld [vmem:[#allocation2 + $0x70] sm:$0xff]
        %v1323 = vld [vmem:[#allocation2 + $0x78] sm:$0xff]
        %v1324 = vpack.c.bf16 %v1309, %v1308
        %v1325 = vpack.c.bf16 %v1311, %v1310
        %v1326 = vpack.c.bf16 %v1313, %v1312
        %v1327 = vpack.c.bf16 %v1315, %v1314
        %v1328 = vpack.c.bf16 %v1317, %v1316
        %v1329 = vpack.c.bf16 %v1319, %v1318
        %v1330 = vpack.c.bf16 %v1321, %v1320
        %v1331 = vpack.c.bf16 %v1323, %v1322
        %v1340 = vunpack.c.l.b16 %v1300
        %v1341 = vunpack.c.l.b16 %v1301
        %v1342 = vunpack.c.l.b16 %v1302
        %v1343 = vunpack.c.l.b16 %v1303
        %v1344 = vunpack.c.l.b16 %v1304
        %v1345 = vunpack.c.l.b16 %v1305
        %v1346 = vunpack.c.l.b16 %v1306
        %v1347 = vunpack.c.l.b16 %v1307
        %v1348 = vpack.c.b16 %v1341, %v1340
        %v1349 = vpack.c.b16 %v1343, %v1342
        %v1350 = vpack.c.b16 %v1345, %v1344
        %v1351 = vpack.c.b16 %v1347, %v1346
        %1356 = vmatpush.bf16.msra.mxu0 %v1331
        %1357 = vmatpush.bf16.msra.mxu0 %v1330
        %1358 = vmatpush.bf16.msra.mxu0 %v1329
        %1359 = vmatpush.bf16.msra.mxu0 %v1328
        %1360 = vmatpush.bf16.msra.mxu0 %v1327
        %1361 = vmatpush.bf16.msra.mxu0 %v1326
        %1362 = vmatpush.bf16.msra.mxu0 %v1325
        %1363 = vmatpush.bf16.msra.mxu0 %v1324
        %1364 = vmatmul.bf16.gmra.mxu0 %v1348
        %v1365 = vpop.f32.mrf.mxu0
        %v1366 = vadd.f32 0.0, %v1365
        %v1367 = vpop.f32.mrf.mxu0
        %v1368 = vadd.f32 0.0, %v1367
        %1369 = vmatmul.bf16.gmra.mxu0 %v1349
        %v1370 = vpop.f32.mrf.mxu0
        %v1371 = vadd.f32 0.0, %v1370
        %v1372 = vpop.f32.mrf.mxu0
        %v1373 = vadd.f32 0.0, %v1372
        %1374 = vmatmul.bf16.gmra.mxu0 %v1350
        %v1375 = vpop.f32.mrf.mxu0
        %v1376 = vadd.f32 0.0, %v1375
        %v1377 = vpop.f32.mrf.mxu0
        %v1378 = vadd.f32 0.0, %v1377
        %1379 = vmatmul.bf16.gmra.mxu0 %v1351
        %v1380 = vpop.f32.mrf.mxu0
        %v1381 = vadd.f32 0.0, %v1380
        %v1382 = vpop.f32.mrf.mxu0
        %v1383 = vadd.f32 0.0, %v1382
        %1384 = vdwg.mxu0
        %v1385 = vpack.c.bf16 %v1368, %v1366
        %v1386 = vpack.c.bf16 %v1373, %v1371
        %v1387 = vpack.c.bf16 %v1378, %v1376
        %v1388 = vpack.c.bf16 %v1383, %v1381
        %v1389 = vld [vmem:[%s5] sm:$0xf]
        %v1390 = vld [vmem:[%s5 + $0x4] sm:$0xf]
        %v1391 = vld [vmem:[%s5 + $0x8] sm:$0xf]
        %v1392 = vld [vmem:[%s5 + $0xc] sm:$0xf]
        %v1393 = vld [vmem:[%s5 + $0x10] sm:$0xf]
        %v1394 = vld [vmem:[%s5 + $0x14] sm:$0xf]
        %v1395 = vld [vmem:[%s5 + $0x18] sm:$0xf]
        %v1396 = vld [vmem:[%s5 + $0x1c] sm:$0xf]
        %v1397 = vld [vmem:[%s5 + $0x20] sm:$0xf]
        %v1398 = vld [vmem:[%s5 + $0x24] sm:$0xf]
        %v1399 = vld [vmem:[%s5 + $0x28] sm:$0xf]
        %v1400 = vld [vmem:[%s5 + $0x2c] sm:$0xf]
        %v1401 = vld [vmem:[%s5 + $0x30] sm:$0xf]
        %v1402 = vld [vmem:[%s5 + $0x34] sm:$0xf]
        %v1403 = vld [vmem:[%s5 + $0x38] sm:$0xf]
        %v1404 = vld [vmem:[%s5 + $0x3c] sm:$0xf]
        %v1405 = vld [vmem:[%s6] sm:$0xf]
        %v1406 = vld [vmem:[%s6 + $0x4] sm:$0xf]
        %v1407 = vld [vmem:[%s6 + $0x8] sm:$0xf]
        %v1408 = vld [vmem:[%s6 + $0xc] sm:$0xf]
        %v1409 = vld [vmem:[%s6 + $0x10] sm:$0xf]
        %v1410 = vld [vmem:[%s6 + $0x14] sm:$0xf]
        %v1411 = vld [vmem:[%s6 + $0x18] sm:$0xf]
        %v1412 = vld [vmem:[%s6 + $0x1c] sm:$0xf]
        %v1413 = vld [vmem:[%s6 + $0x20] sm:$0xf]
        %v1414 = vld [vmem:[%s6 + $0x24] sm:$0xf]
        %v1415 = vld [vmem:[%s6 + $0x28] sm:$0xf]
        %v1416 = vld [vmem:[%s6 + $0x2c] sm:$0xf]
        %v1417 = vld [vmem:[%s6 + $0x30] sm:$0xf]
        %v1418 = vld [vmem:[%s6 + $0x34] sm:$0xf]
        %v1419 = vld [vmem:[%s6 + $0x38] sm:$0xf]
        %v1420 = vld [vmem:[%s6 + $0x3c] sm:$0xf]
        %v1421 = vld [vmem:[%s471] sm:$0xf]
        %v1422 = vld [vmem:[%s471 + $0x4] sm:$0xf]
        %v1423 = vld [vmem:[%s471 + $0x8] sm:$0xf]
        %v1424 = vld [vmem:[%s471 + $0xc] sm:$0xf]
        %v1425 = vld [vmem:[%s471 + $0x10] sm:$0xf]
        %v1426 = vld [vmem:[%s471 + $0x14] sm:$0xf]
        %v1427 = vld [vmem:[%s471 + $0x18] sm:$0xf]
        %v1428 = vld [vmem:[%s471 + $0x1c] sm:$0xf]
        %v1437 = vunpack.c.l.b16 %v1397
        %v1438 = vunpack.c.l.b16 %v1398
        %v1439 = vunpack.c.l.b16 %v1399
        %v1440 = vunpack.c.l.b16 %v1400
        %v1441 = vunpack.c.l.b16 %v1401
        %v1442 = vunpack.c.l.b16 %v1402
        %v1443 = vunpack.c.l.b16 %v1403
        %v1444 = vunpack.c.l.b16 %v1404
        %v1445 = vpack.c.b16 %v1438, %v1437
        %v1446 = vpack.c.b16 %v1440, %v1439
        %v1447 = vpack.c.b16 %v1442, %v1441
        %v1448 = vpack.c.b16 %v1444, %v1443
        %v1454 = vsel %vm884, %v1385, 0
        %v1457 = vsel %vm884, %v1386, 0
        %v1460 = vsel %vm884, %v1387, 0
        %v1463 = vsel %vm884, %v1388, 0
        %1465 = vmatpush.bf16.msra.mxu0 0
        %1466 = vmatpush.bf16.msra.mxu0 0
        %1467 = vmatpush.bf16.msra.mxu0 0
        %1468 = vmatpush.bf16.msra.mxu0 0
        %1469 = vmatpush.bf16.msra.mxu0 %v1448
        %1470 = vmatpush.bf16.msra.mxu0 %v1447
        %1471 = vmatpush.bf16.msra.mxu0 %v1446
        %1472 = vmatpush.bf16.msra.mxu0 %v1445
        %1473 = vmatmul.bf16.gmra.mxu0 %v1454
        %v1474 = vpop.f32.mrf.mxu0
        %v1475 = vadd.f32 0.0, %v1474
        %v1476 = vpop.f32.mrf.mxu0
        %v1477 = vadd.f32 0.0, %v1476
        %1478 = vmatmul.bf16.gmra.mxu0 %v1457
        %v1479 = vpop.f32.mrf.mxu0
        %v1480 = vadd.f32 0.0, %v1479
        %v1481 = vpop.f32.mrf.mxu0
        %v1482 = vadd.f32 0.0, %v1481
        %1483 = vmatmul.bf16.gmra.mxu0 %v1460
        %v1484 = vpop.f32.mrf.mxu0
        %v1485 = vadd.f32 0.0, %v1484
        %v1486 = vpop.f32.mrf.mxu0
        %v1487 = vadd.f32 0.0, %v1486
        %1488 = vmatmul.bf16.gmra.mxu0 %v1463
        %v1489 = vpop.f32.mrf.mxu0
        %v1490 = vadd.f32 0.0, %v1489
        %v1491 = vpop.f32.mrf.mxu0
        %v1492 = vadd.f32 0.0, %v1491
        %1493 = vdwg.mxu0
        %v1502 = vunpack.c.l.b16 %v1421
        %v1503 = vunpack.c.l.b16 %v1422
        %v1504 = vunpack.c.l.b16 %v1423
        %v1505 = vunpack.c.l.b16 %v1424
        %v1506 = vunpack.c.l.b16 %v1425
        %v1507 = vunpack.c.l.b16 %v1426
        %v1508 = vunpack.c.l.b16 %v1427
        %v1509 = vunpack.c.l.b16 %v1428
        %v1510 = vpack.c.b16 %v1503, %v1502
        %v1511 = vpack.c.b16 %v1505, %v1504
        %v1512 = vpack.c.b16 %v1507, %v1506
        %v1513 = vpack.c.b16 %v1509, %v1508
        %v1522 = vunpack.c.l.b16 %v1389
        %v1523 = vunpack.c.l.b16 %v1390
        %v1524 = vunpack.c.l.b16 %v1391
        %v1525 = vunpack.c.l.b16 %v1392
        %v1526 = vunpack.c.l.b16 %v1393
        %v1527 = vunpack.c.l.b16 %v1394
        %v1528 = vunpack.c.l.b16 %v1395
        %v1529 = vunpack.c.l.b16 %v1396
        %v1530 = vpack.c.b16 %v1523, %v1522
        %v1531 = vpack.c.b16 %v1525, %v1524
        %v1532 = vpack.c.b16 %v1527, %v1526
        %v1533 = vpack.c.b16 %v1529, %v1528
        %v1539 = vsel %vm884, %v1510, 0
        %v1542 = vsel %vm884, %v1511, 0
        %v1545 = vsel %vm884, %v1512, 0
        %v1548 = vsel %vm884, %v1513, 0
        %1550 = vmatpush.bf16.msra.mxu0 0
        %1551 = vmatpush.bf16.msra.mxu0 0
        %1552 = vmatpush.bf16.msra.mxu0 0
        %1553 = vmatpush.bf16.msra.mxu0 0
        %1554 = vmatpush.bf16.msra.mxu0 %v1533
        %1555 = vmatpush.bf16.msra.mxu0 %v1532
        %1556 = vmatpush.bf16.msra.mxu0 %v1531
        %1557 = vmatpush.bf16.msra.mxu0 %v1530
        %1558 = vmatmul.bf16.gmra.mxu0 %v1539
        %v1559 = vpop.f32.mrf.mxu0
        %v1560 = vadd.f32 %v1475, %v1559
        %v1561 = vpop.f32.mrf.mxu0
        %v1562 = vadd.f32 %v1477, %v1561
        %1563 = vmatmul.bf16.gmra.mxu0 %v1542
        %v1564 = vpop.f32.mrf.mxu0
        %v1565 = vadd.f32 %v1480, %v1564
        %v1566 = vpop.f32.mrf.mxu0
        %v1567 = vadd.f32 %v1482, %v1566
        %1568 = vmatmul.bf16.gmra.mxu0 %v1545
        %v1569 = vpop.f32.mrf.mxu0
        %v1570 = vadd.f32 %v1485, %v1569
        %v1571 = vpop.f32.mrf.mxu0
        %v1572 = vadd.f32 %v1487, %v1571
        %1573 = vmatmul.bf16.gmra.mxu0 %v1548
        %v1574 = vpop.f32.mrf.mxu0
        %v1575 = vadd.f32 %v1490, %v1574
        %v1576 = vpop.f32.mrf.mxu0
        %v1577 = vadd.f32 %v1492, %v1576
        %1578 = vdwg.mxu0
        %v1579 = vld [vmem:[%s7] sm:$0x1]
        %v1581 = vperm.slane %v1579, 0
        %v1583 = vadd.f32 %v1560, %v1581
        %v1584 = vadd.f32 %v1562, %v1581
        %v1585 = vadd.f32 %v1565, %v1581
        %v1586 = vadd.f32 %v1567, %v1581
        %v1587 = vadd.f32 %v1570, %v1581
        %v1588 = vadd.f32 %v1572, %v1581
        %v1589 = vadd.f32 %v1575, %v1581
        %v1590 = vadd.f32 %v1577, %v1581
        %v1591 = vld [vmem:[%s477] sm:$0xf]
        %v1592 = vld [vmem:[%s477 + $0x4] sm:$0xf]
        %v1593 = vld [vmem:[%s477 + $0x8] sm:$0xf]
        %v1594 = vld [vmem:[%s477 + $0xc] sm:$0xf]
        %v1595 = vld [vmem:[%s477 + $0x10] sm:$0xf]
        %v1596 = vld [vmem:[%s477 + $0x14] sm:$0xf]
        %v1597 = vld [vmem:[%s477 + $0x18] sm:$0xf]
        %v1598 = vld [vmem:[%s477 + $0x1c] sm:$0xf]
        %v1607 = vunpack.c.l.b16 %v1413
        %v1608 = vunpack.c.l.b16 %v1414
        %v1609 = vunpack.c.l.b16 %v1415
        %v1610 = vunpack.c.l.b16 %v1416
        %v1611 = vunpack.c.l.b16 %v1417
        %v1612 = vunpack.c.l.b16 %v1418
        %v1613 = vunpack.c.l.b16 %v1419
        %v1614 = vunpack.c.l.b16 %v1420
        %v1615 = vpack.c.b16 %v1608, %v1607
        %v1616 = vpack.c.b16 %v1610, %v1609
        %v1617 = vpack.c.b16 %v1612, %v1611
        %v1618 = vpack.c.b16 %v1614, %v1613
        %1623 = vmatpush.bf16.msra.mxu0 0
        %1624 = vmatpush.bf16.msra.mxu0 0
        %1625 = vmatpush.bf16.msra.mxu0 0
        %1626 = vmatpush.bf16.msra.mxu0 0
        %1627 = vmatpush.bf16.msra.mxu0 %v1618
        %1628 = vmatpush.bf16.msra.mxu0 %v1617
        %1629 = vmatpush.bf16.msra.mxu0 %v1616
        %1630 = vmatpush.bf16.msra.mxu0 %v1615
        %1631 = vmatmul.bf16.gmra.mxu0 %v1454
        %v1632 = vpop.f32.mrf.mxu0
        %v1633 = vadd.f32 0.0, %v1632
        %v1634 = vpop.f32.mrf.mxu0
        %v1635 = vadd.f32 0.0, %v1634
        %1636 = vmatmul.bf16.gmra.mxu0 %v1457
        %v1637 = vpop.f32.mrf.mxu0
        %v1638 = vadd.f32 0.0, %v1637
        %v1639 = vpop.f32.mrf.mxu0
        %v1640 = vadd.f32 0.0, %v1639
        %1641 = vmatmul.bf16.gmra.mxu0 %v1460
        %v1642 = vpop.f32.mrf.mxu0
        %v1643 = vadd.f32 0.0, %v1642
        %v1644 = vpop.f32.mrf.mxu0
        %v1645 = vadd.f32 0.0, %v1644
        %1646 = vmatmul.bf16.gmra.mxu0 %v1463
        %v1647 = vpop.f32.mrf.mxu0
        %v1648 = vadd.f32 0.0, %v1647
        %v1649 = vpop.f32.mrf.mxu0
        %v1650 = vadd.f32 0.0, %v1649
        %1651 = vdwg.mxu0
        %v1660 = vunpack.c.l.b16 %v1591
        %v1661 = vunpack.c.l.b16 %v1592
        %v1662 = vunpack.c.l.b16 %v1593
        %v1663 = vunpack.c.l.b16 %v1594
        %v1664 = vunpack.c.l.b16 %v1595
        %v1665 = vunpack.c.l.b16 %v1596
        %v1666 = vunpack.c.l.b16 %v1597
        %v1667 = vunpack.c.l.b16 %v1598
        %v1668 = vpack.c.b16 %v1661, %v1660
        %v1669 = vpack.c.b16 %v1663, %v1662
        %v1670 = vpack.c.b16 %v1665, %v1664
        %v1671 = vpack.c.b16 %v1667, %v1666
        %v1680 = vunpack.c.l.b16 %v1405
        %v1681 = vunpack.c.l.b16 %v1406
        %v1682 = vunpack.c.l.b16 %v1407
        %v1683 = vunpack.c.l.b16 %v1408
        %v1684 = vunpack.c.l.b16 %v1409
        %v1685 = vunpack.c.l.b16 %v1410
        %v1686 = vunpack.c.l.b16 %v1411
        %v1687 = vunpack.c.l.b16 %v1412
        %v1688 = vpack.c.b16 %v1681, %v1680
        %v1689 = vpack.c.b16 %v1683, %v1682
        %v1690 = vpack.c.b16 %v1685, %v1684
        %v1691 = vpack.c.b16 %v1687, %v1686
        %v1697 = vsel %vm884, %v1668, 0
        %v1700 = vsel %vm884, %v1669, 0
        %v1703 = vsel %vm884, %v1670, 0
        %v1706 = vsel %vm884, %v1671, 0
        %1708 = vmatpush.bf16.msra.mxu0 0
        %1709 = vmatpush.bf16.msra.mxu0 0
        %1710 = vmatpush.bf16.msra.mxu0 0
        %1711 = vmatpush.bf16.msra.mxu0 0
        %1712 = vmatpush.bf16.msra.mxu0 %v1691
        %1713 = vmatpush.bf16.msra.mxu0 %v1690
        %1714 = vmatpush.bf16.msra.mxu0 %v1689
        %1715 = vmatpush.bf16.msra.mxu0 %v1688
        %1716 = vmatmul.bf16.gmra.mxu0 %v1697
        %v1717 = vpop.f32.mrf.mxu0
        %v1718 = vadd.f32 %v1633, %v1717
        %v1719 = vpop.f32.mrf.mxu0
        %v1720 = vadd.f32 %v1635, %v1719
        %1721 = vmatmul.bf16.gmra.mxu0 %v1700
        %v1722 = vpop.f32.mrf.mxu0
        %v1723 = vadd.f32 %v1638, %v1722
        %v1724 = vpop.f32.mrf.mxu0
        %v1725 = vadd.f32 %v1640, %v1724
        %1726 = vmatmul.bf16.gmra.mxu0 %v1703
        %v1727 = vpop.f32.mrf.mxu0
        %v1728 = vadd.f32 %v1643, %v1727
        %v1729 = vpop.f32.mrf.mxu0
        %v1730 = vadd.f32 %v1645, %v1729
        %1731 = vmatmul.bf16.gmra.mxu0 %v1706
        %v1732 = vpop.f32.mrf.mxu0
        %v1733 = vadd.f32 %v1648, %v1732
        %v1734 = vpop.f32.mrf.mxu0
        %v1735 = vadd.f32 %v1650, %v1734
        %1736 = vdwg.mxu0
        %v1737 = vld [vmem:[%s8] sm:$0x1]
        %v1739 = vperm.slane %v1737, 0
        %v1741 = vadd.f32 %v1718, %v1739
        %v1742 = vadd.f32 %v1720, %v1739
        %v1743 = vadd.f32 %v1723, %v1739
        %v1744 = vadd.f32 %v1725, %v1739
        %v1745 = vadd.f32 %v1728, %v1739
        %v1746 = vadd.f32 %v1730, %v1739
        %v1747 = vadd.f32 %v1733, %v1739
        %v1748 = vadd.f32 %v1735, %v1739
        %v1749 = vtanh.pop %v1583
        %v1750 = vtanh.pop %v1584
        %v1751 = vtanh.pop %v1585
        %v1752 = vtanh.pop %v1586
        %v1753 = vtanh.pop %v1587
        %v1754 = vtanh.pop %v1588
        %v1755 = vtanh.pop %v1589
        %v1756 = vtanh.pop %v1590
        %v1757 = vpack.c.bf16 %v1750, %v1749
        %v1758 = vpack.c.bf16 %v1752, %v1751
        %v1759 = vpack.c.bf16 %v1754, %v1753
        %v1760 = vpack.c.bf16 %v1756, %v1755
        %v1761 = vtanh.pop %v1741
        %v1762 = vtanh.pop %v1742
        %v1763 = vtanh.pop %v1743
        %v1764 = vtanh.pop %v1744
        %v1765 = vtanh.pop %v1745
        %v1766 = vtanh.pop %v1746
        %v1767 = vtanh.pop %v1747
        %v1768 = vtanh.pop %v1748
        %v1769 = vpack.c.bf16 %v1762, %v1761
        %v1770 = vpack.c.bf16 %v1764, %v1763
        %v1771 = vpack.c.bf16 %v1766, %v1765
        %v1772 = vpack.c.bf16 %v1768, %v1767
        %v1773 = vld [vmem:[%s9] sm:$0xff]
        %v1774 = vld [vmem:[%s9 + $0x8] sm:$0xff]
        %v1775 = vld [vmem:[%s9 + $0x10] sm:$0xff]
        %v1776 = vld [vmem:[%s9 + $0x18] sm:$0xff]
        %v1777 = vld [vmem:[%s9 + $0x20] sm:$0xff]
        %v1778 = vld [vmem:[%s9 + $0x28] sm:$0xff]
        %v1779 = vld [vmem:[%s9 + $0x30] sm:$0xff]
        %v1780 = vld [vmem:[%s9 + $0x38] sm:$0xff]
        %v1781 = vld [vmem:[%s9 + $0x40] sm:$0xff]
        %v1782 = vld [vmem:[%s9 + $0x48] sm:$0xff]
        %v1783 = vld [vmem:[%s9 + $0x50] sm:$0xff]
        %v1784 = vld [vmem:[%s9 + $0x58] sm:$0xff]
        %v1785 = vld [vmem:[%s9 + $0x60] sm:$0xff]
        %v1786 = vld [vmem:[%s9 + $0x68] sm:$0xff]
        %v1787 = vld [vmem:[%s9 + $0x70] sm:$0xff]
        %v1788 = vld [vmem:[%s9 + $0x78] sm:$0xff]
        %v1789 = vld [vmem:[%s9 + $0x80] sm:$0xff]
        %v1790 = vld [vmem:[%s9 + $0x88] sm:$0xff]
        %v1791 = vld [vmem:[%s9 + $0x90] sm:$0xff]
        %v1792 = vld [vmem:[%s9 + $0x98] sm:$0xff]
        %v1793 = vld [vmem:[%s9 + $0xa0] sm:$0xff]
        %v1794 = vld [vmem:[%s9 + $0xa8] sm:$0xff]
        %v1795 = vld [vmem:[%s9 + $0xb0] sm:$0xff]
        %v1796 = vld [vmem:[%s9 + $0xb8] sm:$0xff]
        %v1797 = vld [vmem:[%s9 + $0xc0] sm:$0xff]
        %v1798 = vld [vmem:[%s9 + $0xc8] sm:$0xff]
        %v1799 = vld [vmem:[%s9 + $0xd0] sm:$0xff]
        %v1800 = vld [vmem:[%s9 + $0xd8] sm:$0xff]
        %v1801 = vld [vmem:[%s9 + $0xe0] sm:$0xff]
        %v1802 = vld [vmem:[%s9 + $0xe8] sm:$0xff]
        %v1803 = vld [vmem:[%s9 + $0xf0] sm:$0xff]
        %v1804 = vld [vmem:[%s9 + $0xf8] sm:$0xff]
        %v1837 = vunpack.c.l.b16 %v1773
        %v1838 = vunpack.c.h.b16 %v1773
        %v1839 = vunpack.c.l.b16 %v1774
        %v1840 = vunpack.c.h.b16 %v1774
        %v1841 = vunpack.c.l.b16 %v1775
        %v1842 = vunpack.c.h.b16 %v1775
        %v1843 = vunpack.c.l.b16 %v1776
        %v1844 = vunpack.c.h.b16 %v1776
        %v1845 = vunpack.c.l.b16 %v1777
        %v1846 = vunpack.c.h.b16 %v1777
        %v1847 = vunpack.c.l.b16 %v1778
        %v1848 = vunpack.c.h.b16 %v1778
        %v1849 = vunpack.c.l.b16 %v1779
        %v1850 = vunpack.c.h.b16 %v1779
        %v1851 = vunpack.c.l.b16 %v1780
        %v1852 = vunpack.c.h.b16 %v1780
        %v1853 = vunpack.c.l.b16 %v1781
        %v1854 = vunpack.c.h.b16 %v1781
        %v1855 = vunpack.c.l.b16 %v1782
        %v1856 = vunpack.c.h.b16 %v1782
        %v1857 = vunpack.c.l.b16 %v1783
        %v1858 = vunpack.c.h.b16 %v1783
        %v1859 = vunpack.c.l.b16 %v1784
        %v1860 = vunpack.c.h.b16 %v1784
        %v1861 = vunpack.c.l.b16 %v1785
        %v1862 = vunpack.c.h.b16 %v1785
        %v1863 = vunpack.c.l.b16 %v1786
        %v1864 = vunpack.c.h.b16 %v1786
        %v1865 = vunpack.c.l.b16 %v1787
        %v1866 = vunpack.c.h.b16 %v1787
        %v1867 = vunpack.c.l.b16 %v1788
        %v1868 = vunpack.c.h.b16 %v1788
        %v1869 = vunpack.c.l.b16 %v1789
        %v1870 = vunpack.c.h.b16 %v1789
        %v1871 = vunpack.c.l.b16 %v1790
        %v1872 = vunpack.c.h.b16 %v1790
        %v1873 = vunpack.c.l.b16 %v1791
        %v1874 = vunpack.c.h.b16 %v1791
        %v1875 = vunpack.c.l.b16 %v1792
        %v1876 = vunpack.c.h.b16 %v1792
        %v1877 = vunpack.c.l.b16 %v1793
        %v1878 = vunpack.c.h.b16 %v1793
        %v1879 = vunpack.c.l.b16 %v1794
        %v1880 = vunpack.c.h.b16 %v1794
        %v1881 = vunpack.c.l.b16 %v1795
        %v1882 = vunpack.c.h.b16 %v1795
        %v1883 = vunpack.c.l.b16 %v1796
        %v1884 = vunpack.c.h.b16 %v1796
        %v1885 = vunpack.c.l.b16 %v1797
        %v1886 = vunpack.c.h.b16 %v1797
        %v1887 = vunpack.c.l.b16 %v1798
        %v1888 = vunpack.c.h.b16 %v1798
        %v1889 = vunpack.c.l.b16 %v1799
        %v1890 = vunpack.c.h.b16 %v1799
        %v1891 = vunpack.c.l.b16 %v1800
        %v1892 = vunpack.c.h.b16 %v1800
        %v1893 = vunpack.c.l.b16 %v1801
        %v1894 = vunpack.c.h.b16 %v1801
        %v1895 = vunpack.c.l.b16 %v1802
        %v1896 = vunpack.c.h.b16 %v1802
        %v1897 = vunpack.c.l.b16 %v1803
        %v1898 = vunpack.c.h.b16 %v1803
        %v1899 = vunpack.c.l.b16 %v1804
        %v1900 = vunpack.c.h.b16 %v1804
        %v1901 = vpack.c.b16 %v1845, %v1837
        %v1902 = vpack.c.b16 %v1846, %v1838
        %v1903 = vpack.c.b16 %v1847, %v1839
        %v1904 = vpack.c.b16 %v1848, %v1840
        %v1905 = vpack.c.b16 %v1849, %v1841
        %v1906 = vpack.c.b16 %v1850, %v1842
        %v1907 = vpack.c.b16 %v1851, %v1843
        %v1908 = vpack.c.b16 %v1852, %v1844
        %v1909 = vpack.c.b16 %v1861, %v1853
        %v1910 = vpack.c.b16 %v1862, %v1854
        %v1911 = vpack.c.b16 %v1863, %v1855
        %v1912 = vpack.c.b16 %v1864, %v1856
        %v1913 = vpack.c.b16 %v1865, %v1857
        %v1914 = vpack.c.b16 %v1866, %v1858
        %v1915 = vpack.c.b16 %v1867, %v1859
        %v1916 = vpack.c.b16 %v1868, %v1860
        %v1917 = vpack.c.b16 %v1877, %v1869
        %v1918 = vpack.c.b16 %v1878, %v1870
        %v1919 = vpack.c.b16 %v1879, %v1871
        %v1920 = vpack.c.b16 %v1880, %v1872
        %v1921 = vpack.c.b16 %v1881, %v1873
        %v1922 = vpack.c.b16 %v1882, %v1874
        %v1923 = vpack.c.b16 %v1883, %v1875
        %v1924 = vpack.c.b16 %v1884, %v1876
        %v1925 = vpack.c.b16 %v1893, %v1885
        %v1926 = vpack.c.b16 %v1894, %v1886
        %v1927 = vpack.c.b16 %v1895, %v1887
        %v1928 = vpack.c.b16 %v1896, %v1888
        %v1929 = vpack.c.b16 %v1897, %v1889
        %v1930 = vpack.c.b16 %v1898, %v1890
        %v1931 = vpack.c.b16 %v1899, %v1891
        %v1932 = vpack.c.b16 %v1900, %v1892
        %v1966 = vsel %vm884, %v1757, 0
        %v1969 = vsel %vm884, %v1758, 0
        %v1972 = vsel %vm884, %v1759, 0
        %v1975 = vsel %vm884, %v1760, 0
        %1977 = vmatpush.bf16.msra.mxu0 0
        %1978 = vmatpush.bf16.msra.mxu0 0
        %1979 = vmatpush.bf16.msra.mxu0 0
        %1980 = vmatpush.bf16.msra.mxu0 0
        %1981 = vmatpush.bf16.msra.mxu0 %v1925
        %1982 = vmatpush.bf16.msra.mxu0 %v1917
        %1983 = vmatpush.bf16.msra.mxu0 %v1909
        %1984 = vmatpush.bf16.msra.mxu0 %v1901
        %1985 = vmatmul.bf16.gmra.mxu0 %v1966
        %v1986 = vpop.f32.mrf.mxu0
        %v1987 = vadd.f32 0.0, %v1986
        %v1988 = vpop.f32.mrf.mxu0
        %v1989 = vadd.f32 0.0, %v1988
        %1990 = vmatmul.bf16.gmra.mxu0 %v1969
        %v1991 = vpop.f32.mrf.mxu0
        %v1992 = vadd.f32 0.0, %v1991
        %v1993 = vpop.f32.mrf.mxu0
        %v1994 = vadd.f32 0.0, %v1993
        %1995 = vmatmul.bf16.gmra.mxu0 %v1972
        %v1996 = vpop.f32.mrf.mxu0
        %v1997 = vadd.f32 0.0, %v1996
        %v1998 = vpop.f32.mrf.mxu0
        %v1999 = vadd.f32 0.0, %v1998
        %2000 = vmatmul.bf16.gmra.mxu0 %v1975
        %v2001 = vpop.f32.mrf.mxu0
        %v2002 = vadd.f32 0.0, %v2001
        %v2003 = vpop.f32.mrf.mxu0
        %v2004 = vadd.f32 0.0, %v2003
        %2005 = vdwg.mxu0
        %2006 = vmatpush.bf16.msra.mxu0 0
        %2007 = vmatpush.bf16.msra.mxu0 0
        %2008 = vmatpush.bf16.msra.mxu0 0
        %2009 = vmatpush.bf16.msra.mxu0 0
        %2010 = vmatpush.bf16.msra.mxu0 %v1926
        %2011 = vmatpush.bf16.msra.mxu0 %v1918
        %2012 = vmatpush.bf16.msra.mxu0 %v1910
        %2013 = vmatpush.bf16.msra.mxu0 %v1902
        %2014 = vmatmul.bf16.gmra.mxu0 %v1966
        %v2015 = vpop.f32.mrf.mxu0
        %v2016 = vadd.f32 0.0, %v2015
        %v2017 = vpop.f32.mrf.mxu0
        %v2018 = vadd.f32 0.0, %v2017
        %2019 = vmatmul.bf16.gmra.mxu0 %v1969
        %v2020 = vpop.f32.mrf.mxu0
        %v2021 = vadd.f32 0.0, %v2020
        %v2022 = vpop.f32.mrf.mxu0
        %v2023 = vadd.f32 0.0, %v2022
        %2024 = vmatmul.bf16.gmra.mxu0 %v1972
        %v2025 = vpop.f32.mrf.mxu0
        %v2026 = vadd.f32 0.0, %v2025
        %v2027 = vpop.f32.mrf.mxu0
        %v2028 = vadd.f32 0.0, %v2027
        %2029 = vmatmul.bf16.gmra.mxu0 %v1975
        %v2030 = vpop.f32.mrf.mxu0
        %v2031 = vadd.f32 0.0, %v2030
        %v2032 = vpop.f32.mrf.mxu0
        %v2033 = vadd.f32 0.0, %v2032
        %2034 = vdwg.mxu0
        %2035 = vmatpush.bf16.msra.mxu0 0
        %2036 = vmatpush.bf16.msra.mxu0 0
        %2037 = vmatpush.bf16.msra.mxu0 0
        %2038 = vmatpush.bf16.msra.mxu0 0
        %2039 = vmatpush.bf16.msra.mxu0 %v1927
        %2040 = vmatpush.bf16.msra.mxu0 %v1919
        %2041 = vmatpush.bf16.msra.mxu0 %v1911
        %2042 = vmatpush.bf16.msra.mxu0 %v1903
        %2043 = vmatmul.bf16.gmra.mxu0 %v1966
        %v2044 = vpop.f32.mrf.mxu0
        %v2045 = vadd.f32 0.0, %v2044
        %v2046 = vpop.f32.mrf.mxu0
        %v2047 = vadd.f32 0.0, %v2046
        %2048 = vmatmul.bf16.gmra.mxu0 %v1969
        %v2049 = vpop.f32.mrf.mxu0
        %v2050 = vadd.f32 0.0, %v2049
        %v2051 = vpop.f32.mrf.mxu0
        %v2052 = vadd.f32 0.0, %v2051
        %2053 = vmatmul.bf16.gmra.mxu0 %v1972
        %v2054 = vpop.f32.mrf.mxu0
        %v2055 = vadd.f32 0.0, %v2054
        %v2056 = vpop.f32.mrf.mxu0
        %v2057 = vadd.f32 0.0, %v2056
        %2058 = vmatmul.bf16.gmra.mxu0 %v1975
        %v2059 = vpop.f32.mrf.mxu0
        %v2060 = vadd.f32 0.0, %v2059
        %v2061 = vpop.f32.mrf.mxu0
        %v2062 = vadd.f32 0.0, %v2061
        %2063 = vdwg.mxu0
        %2064 = vmatpush.bf16.msra.mxu0 0
        %2065 = vmatpush.bf16.msra.mxu0 0
        %2066 = vmatpush.bf16.msra.mxu0 0
        %2067 = vmatpush.bf16.msra.mxu0 0
        %2068 = vmatpush.bf16.msra.mxu0 %v1928
        %2069 = vmatpush.bf16.msra.mxu0 %v1920
        %2070 = vmatpush.bf16.msra.mxu0 %v1912
        %2071 = vmatpush.bf16.msra.mxu0 %v1904
        %2072 = vmatmul.bf16.gmra.mxu0 %v1966
        %v2073 = vpop.f32.mrf.mxu0
        %v2074 = vadd.f32 0.0, %v2073
        %v2075 = vpop.f32.mrf.mxu0
        %v2076 = vadd.f32 0.0, %v2075
        %2077 = vmatmul.bf16.gmra.mxu0 %v1969
        %v2078 = vpop.f32.mrf.mxu0
        %v2079 = vadd.f32 0.0, %v2078
        %v2080 = vpop.f32.mrf.mxu0
        %v2081 = vadd.f32 0.0, %v2080
        %2082 = vmatmul.bf16.gmra.mxu0 %v1972
        %v2083 = vpop.f32.mrf.mxu0
        %v2084 = vadd.f32 0.0, %v2083
        %v2085 = vpop.f32.mrf.mxu0
        %v2086 = vadd.f32 0.0, %v2085
        %2087 = vmatmul.bf16.gmra.mxu0 %v1975
        %v2088 = vpop.f32.mrf.mxu0
        %v2089 = vadd.f32 0.0, %v2088
        %v2090 = vpop.f32.mrf.mxu0
        %v2091 = vadd.f32 0.0, %v2090
        %2092 = vdwg.mxu0
        %2093 = vmatpush.bf16.msra.mxu0 0
        %2094 = vmatpush.bf16.msra.mxu0 0
        %2095 = vmatpush.bf16.msra.mxu0 0
        %2096 = vmatpush.bf16.msra.mxu0 0
        %2097 = vmatpush.bf16.msra.mxu0 %v1929
        %2098 = vmatpush.bf16.msra.mxu0 %v1921
        %2099 = vmatpush.bf16.msra.mxu0 %v1913
        %2100 = vmatpush.bf16.msra.mxu0 %v1905
        %2101 = vmatmul.bf16.gmra.mxu0 %v1966
        %v2102 = vpop.f32.mrf.mxu0
        %v2103 = vadd.f32 0.0, %v2102
        %v2104 = vpop.f32.mrf.mxu0
        %v2105 = vadd.f32 0.0, %v2104
        %2106 = vmatmul.bf16.gmra.mxu0 %v1969
        %v2107 = vpop.f32.mrf.mxu0
        %v2108 = vadd.f32 0.0, %v2107
        %v2109 = vpop.f32.mrf.mxu0
        %v2110 = vadd.f32 0.0, %v2109
        %2111 = vmatmul.bf16.gmra.mxu0 %v1972
        %v2112 = vpop.f32.mrf.mxu0
        %v2113 = vadd.f32 0.0, %v2112
        %v2114 = vpop.f32.mrf.mxu0
        %v2115 = vadd.f32 0.0, %v2114
        %2116 = vmatmul.bf16.gmra.mxu0 %v1975
        %v2117 = vpop.f32.mrf.mxu0
        %v2118 = vadd.f32 0.0, %v2117
        %v2119 = vpop.f32.mrf.mxu0
        %v2120 = vadd.f32 0.0, %v2119
        %2121 = vdwg.mxu0
        %2122 = vmatpush.bf16.msra.mxu0 0
        %2123 = vmatpush.bf16.msra.mxu0 0
        %2124 = vmatpush.bf16.msra.mxu0 0
        %2125 = vmatpush.bf16.msra.mxu0 0
        %2126 = vmatpush.bf16.msra.mxu0 %v1930
        %2127 = vmatpush.bf16.msra.mxu0 %v1922
        %2128 = vmatpush.bf16.msra.mxu0 %v1914
        %2129 = vmatpush.bf16.msra.mxu0 %v1906
        %2130 = vmatmul.bf16.gmra.mxu0 %v1966
        %v2131 = vpop.f32.mrf.mxu0
        %v2132 = vadd.f32 0.0, %v2131
        %v2133 = vpop.f32.mrf.mxu0
        %v2134 = vadd.f32 0.0, %v2133
        %2135 = vmatmul.bf16.gmra.mxu0 %v1969
        %v2136 = vpop.f32.mrf.mxu0
        %v2137 = vadd.f32 0.0, %v2136
        %v2138 = vpop.f32.mrf.mxu0
        %v2139 = vadd.f32 0.0, %v2138
        %2140 = vmatmul.bf16.gmra.mxu0 %v1972
        %v2141 = vpop.f32.mrf.mxu0
        %v2142 = vadd.f32 0.0, %v2141
        %v2143 = vpop.f32.mrf.mxu0
        %v2144 = vadd.f32 0.0, %v2143
        %2145 = vmatmul.bf16.gmra.mxu0 %v1975
        %v2146 = vpop.f32.mrf.mxu0
        %v2147 = vadd.f32 0.0, %v2146
        %v2148 = vpop.f32.mrf.mxu0
        %v2149 = vadd.f32 0.0, %v2148
        %2150 = vdwg.mxu0
        %2151 = vmatpush.bf16.msra.mxu0 0
        %2152 = vmatpush.bf16.msra.mxu0 0
        %2153 = vmatpush.bf16.msra.mxu0 0
        %2154 = vmatpush.bf16.msra.mxu0 0
        %2155 = vmatpush.bf16.msra.mxu0 %v1931
        %2156 = vmatpush.bf16.msra.mxu0 %v1923
        %2157 = vmatpush.bf16.msra.mxu0 %v1915
        %2158 = vmatpush.bf16.msra.mxu0 %v1907
        %2159 = vmatmul.bf16.gmra.mxu0 %v1966
        %v2160 = vpop.f32.mrf.mxu0
        %v2161 = vadd.f32 0.0, %v2160
        %v2162 = vpop.f32.mrf.mxu0
        %v2163 = vadd.f32 0.0, %v2162
        %2164 = vmatmul.bf16.gmra.mxu0 %v1969
        %v2165 = vpop.f32.mrf.mxu0
        %v2166 = vadd.f32 0.0, %v2165
        %v2167 = vpop.f32.mrf.mxu0
        %v2168 = vadd.f32 0.0, %v2167
        %2169 = vmatmul.bf16.gmra.mxu0 %v1972
        %v2170 = vpop.f32.mrf.mxu0
        %v2171 = vadd.f32 0.0, %v2170
        %v2172 = vpop.f32.mrf.mxu0
        %v2173 = vadd.f32 0.0, %v2172
        %2174 = vmatmul.bf16.gmra.mxu0 %v1975
        %v2175 = vpop.f32.mrf.mxu0
        %v2176 = vadd.f32 0.0, %v2175
        %v2177 = vpop.f32.mrf.mxu0
        %v2178 = vadd.f32 0.0, %v2177
        %2179 = vdwg.mxu0
        %2180 = vmatpush.bf16.msra.mxu0 0
        %2181 = vmatpush.bf16.msra.mxu0 0
        %2182 = vmatpush.bf16.msra.mxu0 0
        %2183 = vmatpush.bf16.msra.mxu0 0
        %2184 = vmatpush.bf16.msra.mxu0 %v1932
        %2185 = vmatpush.bf16.msra.mxu0 %v1924
        %2186 = vmatpush.bf16.msra.mxu0 %v1916
        %2187 = vmatpush.bf16.msra.mxu0 %v1908
        %2188 = vmatmul.bf16.gmra.mxu0 %v1966
        %v2189 = vpop.f32.mrf.mxu0
        %v2190 = vadd.f32 0.0, %v2189
        %v2191 = vpop.f32.mrf.mxu0
        %v2192 = vadd.f32 0.0, %v2191
        %2193 = vmatmul.bf16.gmra.mxu0 %v1969
        %v2194 = vpop.f32.mrf.mxu0
        %v2195 = vadd.f32 0.0, %v2194
        %v2196 = vpop.f32.mrf.mxu0
        %v2197 = vadd.f32 0.0, %v2196
        %2198 = vmatmul.bf16.gmra.mxu0 %v1972
        %v2199 = vpop.f32.mrf.mxu0
        %v2200 = vadd.f32 0.0, %v2199
        %v2201 = vpop.f32.mrf.mxu0
        %v2202 = vadd.f32 0.0, %v2201
        %2203 = vmatmul.bf16.gmra.mxu0 %v1975
        %v2204 = vpop.f32.mrf.mxu0
        %v2205 = vadd.f32 0.0, %v2204
        %v2206 = vpop.f32.mrf.mxu0
        %v2207 = vadd.f32 0.0, %v2206
        %2208 = vdwg.mxu0
        %v2209 = vld [vmem:[%s10] sm:$0xff]
        %v2210 = vld [vmem:[%s10 + $0x8] sm:$0xff]
        %v2211 = vld [vmem:[%s10 + $0x10] sm:$0xff]
        %v2212 = vld [vmem:[%s10 + $0x18] sm:$0xff]
        %v2213 = vld [vmem:[%s10 + $0x20] sm:$0xff]
        %v2214 = vld [vmem:[%s10 + $0x28] sm:$0xff]
        %v2215 = vld [vmem:[%s10 + $0x30] sm:$0xff]
        %v2216 = vld [vmem:[%s10 + $0x38] sm:$0xff]
        %v2217 = vld [vmem:[%s10 + $0x40] sm:$0xff]
        %v2218 = vld [vmem:[%s10 + $0x48] sm:$0xff]
        %v2219 = vld [vmem:[%s10 + $0x50] sm:$0xff]
        %v2220 = vld [vmem:[%s10 + $0x58] sm:$0xff]
        %v2221 = vld [vmem:[%s10 + $0x60] sm:$0xff]
        %v2222 = vld [vmem:[%s10 + $0x68] sm:$0xff]
        %v2223 = vld [vmem:[%s10 + $0x70] sm:$0xff]
        %v2224 = vld [vmem:[%s10 + $0x78] sm:$0xff]
        %v2225 = vld [vmem:[%s10 + $0x80] sm:$0xff]
        %v2226 = vld [vmem:[%s10 + $0x88] sm:$0xff]
        %v2227 = vld [vmem:[%s10 + $0x90] sm:$0xff]
        %v2228 = vld [vmem:[%s10 + $0x98] sm:$0xff]
        %v2229 = vld [vmem:[%s10 + $0xa0] sm:$0xff]
        %v2230 = vld [vmem:[%s10 + $0xa8] sm:$0xff]
        %v2231 = vld [vmem:[%s10 + $0xb0] sm:$0xff]
        %v2232 = vld [vmem:[%s10 + $0xb8] sm:$0xff]
        %v2233 = vld [vmem:[%s10 + $0xc0] sm:$0xff]
        %v2234 = vld [vmem:[%s10 + $0xc8] sm:$0xff]
        %v2235 = vld [vmem:[%s10 + $0xd0] sm:$0xff]
        %v2236 = vld [vmem:[%s10 + $0xd8] sm:$0xff]
        %v2237 = vld [vmem:[%s10 + $0xe0] sm:$0xff]
        %v2238 = vld [vmem:[%s10 + $0xe8] sm:$0xff]
        %v2239 = vld [vmem:[%s10 + $0xf0] sm:$0xff]
        %v2240 = vld [vmem:[%s10 + $0xf8] sm:$0xff]
        %v2273 = vunpack.c.l.b16 %v2209
        %v2274 = vunpack.c.h.b16 %v2209
        %v2275 = vunpack.c.l.b16 %v2210
        %v2276 = vunpack.c.h.b16 %v2210
        %v2277 = vunpack.c.l.b16 %v2211
        %v2278 = vunpack.c.h.b16 %v2211
        %v2279 = vunpack.c.l.b16 %v2212
        %v2280 = vunpack.c.h.b16 %v2212
        %v2281 = vunpack.c.l.b16 %v2213
        %v2282 = vunpack.c.h.b16 %v2213
        %v2283 = vunpack.c.l.b16 %v2214
        %v2284 = vunpack.c.h.b16 %v2214
        %v2285 = vunpack.c.l.b16 %v2215
        %v2286 = vunpack.c.h.b16 %v2215
        %v2287 = vunpack.c.l.b16 %v2216
        %v2288 = vunpack.c.h.b16 %v2216
        %v2289 = vunpack.c.l.b16 %v2217
        %v2290 = vunpack.c.h.b16 %v2217
        %v2291 = vunpack.c.l.b16 %v2218
        %v2292 = vunpack.c.h.b16 %v2218
        %v2293 = vunpack.c.l.b16 %v2219
        %v2294 = vunpack.c.h.b16 %v2219
        %v2295 = vunpack.c.l.b16 %v2220
        %v2296 = vunpack.c.h.b16 %v2220
        %v2297 = vunpack.c.l.b16 %v2221
        %v2298 = vunpack.c.h.b16 %v2221
        %v2299 = vunpack.c.l.b16 %v2222
        %v2300 = vunpack.c.h.b16 %v2222
        %v2301 = vunpack.c.l.b16 %v2223
        %v2302 = vunpack.c.h.b16 %v2223
        %v2303 = vunpack.c.l.b16 %v2224
        %v2304 = vunpack.c.h.b16 %v2224
        %v2305 = vunpack.c.l.b16 %v2225
        %v2306 = vunpack.c.h.b16 %v2225
        %v2307 = vunpack.c.l.b16 %v2226
        %v2308 = vunpack.c.h.b16 %v2226
        %v2309 = vunpack.c.l.b16 %v2227
        %v2310 = vunpack.c.h.b16 %v2227
        %v2311 = vunpack.c.l.b16 %v2228
        %v2312 = vunpack.c.h.b16 %v2228
        %v2313 = vunpack.c.l.b16 %v2229
        %v2314 = vunpack.c.h.b16 %v2229
        %v2315 = vunpack.c.l.b16 %v2230
        %v2316 = vunpack.c.h.b16 %v2230
        %v2317 = vunpack.c.l.b16 %v2231
        %v2318 = vunpack.c.h.b16 %v2231
        %v2319 = vunpack.c.l.b16 %v2232
        %v2320 = vunpack.c.h.b16 %v2232
        %v2321 = vunpack.c.l.b16 %v2233
        %v2322 = vunpack.c.h.b16 %v2233
        %v2323 = vunpack.c.l.b16 %v2234
        %v2324 = vunpack.c.h.b16 %v2234
        %v2325 = vunpack.c.l.b16 %v2235
        %v2326 = vunpack.c.h.b16 %v2235
        %v2327 = vunpack.c.l.b16 %v2236
        %v2328 = vunpack.c.h.b16 %v2236
        %v2329 = vunpack.c.l.b16 %v2237
        %v2330 = vunpack.c.h.b16 %v2237
        %v2331 = vunpack.c.l.b16 %v2238
        %v2332 = vunpack.c.h.b16 %v2238
        %v2333 = vunpack.c.l.b16 %v2239
        %v2334 = vunpack.c.h.b16 %v2239
        %v2335 = vunpack.c.l.b16 %v2240
        %v2336 = vunpack.c.h.b16 %v2240
        %v2337 = vpack.c.b16 %v2281, %v2273
        %v2338 = vpack.c.b16 %v2282, %v2274
        %v2339 = vpack.c.b16 %v2283, %v2275
        %v2340 = vpack.c.b16 %v2284, %v2276
        %v2341 = vpack.c.b16 %v2285, %v2277
        %v2342 = vpack.c.b16 %v2286, %v2278
        %v2343 = vpack.c.b16 %v2287, %v2279
        %v2344 = vpack.c.b16 %v2288, %v2280
        %v2345 = vpack.c.b16 %v2297, %v2289
        %v2346 = vpack.c.b16 %v2298, %v2290
        %v2347 = vpack.c.b16 %v2299, %v2291
        %v2348 = vpack.c.b16 %v2300, %v2292
        %v2349 = vpack.c.b16 %v2301, %v2293
        %v2350 = vpack.c.b16 %v2302, %v2294
        %v2351 = vpack.c.b16 %v2303, %v2295
        %v2352 = vpack.c.b16 %v2304, %v2296
        %v2353 = vpack.c.b16 %v2313, %v2305
        %v2354 = vpack.c.b16 %v2314, %v2306
        %v2355 = vpack.c.b16 %v2315, %v2307
        %v2356 = vpack.c.b16 %v2316, %v2308
        %v2357 = vpack.c.b16 %v2317, %v2309
        %v2358 = vpack.c.b16 %v2318, %v2310
        %v2359 = vpack.c.b16 %v2319, %v2311
        %v2360 = vpack.c.b16 %v2320, %v2312
        %v2361 = vpack.c.b16 %v2329, %v2321
        %v2362 = vpack.c.b16 %v2330, %v2322
        %v2363 = vpack.c.b16 %v2331, %v2323
        %v2364 = vpack.c.b16 %v2332, %v2324
        %v2365 = vpack.c.b16 %v2333, %v2325
        %v2366 = vpack.c.b16 %v2334, %v2326
        %v2367 = vpack.c.b16 %v2335, %v2327
        %v2368 = vpack.c.b16 %v2336, %v2328
        %v2402 = vsel %vm884, %v1769, 0
        %v2405 = vsel %vm884, %v1770, 0
        %v2408 = vsel %vm884, %v1771, 0
        %v2411 = vsel %vm884, %v1772, 0
        %2413 = vmatpush.bf16.msra.mxu0 0
        %2414 = vmatpush.bf16.msra.mxu0 0
        %2415 = vmatpush.bf16.msra.mxu0 0
        %2416 = vmatpush.bf16.msra.mxu0 0
        %2417 = vmatpush.bf16.msra.mxu0 %v2361
        %2418 = vmatpush.bf16.msra.mxu0 %v2353
        %2419 = vmatpush.bf16.msra.mxu0 %v2345
        %2420 = vmatpush.bf16.msra.mxu0 %v2337
        %2421 = vmatmul.bf16.gmra.mxu0 %v2402
        %v2422 = vpop.f32.mrf.mxu0
        %v2423 = vadd.f32 0.0, %v2422
        %v2424 = vpop.f32.mrf.mxu0
        %v2425 = vadd.f32 0.0, %v2424
        %2426 = vmatmul.bf16.gmra.mxu0 %v2405
        %v2427 = vpop.f32.mrf.mxu0
        %v2428 = vadd.f32 0.0, %v2427
        %v2429 = vpop.f32.mrf.mxu0
        %v2430 = vadd.f32 0.0, %v2429
        %2431 = vmatmul.bf16.gmra.mxu0 %v2408
        %v2432 = vpop.f32.mrf.mxu0
        %v2433 = vadd.f32 0.0, %v2432
        %v2434 = vpop.f32.mrf.mxu0
        %v2435 = vadd.f32 0.0, %v2434
        %2436 = vmatmul.bf16.gmra.mxu0 %v2411
        %v2437 = vpop.f32.mrf.mxu0
        %v2438 = vadd.f32 0.0, %v2437
        %v2439 = vpop.f32.mrf.mxu0
        %v2440 = vadd.f32 0.0, %v2439
        %2441 = vdwg.mxu0
        %2442 = vmatpush.bf16.msra.mxu0 0
        %2443 = vmatpush.bf16.msra.mxu0 0
        %2444 = vmatpush.bf16.msra.mxu0 0
        %2445 = vmatpush.bf16.msra.mxu0 0
        %2446 = vmatpush.bf16.msra.mxu0 %v2362
        %2447 = vmatpush.bf16.msra.mxu0 %v2354
        %2448 = vmatpush.bf16.msra.mxu0 %v2346
        %2449 = vmatpush.bf16.msra.mxu0 %v2338
        %2450 = vmatmul.bf16.gmra.mxu0 %v2402
        %v2451 = vpop.f32.mrf.mxu0
        %v2452 = vadd.f32 0.0, %v2451
        %v2453 = vpop.f32.mrf.mxu0
        %v2454 = vadd.f32 0.0, %v2453
        %2455 = vmatmul.bf16.gmra.mxu0 %v2405
        %v2456 = vpop.f32.mrf.mxu0
        %v2457 = vadd.f32 0.0, %v2456
        %v2458 = vpop.f32.mrf.mxu0
        %v2459 = vadd.f32 0.0, %v2458
        %2460 = vmatmul.bf16.gmra.mxu0 %v2408
        %v2461 = vpop.f32.mrf.mxu0
        %v2462 = vadd.f32 0.0, %v2461
        %v2463 = vpop.f32.mrf.mxu0
        %v2464 = vadd.f32 0.0, %v2463
        %2465 = vmatmul.bf16.gmra.mxu0 %v2411
        %v2466 = vpop.f32.mrf.mxu0
        %v2467 = vadd.f32 0.0, %v2466
        %v2468 = vpop.f32.mrf.mxu0
        %v2469 = vadd.f32 0.0, %v2468
        %2470 = vdwg.mxu0
        %2471 = vmatpush.bf16.msra.mxu0 0
        %2472 = vmatpush.bf16.msra.mxu0 0
        %2473 = vmatpush.bf16.msra.mxu0 0
        %2474 = vmatpush.bf16.msra.mxu0 0
        %2475 = vmatpush.bf16.msra.mxu0 %v2363
        %2476 = vmatpush.bf16.msra.mxu0 %v2355
        %2477 = vmatpush.bf16.msra.mxu0 %v2347
        %2478 = vmatpush.bf16.msra.mxu0 %v2339
        %2479 = vmatmul.bf16.gmra.mxu0 %v2402
        %v2480 = vpop.f32.mrf.mxu0
        %v2481 = vadd.f32 0.0, %v2480
        %v2482 = vpop.f32.mrf.mxu0
        %v2483 = vadd.f32 0.0, %v2482
        %2484 = vmatmul.bf16.gmra.mxu0 %v2405
        %v2485 = vpop.f32.mrf.mxu0
        %v2486 = vadd.f32 0.0, %v2485
        %v2487 = vpop.f32.mrf.mxu0
        %v2488 = vadd.f32 0.0, %v2487
        %2489 = vmatmul.bf16.gmra.mxu0 %v2408
        %v2490 = vpop.f32.mrf.mxu0
        %v2491 = vadd.f32 0.0, %v2490
        %v2492 = vpop.f32.mrf.mxu0
        %v2493 = vadd.f32 0.0, %v2492
        %2494 = vmatmul.bf16.gmra.mxu0 %v2411
        %v2495 = vpop.f32.mrf.mxu0
        %v2496 = vadd.f32 0.0, %v2495
        %v2497 = vpop.f32.mrf.mxu0
        %v2498 = vadd.f32 0.0, %v2497
        %2499 = vdwg.mxu0
        %2500 = vmatpush.bf16.msra.mxu0 0
        %2501 = vmatpush.bf16.msra.mxu0 0
        %2502 = vmatpush.bf16.msra.mxu0 0
        %2503 = vmatpush.bf16.msra.mxu0 0
        %2504 = vmatpush.bf16.msra.mxu0 %v2364
        %2505 = vmatpush.bf16.msra.mxu0 %v2356
        %2506 = vmatpush.bf16.msra.mxu0 %v2348
        %2507 = vmatpush.bf16.msra.mxu0 %v2340
        %2508 = vmatmul.bf16.gmra.mxu0 %v2402
        %v2509 = vpop.f32.mrf.mxu0
        %v2510 = vadd.f32 0.0, %v2509
        %v2511 = vpop.f32.mrf.mxu0
        %v2512 = vadd.f32 0.0, %v2511
        %2513 = vmatmul.bf16.gmra.mxu0 %v2405
        %v2514 = vpop.f32.mrf.mxu0
        %v2515 = vadd.f32 0.0, %v2514
        %v2516 = vpop.f32.mrf.mxu0
        %v2517 = vadd.f32 0.0, %v2516
        %2518 = vmatmul.bf16.gmra.mxu0 %v2408
        %v2519 = vpop.f32.mrf.mxu0
        %v2520 = vadd.f32 0.0, %v2519
        %v2521 = vpop.f32.mrf.mxu0
        %v2522 = vadd.f32 0.0, %v2521
        %2523 = vmatmul.bf16.gmra.mxu0 %v2411
        %v2524 = vpop.f32.mrf.mxu0
        %v2525 = vadd.f32 0.0, %v2524
        %v2526 = vpop.f32.mrf.mxu0
        %v2527 = vadd.f32 0.0, %v2526
        %2528 = vdwg.mxu0
        %2529 = vmatpush.bf16.msra.mxu0 0
        %2530 = vmatpush.bf16.msra.mxu0 0
        %2531 = vmatpush.bf16.msra.mxu0 0
        %2532 = vmatpush.bf16.msra.mxu0 0
        %2533 = vmatpush.bf16.msra.mxu0 %v2365
        %2534 = vmatpush.bf16.msra.mxu0 %v2357
        %2535 = vmatpush.bf16.msra.mxu0 %v2349
        %2536 = vmatpush.bf16.msra.mxu0 %v2341
        %2537 = vmatmul.bf16.gmra.mxu0 %v2402
        %v2538 = vpop.f32.mrf.mxu0
        %v2539 = vadd.f32 0.0, %v2538
        %v2540 = vpop.f32.mrf.mxu0
        %v2541 = vadd.f32 0.0, %v2540
        %2542 = vmatmul.bf16.gmra.mxu0 %v2405
        %v2543 = vpop.f32.mrf.mxu0
        %v2544 = vadd.f32 0.0, %v2543
        %v2545 = vpop.f32.mrf.mxu0
        %v2546 = vadd.f32 0.0, %v2545
        %2547 = vmatmul.bf16.gmra.mxu0 %v2408
        %v2548 = vpop.f32.mrf.mxu0
        %v2549 = vadd.f32 0.0, %v2548
        %v2550 = vpop.f32.mrf.mxu0
        %v2551 = vadd.f32 0.0, %v2550
        %2552 = vmatmul.bf16.gmra.mxu0 %v2411
        %v2553 = vpop.f32.mrf.mxu0
        %v2554 = vadd.f32 0.0, %v2553
        %v2555 = vpop.f32.mrf.mxu0
        %v2556 = vadd.f32 0.0, %v2555
        %2557 = vdwg.mxu0
        %2558 = vmatpush.bf16.msra.mxu0 0
        %2559 = vmatpush.bf16.msra.mxu0 0
        %2560 = vmatpush.bf16.msra.mxu0 0
        %2561 = vmatpush.bf16.msra.mxu0 0
        %2562 = vmatpush.bf16.msra.mxu0 %v2366
        %2563 = vmatpush.bf16.msra.mxu0 %v2358
        %2564 = vmatpush.bf16.msra.mxu0 %v2350
        %2565 = vmatpush.bf16.msra.mxu0 %v2342
        %2566 = vmatmul.bf16.gmra.mxu0 %v2402
        %v2567 = vpop.f32.mrf.mxu0
        %v2568 = vadd.f32 0.0, %v2567
        %v2569 = vpop.f32.mrf.mxu0
        %v2570 = vadd.f32 0.0, %v2569
        %2571 = vmatmul.bf16.gmra.mxu0 %v2405
        %v2572 = vpop.f32.mrf.mxu0
        %v2573 = vadd.f32 0.0, %v2572
        %v2574 = vpop.f32.mrf.mxu0
        %v2575 = vadd.f32 0.0, %v2574
        %2576 = vmatmul.bf16.gmra.mxu0 %v2408
        %v2577 = vpop.f32.mrf.mxu0
        %v2578 = vadd.f32 0.0, %v2577
        %v2579 = vpop.f32.mrf.mxu0
        %v2580 = vadd.f32 0.0, %v2579
        %2581 = vmatmul.bf16.gmra.mxu0 %v2411
        %v2582 = vpop.f32.mrf.mxu0
        %v2583 = vadd.f32 0.0, %v2582
        %v2584 = vpop.f32.mrf.mxu0
        %v2585 = vadd.f32 0.0, %v2584
        %2586 = vdwg.mxu0
        %2587 = vmatpush.bf16.msra.mxu0 0
        %2588 = vmatpush.bf16.msra.mxu0 0
        %2589 = vmatpush.bf16.msra.mxu0 0
        %2590 = vmatpush.bf16.msra.mxu0 0
        %2591 = vmatpush.bf16.msra.mxu0 %v2367
        %2592 = vmatpush.bf16.msra.mxu0 %v2359
        %2593 = vmatpush.bf16.msra.mxu0 %v2351
        %2594 = vmatpush.bf16.msra.mxu0 %v2343
        %2595 = vmatmul.bf16.gmra.mxu0 %v2402
        %v2596 = vpop.f32.mrf.mxu0
        %v2597 = vadd.f32 0.0, %v2596
        %v2598 = vpop.f32.mrf.mxu0
        %v2599 = vadd.f32 0.0, %v2598
        %2600 = vmatmul.bf16.gmra.mxu0 %v2405
        %v2601 = vpop.f32.mrf.mxu0
        %v2602 = vadd.f32 0.0, %v2601
        %v2603 = vpop.f32.mrf.mxu0
        %v2604 = vadd.f32 0.0, %v2603
        %2605 = vmatmul.bf16.gmra.mxu0 %v2408
        %v2606 = vpop.f32.mrf.mxu0
        %v2607 = vadd.f32 0.0, %v2606
        %v2608 = vpop.f32.mrf.mxu0
        %v2609 = vadd.f32 0.0, %v2608
        %2610 = vmatmul.bf16.gmra.mxu0 %v2411
        %v2611 = vpop.f32.mrf.mxu0
        %v2612 = vadd.f32 0.0, %v2611
        %v2613 = vpop.f32.mrf.mxu0
        %v2614 = vadd.f32 0.0, %v2613
        %2615 = vdwg.mxu0
        %2616 = vmatpush.bf16.msra.mxu0 0
        %2617 = vmatpush.bf16.msra.mxu0 0
        %2618 = vmatpush.bf16.msra.mxu0 0
        %2619 = vmatpush.bf16.msra.mxu0 0
        %2620 = vmatpush.bf16.msra.mxu0 %v2368
        %2621 = vmatpush.bf16.msra.mxu0 %v2360
        %2622 = vmatpush.bf16.msra.mxu0 %v2352
        %2623 = vmatpush.bf16.msra.mxu0 %v2344
        %2624 = vmatmul.bf16.gmra.mxu0 %v2402
        %v2625 = vpop.f32.mrf.mxu0
        %v2626 = vadd.f32 0.0, %v2625
        %v2627 = vpop.f32.mrf.mxu0
        %v2628 = vadd.f32 0.0, %v2627
        %2629 = vmatmul.bf16.gmra.mxu0 %v2405
        %v2630 = vpop.f32.mrf.mxu0
        %v2631 = vadd.f32 0.0, %v2630
        %v2632 = vpop.f32.mrf.mxu0
        %v2633 = vadd.f32 0.0, %v2632
        %2634 = vmatmul.bf16.gmra.mxu0 %v2408
        %v2635 = vpop.f32.mrf.mxu0
        %v2636 = vadd.f32 0.0, %v2635
        %v2637 = vpop.f32.mrf.mxu0
        %v2638 = vadd.f32 0.0, %v2637
        %2639 = vmatmul.bf16.gmra.mxu0 %v2411
        %v2640 = vpop.f32.mrf.mxu0
        %v2641 = vadd.f32 0.0, %v2640
        %v2642 = vpop.f32.mrf.mxu0
        %v2643 = vadd.f32 0.0, %v2642
        %2644 = vdwg.mxu0
        %v2645 = vmul.f32 %v1987, %v2423
        %v2646 = vmul.f32 %v2016, %v2452
        %v2647 = vmul.f32 %v2045, %v2481
        %v2648 = vmul.f32 %v2074, %v2510
        %v2649 = vmul.f32 %v2103, %v2539
        %v2650 = vmul.f32 %v2132, %v2568
        %v2651 = vmul.f32 %v2161, %v2597
        %v2652 = vmul.f32 %v2190, %v2626
        %v2653 = vmul.f32 %v1989, %v2425
        %v2654 = vmul.f32 %v2018, %v2454
        %v2655 = vmul.f32 %v2047, %v2483
        %v2656 = vmul.f32 %v2076, %v2512
        %v2657 = vmul.f32 %v2105, %v2541
        %v2658 = vmul.f32 %v2134, %v2570
        %v2659 = vmul.f32 %v2163, %v2599
        %v2660 = vmul.f32 %v2192, %v2628
        %v2661 = vmul.f32 %v1992, %v2428
        %v2662 = vmul.f32 %v2021, %v2457
        %v2663 = vmul.f32 %v2050, %v2486
        %v2664 = vmul.f32 %v2079, %v2515
        %v2665 = vmul.f32 %v2108, %v2544
        %v2666 = vmul.f32 %v2137, %v2573
        %v2667 = vmul.f32 %v2166, %v2602
        %v2668 = vmul.f32 %v2195, %v2631
        %v2669 = vmul.f32 %v1994, %v2430
        %v2670 = vmul.f32 %v2023, %v2459
        %v2671 = vmul.f32 %v2052, %v2488
        %v2672 = vmul.f32 %v2081, %v2517
        %v2673 = vmul.f32 %v2110, %v2546
        %v2674 = vmul.f32 %v2139, %v2575
        %v2675 = vmul.f32 %v2168, %v2604
        %v2676 = vmul.f32 %v2197, %v2633
        %v2677 = vmul.f32 %v1997, %v2433
        %v2678 = vmul.f32 %v2026, %v2462
        %v2679 = vmul.f32 %v2055, %v2491
        %v2680 = vmul.f32 %v2084, %v2520
        %v2681 = vmul.f32 %v2113, %v2549
        %v2682 = vmul.f32 %v2142, %v2578
        %v2683 = vmul.f32 %v2171, %v2607
        %v2684 = vmul.f32 %v2200, %v2636
        %v2685 = vmul.f32 %v1999, %v2435
        %v2686 = vmul.f32 %v2028, %v2464
        %v2687 = vmul.f32 %v2057, %v2493
        %v2688 = vmul.f32 %v2086, %v2522
        %v2689 = vmul.f32 %v2115, %v2551
        %v2690 = vmul.f32 %v2144, %v2580
        %v2691 = vmul.f32 %v2173, %v2609
        %v2692 = vmul.f32 %v2202, %v2638
        %v2693 = vmul.f32 %v2002, %v2438
        %v2694 = vmul.f32 %v2031, %v2467
        %v2695 = vmul.f32 %v2060, %v2496
        %v2696 = vmul.f32 %v2089, %v2525
        %v2697 = vmul.f32 %v2118, %v2554
        %v2698 = vmul.f32 %v2147, %v2583
        %v2699 = vmul.f32 %v2176, %v2612
        %v2700 = vmul.f32 %v2205, %v2641
        %v2701 = vmul.f32 %v2004, %v2440
        %v2702 = vmul.f32 %v2033, %v2469
        %v2703 = vmul.f32 %v2062, %v2498
        %v2704 = vmul.f32 %v2091, %v2527
        %v2705 = vmul.f32 %v2120, %v2556
        %v2706 = vmul.f32 %v2149, %v2585
        %v2707 = vmul.f32 %v2178, %v2614
        %v2708 = vmul.f32 %v2207, %v2643
        %v2709 = vpack.c.bf16 %v2653, %v2645
        %v2710 = vpack.c.bf16 %v2654, %v2646
        %v2711 = vpack.c.bf16 %v2655, %v2647
        %v2712 = vpack.c.bf16 %v2656, %v2648
        %v2713 = vpack.c.bf16 %v2657, %v2649
        %v2714 = vpack.c.bf16 %v2658, %v2650
        %v2715 = vpack.c.bf16 %v2659, %v2651
        %v2716 = vpack.c.bf16 %v2660, %v2652
        %v2717 = vpack.c.bf16 %v2669, %v2661
        %v2718 = vpack.c.bf16 %v2670, %v2662
        %v2719 = vpack.c.bf16 %v2671, %v2663
        %v2720 = vpack.c.bf16 %v2672, %v2664
        %v2721 = vpack.c.bf16 %v2673, %v2665
        %v2722 = vpack.c.bf16 %v2674, %v2666
        %v2723 = vpack.c.bf16 %v2675, %v2667
        %v2724 = vpack.c.bf16 %v2676, %v2668
        %v2725 = vpack.c.bf16 %v2685, %v2677
        %v2726 = vpack.c.bf16 %v2686, %v2678
        %v2727 = vpack.c.bf16 %v2687, %v2679
        %v2728 = vpack.c.bf16 %v2688, %v2680
        %v2729 = vpack.c.bf16 %v2689, %v2681
        %v2730 = vpack.c.bf16 %v2690, %v2682
        %v2731 = vpack.c.bf16 %v2691, %v2683
        %v2732 = vpack.c.bf16 %v2692, %v2684
        %v2733 = vpack.c.bf16 %v2701, %v2693
        %v2734 = vpack.c.bf16 %v2702, %v2694
        %v2735 = vpack.c.bf16 %v2703, %v2695
        %v2736 = vpack.c.bf16 %v2704, %v2696
        %v2737 = vpack.c.bf16 %v2705, %v2697
        %v2738 = vpack.c.bf16 %v2706, %v2698
        %v2739 = vpack.c.bf16 %v2707, %v2699
        %v2740 = vpack.c.bf16 %v2708, %v2700
        %v2741 = vld [vmem:[%s11] sm:$0xf]
        %v2742 = vld [vmem:[%s11 + $0x4] sm:$0xf]
        %v2743 = vld [vmem:[%s11 + $0x8] sm:$0xf]
        %v2744 = vld [vmem:[%s11 + $0xc] sm:$0xf]
        %v2745 = vld [vmem:[%s11 + $0x10] sm:$0xf]
        %v2746 = vld [vmem:[%s11 + $0x14] sm:$0xf]
        %v2747 = vld [vmem:[%s11 + $0x18] sm:$0xf]
        %v2748 = vld [vmem:[%s11 + $0x1c] sm:$0xf]
        %v2749 = vld [vmem:[%s11 + $0x20] sm:$0xf]
        %v2750 = vld [vmem:[%s11 + $0x24] sm:$0xf]
        %v2751 = vld [vmem:[%s11 + $0x28] sm:$0xf]
        %v2752 = vld [vmem:[%s11 + $0x2c] sm:$0xf]
        %v2753 = vld [vmem:[%s11 + $0x30] sm:$0xf]
        %v2754 = vld [vmem:[%s11 + $0x34] sm:$0xf]
        %v2755 = vld [vmem:[%s11 + $0x38] sm:$0xf]
        %v2756 = vld [vmem:[%s11 + $0x3c] sm:$0xf]
        %v2757 = vld [vmem:[%s11 + $0x40] sm:$0xf]
        %v2758 = vld [vmem:[%s11 + $0x44] sm:$0xf]
        %v2759 = vld [vmem:[%s11 + $0x48] sm:$0xf]
        %v2760 = vld [vmem:[%s11 + $0x4c] sm:$0xf]
        %v2761 = vld [vmem:[%s11 + $0x50] sm:$0xf]
        %v2762 = vld [vmem:[%s11 + $0x54] sm:$0xf]
        %v2763 = vld [vmem:[%s11 + $0x58] sm:$0xf]
        %v2764 = vld [vmem:[%s11 + $0x5c] sm:$0xf]
        %v2765 = vld [vmem:[%s11 + $0x60] sm:$0xf]
        %v2766 = vld [vmem:[%s11 + $0x64] sm:$0xf]
        %v2767 = vld [vmem:[%s11 + $0x68] sm:$0xf]
        %v2768 = vld [vmem:[%s11 + $0x6c] sm:$0xf]
        %v2769 = vld [vmem:[%s11 + $0x70] sm:$0xf]
        %v2770 = vld [vmem:[%s11 + $0x74] sm:$0xf]
        %v2771 = vld [vmem:[%s11 + $0x78] sm:$0xf]
        %v2772 = vld [vmem:[%s11 + $0x7c] sm:$0xf]
        %v2773 = vld [vmem:[%s11 + $0x80] sm:$0xf]
        %v2774 = vld [vmem:[%s11 + $0x84] sm:$0xf]
        %v2775 = vld [vmem:[%s11 + $0x88] sm:$0xf]
        %v2776 = vld [vmem:[%s11 + $0x8c] sm:$0xf]
        %v2777 = vld [vmem:[%s11 + $0x90] sm:$0xf]
        %v2778 = vld [vmem:[%s11 + $0x94] sm:$0xf]
        %v2779 = vld [vmem:[%s11 + $0x98] sm:$0xf]
        %v2780 = vld [vmem:[%s11 + $0x9c] sm:$0xf]
        %v2781 = vld [vmem:[%s11 + $0xa0] sm:$0xf]
        %v2782 = vld [vmem:[%s11 + $0xa4] sm:$0xf]
        %v2783 = vld [vmem:[%s11 + $0xa8] sm:$0xf]
        %v2784 = vld [vmem:[%s11 + $0xac] sm:$0xf]
        %v2785 = vld [vmem:[%s11 + $0xb0] sm:$0xf]
        %v2786 = vld [vmem:[%s11 + $0xb4] sm:$0xf]
        %v2787 = vld [vmem:[%s11 + $0xb8] sm:$0xf]
        %v2788 = vld [vmem:[%s11 + $0xbc] sm:$0xf]
        %v2789 = vld [vmem:[%s11 + $0xc0] sm:$0xf]
        %v2790 = vld [vmem:[%s11 + $0xc4] sm:$0xf]
        %v2791 = vld [vmem:[%s11 + $0xc8] sm:$0xf]
        %v2792 = vld [vmem:[%s11 + $0xcc] sm:$0xf]
        %v2793 = vld [vmem:[%s11 + $0xd0] sm:$0xf]
        %v2794 = vld [vmem:[%s11 + $0xd4] sm:$0xf]
        %v2795 = vld [vmem:[%s11 + $0xd8] sm:$0xf]
        %v2796 = vld [vmem:[%s11 + $0xdc] sm:$0xf]
        %v2797 = vld [vmem:[%s11 + $0xe0] sm:$0xf]
        %v2798 = vld [vmem:[%s11 + $0xe4] sm:$0xf]
        %v2799 = vld [vmem:[%s11 + $0xe8] sm:$0xf]
        %v2800 = vld [vmem:[%s11 + $0xec] sm:$0xf]
        %v2801 = vld [vmem:[%s11 + $0xf0] sm:$0xf]
        %v2802 = vld [vmem:[%s11 + $0xf4] sm:$0xf]
        %v2803 = vld [vmem:[%s11 + $0xf8] sm:$0xf]
        %v2804 = vld [vmem:[%s11 + $0xfc] sm:$0xf]
        %v2805 = vld [vmem:[%s11 + $0x100] sm:$0xf]
        %v2806 = vld [vmem:[%s11 + $0x104] sm:$0xf]
        %v2807 = vld [vmem:[%s11 + $0x108] sm:$0xf]
        %v2808 = vld [vmem:[%s11 + $0x10c] sm:$0xf]
        %v2809 = vld [vmem:[%s11 + $0x110] sm:$0xf]
        %v2810 = vld [vmem:[%s11 + $0x114] sm:$0xf]
        %v2811 = vld [vmem:[%s11 + $0x118] sm:$0xf]
        %v2812 = vld [vmem:[%s11 + $0x11c] sm:$0xf]
        %v2813 = vld [vmem:[%s11 + $0x120] sm:$0xf]
        %v2814 = vld [vmem:[%s11 + $0x124] sm:$0xf]
        %v2815 = vld [vmem:[%s11 + $0x128] sm:$0xf]
        %v2816 = vld [vmem:[%s11 + $0x12c] sm:$0xf]
        %v2817 = vld [vmem:[%s11 + $0x130] sm:$0xf]
        %v2818 = vld [vmem:[%s11 + $0x134] sm:$0xf]
        %v2819 = vld [vmem:[%s11 + $0x138] sm:$0xf]
        %v2820 = vld [vmem:[%s11 + $0x13c] sm:$0xf]
        %v2821 = vld [vmem:[%s11 + $0x140] sm:$0xf]
        %v2822 = vld [vmem:[%s11 + $0x144] sm:$0xf]
        %v2823 = vld [vmem:[%s11 + $0x148] sm:$0xf]
        %v2824 = vld [vmem:[%s11 + $0x14c] sm:$0xf]
        %v2825 = vld [vmem:[%s11 + $0x150] sm:$0xf]
        %v2826 = vld [vmem:[%s11 + $0x154] sm:$0xf]
        %v2827 = vld [vmem:[%s11 + $0x158] sm:$0xf]
        %v2828 = vld [vmem:[%s11 + $0x15c] sm:$0xf]
        %v2829 = vld [vmem:[%s11 + $0x160] sm:$0xf]
        %v2830 = vld [vmem:[%s11 + $0x164] sm:$0xf]
        %v2831 = vld [vmem:[%s11 + $0x168] sm:$0xf]
        %v2832 = vld [vmem:[%s11 + $0x16c] sm:$0xf]
        %v2833 = vld [vmem:[%s11 + $0x170] sm:$0xf]
        %v2834 = vld [vmem:[%s11 + $0x174] sm:$0xf]
        %v2835 = vld [vmem:[%s11 + $0x178] sm:$0xf]
        %v2836 = vld [vmem:[%s11 + $0x17c] sm:$0xf]
        %v2837 = vld [vmem:[%s11 + $0x180] sm:$0xf]
        %v2838 = vld [vmem:[%s11 + $0x184] sm:$0xf]
        %v2839 = vld [vmem:[%s11 + $0x188] sm:$0xf]
        %v2840 = vld [vmem:[%s11 + $0x18c] sm:$0xf]
        %v2841 = vld [vmem:[%s11 + $0x190] sm:$0xf]
        %v2842 = vld [vmem:[%s11 + $0x194] sm:$0xf]
        %v2843 = vld [vmem:[%s11 + $0x198] sm:$0xf]
        %v2844 = vld [vmem:[%s11 + $0x19c] sm:$0xf]
        %v2845 = vld [vmem:[%s11 + $0x1a0] sm:$0xf]
        %v2846 = vld [vmem:[%s11 + $0x1a4] sm:$0xf]
        %v2847 = vld [vmem:[%s11 + $0x1a8] sm:$0xf]
        %v2848 = vld [vmem:[%s11 + $0x1ac] sm:$0xf]
        %v2849 = vld [vmem:[%s11 + $0x1b0] sm:$0xf]
        %v2850 = vld [vmem:[%s11 + $0x1b4] sm:$0xf]
        %v2851 = vld [vmem:[%s11 + $0x1b8] sm:$0xf]
        %v2852 = vld [vmem:[%s11 + $0x1bc] sm:$0xf]
        %v2853 = vld [vmem:[%s11 + $0x1c0] sm:$0xf]
        %v2854 = vld [vmem:[%s11 + $0x1c4] sm:$0xf]
        %v2855 = vld [vmem:[%s11 + $0x1c8] sm:$0xf]
        %v2856 = vld [vmem:[%s11 + $0x1cc] sm:$0xf]
        %v2857 = vld [vmem:[%s11 + $0x1d0] sm:$0xf]
        %v2858 = vld [vmem:[%s11 + $0x1d4] sm:$0xf]
        %v2859 = vld [vmem:[%s11 + $0x1d8] sm:$0xf]
        %v2860 = vld [vmem:[%s11 + $0x1dc] sm:$0xf]
        %v2861 = vld [vmem:[%s11 + $0x1e0] sm:$0xf]
        %v2862 = vld [vmem:[%s11 + $0x1e4] sm:$0xf]
        %v2863 = vld [vmem:[%s11 + $0x1e8] sm:$0xf]
        %v2864 = vld [vmem:[%s11 + $0x1ec] sm:$0xf]
        %v2865 = vld [vmem:[%s11 + $0x1f0] sm:$0xf]
        %v2866 = vld [vmem:[%s11 + $0x1f4] sm:$0xf]
        %v2867 = vld [vmem:[%s11 + $0x1f8] sm:$0xf]
        %v2868 = vld [vmem:[%s11 + $0x1fc] sm:$0xf]
        %v2869 = vld [vmem:[%s12] sm:$0x1]
        %v2871 = vperm.slane %v2869, 0
        %v3001 = vunpack.c.l.b16 %v2741
        %v3002 = vunpack.c.l.b16 %v2742
        %v3003 = vunpack.c.l.b16 %v2743
        %v3004 = vunpack.c.l.b16 %v2744
        %v3005 = vunpack.c.l.b16 %v2745
        %v3006 = vunpack.c.l.b16 %v2746
        %v3007 = vunpack.c.l.b16 %v2747
        %v3008 = vunpack.c.l.b16 %v2748
        %v3009 = vunpack.c.l.b16 %v2749
        %v3010 = vunpack.c.l.b16 %v2750
        %v3011 = vunpack.c.l.b16 %v2751
        %v3012 = vunpack.c.l.b16 %v2752
        %v3013 = vunpack.c.l.b16 %v2753
        %v3014 = vunpack.c.l.b16 %v2754
        %v3015 = vunpack.c.l.b16 %v2755
        %v3016 = vunpack.c.l.b16 %v2756
        %v3017 = vunpack.c.l.b16 %v2757
        %v3018 = vunpack.c.l.b16 %v2758
        %v3019 = vunpack.c.l.b16 %v2759
        %v3020 = vunpack.c.l.b16 %v2760
        %v3021 = vunpack.c.l.b16 %v2761
        %v3022 = vunpack.c.l.b16 %v2762
        %v3023 = vunpack.c.l.b16 %v2763
        %v3024 = vunpack.c.l.b16 %v2764
        %v3025 = vunpack.c.l.b16 %v2765
        %v3026 = vunpack.c.l.b16 %v2766
        %v3027 = vunpack.c.l.b16 %v2767
        %v3028 = vunpack.c.l.b16 %v2768
        %v3029 = vunpack.c.l.b16 %v2769
        %v3030 = vunpack.c.l.b16 %v2770
        %v3031 = vunpack.c.l.b16 %v2771
        %v3032 = vunpack.c.l.b16 %v2772
        %v3033 = vunpack.c.l.b16 %v2773
        %v3034 = vunpack.c.l.b16 %v2774
        %v3035 = vunpack.c.l.b16 %v2775
        %v3036 = vunpack.c.l.b16 %v2776
        %v3037 = vunpack.c.l.b16 %v2777
        %v3038 = vunpack.c.l.b16 %v2778
        %v3039 = vunpack.c.l.b16 %v2779
        %v3040 = vunpack.c.l.b16 %v2780
        %v3041 = vunpack.c.l.b16 %v2781
        %v3042 = vunpack.c.l.b16 %v2782
        %v3043 = vunpack.c.l.b16 %v2783
        %v3044 = vunpack.c.l.b16 %v2784
        %v3045 = vunpack.c.l.b16 %v2785
        %v3046 = vunpack.c.l.b16 %v2786
        %v3047 = vunpack.c.l.b16 %v2787
        %v3048 = vunpack.c.l.b16 %v2788
        %v3049 = vunpack.c.l.b16 %v2789
        %v3050 = vunpack.c.l.b16 %v2790
        %v3051 = vunpack.c.l.b16 %v2791
        %v3052 = vunpack.c.l.b16 %v2792
        %v3053 = vunpack.c.l.b16 %v2793
        %v3054 = vunpack.c.l.b16 %v2794
        %v3055 = vunpack.c.l.b16 %v2795
        %v3056 = vunpack.c.l.b16 %v2796
        %v3057 = vunpack.c.l.b16 %v2797
        %v3058 = vunpack.c.l.b16 %v2798
        %v3059 = vunpack.c.l.b16 %v2799
        %v3060 = vunpack.c.l.b16 %v2800
        %v3061 = vunpack.c.l.b16 %v2801
        %v3062 = vunpack.c.l.b16 %v2802
        %v3063 = vunpack.c.l.b16 %v2803
        %v3064 = vunpack.c.l.b16 %v2804
        %v3065 = vunpack.c.l.b16 %v2805
        %v3066 = vunpack.c.l.b16 %v2806
        %v3067 = vunpack.c.l.b16 %v2807
        %v3068 = vunpack.c.l.b16 %v2808
        %v3069 = vunpack.c.l.b16 %v2809
        %v3070 = vunpack.c.l.b16 %v2810
        %v3071 = vunpack.c.l.b16 %v2811
        %v3072 = vunpack.c.l.b16 %v2812
        %v3073 = vunpack.c.l.b16 %v2813
        %v3074 = vunpack.c.l.b16 %v2814
        %v3075 = vunpack.c.l.b16 %v2815
        %v3076 = vunpack.c.l.b16 %v2816
        %v3077 = vunpack.c.l.b16 %v2817
        %v3078 = vunpack.c.l.b16 %v2818
        %v3079 = vunpack.c.l.b16 %v2819
        %v3080 = vunpack.c.l.b16 %v2820
        %v3081 = vunpack.c.l.b16 %v2821
        %v3082 = vunpack.c.l.b16 %v2822
        %v3083 = vunpack.c.l.b16 %v2823
        %v3084 = vunpack.c.l.b16 %v2824
        %v3085 = vunpack.c.l.b16 %v2825
        %v3086 = vunpack.c.l.b16 %v2826
        %v3087 = vunpack.c.l.b16 %v2827
        %v3088 = vunpack.c.l.b16 %v2828
        %v3089 = vunpack.c.l.b16 %v2829
        %v3090 = vunpack.c.l.b16 %v2830
        %v3091 = vunpack.c.l.b16 %v2831
        %v3092 = vunpack.c.l.b16 %v2832
        %v3093 = vunpack.c.l.b16 %v2833
        %v3094 = vunpack.c.l.b16 %v2834
        %v3095 = vunpack.c.l.b16 %v2835
        %v3096 = vunpack.c.l.b16 %v2836
        %v3097 = vunpack.c.l.b16 %v2837
        %v3098 = vunpack.c.l.b16 %v2838
        %v3099 = vunpack.c.l.b16 %v2839
        %v3100 = vunpack.c.l.b16 %v2840
        %v3101 = vunpack.c.l.b16 %v2841
        %v3102 = vunpack.c.l.b16 %v2842
        %v3103 = vunpack.c.l.b16 %v2843
        %v3104 = vunpack.c.l.b16 %v2844
        %v3105 = vunpack.c.l.b16 %v2845
        %v3106 = vunpack.c.l.b16 %v2846
        %v3107 = vunpack.c.l.b16 %v2847
        %v3108 = vunpack.c.l.b16 %v2848
        %v3109 = vunpack.c.l.b16 %v2849
        %v3110 = vunpack.c.l.b16 %v2850
        %v3111 = vunpack.c.l.b16 %v2851
        %v3112 = vunpack.c.l.b16 %v2852
        %v3113 = vunpack.c.l.b16 %v2853
        %v3114 = vunpack.c.l.b16 %v2854
        %v3115 = vunpack.c.l.b16 %v2855
        %v3116 = vunpack.c.l.b16 %v2856
        %v3117 = vunpack.c.l.b16 %v2857
        %v3118 = vunpack.c.l.b16 %v2858
        %v3119 = vunpack.c.l.b16 %v2859
        %v3120 = vunpack.c.l.b16 %v2860
        %v3121 = vunpack.c.l.b16 %v2861
        %v3122 = vunpack.c.l.b16 %v2862
        %v3123 = vunpack.c.l.b16 %v2863
        %v3124 = vunpack.c.l.b16 %v2864
        %v3125 = vunpack.c.l.b16 %v2865
        %v3126 = vunpack.c.l.b16 %v2866
        %v3127 = vunpack.c.l.b16 %v2867
        %v3128 = vunpack.c.l.b16 %v2868
        %v3129 = vpack.c.b16 %v3002, %v3001
        %v3130 = vpack.c.b16 %v3004, %v3003
        %v3131 = vpack.c.b16 %v3006, %v3005
        %v3132 = vpack.c.b16 %v3008, %v3007
        %v3133 = vpack.c.b16 %v3010, %v3009
        %v3134 = vpack.c.b16 %v3012, %v3011
        %v3135 = vpack.c.b16 %v3014, %v3013
        %v3136 = vpack.c.b16 %v3016, %v3015
        %v3137 = vpack.c.b16 %v3018, %v3017
        %v3138 = vpack.c.b16 %v3020, %v3019
        %v3139 = vpack.c.b16 %v3022, %v3021
        %v3140 = vpack.c.b16 %v3024, %v3023
        %v3141 = vpack.c.b16 %v3026, %v3025
        %v3142 = vpack.c.b16 %v3028, %v3027
        %v3143 = vpack.c.b16 %v3030, %v3029
        %v3144 = vpack.c.b16 %v3032, %v3031
        %v3145 = vpack.c.b16 %v3034, %v3033
        %v3146 = vpack.c.b16 %v3036, %v3035
        %v3147 = vpack.c.b16 %v3038, %v3037
        %v3148 = vpack.c.b16 %v3040, %v3039
        %v3149 = vpack.c.b16 %v3042, %v3041
        %v3150 = vpack.c.b16 %v3044, %v3043
        %v3151 = vpack.c.b16 %v3046, %v3045
        %v3152 = vpack.c.b16 %v3048, %v3047
        %v3153 = vpack.c.b16 %v3050, %v3049
        %v3154 = vpack.c.b16 %v3052, %v3051
        %v3155 = vpack.c.b16 %v3054, %v3053
        %v3156 = vpack.c.b16 %v3056, %v3055
        %v3157 = vpack.c.b16 %v3058, %v3057
        %v3158 = vpack.c.b16 %v3060, %v3059
        %v3159 = vpack.c.b16 %v3062, %v3061
        %v3160 = vpack.c.b16 %v3064, %v3063
        %v3161 = vpack.c.b16 %v3066, %v3065
        %v3162 = vpack.c.b16 %v3068, %v3067
        %v3163 = vpack.c.b16 %v3070, %v3069
        %v3164 = vpack.c.b16 %v3072, %v3071
        %v3165 = vpack.c.b16 %v3074, %v3073
        %v3166 = vpack.c.b16 %v3076, %v3075
        %v3167 = vpack.c.b16 %v3078, %v3077
        %v3168 = vpack.c.b16 %v3080, %v3079
        %v3169 = vpack.c.b16 %v3082, %v3081
        %v3170 = vpack.c.b16 %v3084, %v3083
        %v3171 = vpack.c.b16 %v3086, %v3085
        %v3172 = vpack.c.b16 %v3088, %v3087
        %v3173 = vpack.c.b16 %v3090, %v3089
        %v3174 = vpack.c.b16 %v3092, %v3091
        %v3175 = vpack.c.b16 %v3094, %v3093
        %v3176 = vpack.c.b16 %v3096, %v3095
        %v3177 = vpack.c.b16 %v3098, %v3097
        %v3178 = vpack.c.b16 %v3100, %v3099
        %v3179 = vpack.c.b16 %v3102, %v3101
        %v3180 = vpack.c.b16 %v3104, %v3103
        %v3181 = vpack.c.b16 %v3106, %v3105
        %v3182 = vpack.c.b16 %v3108, %v3107
        %v3183 = vpack.c.b16 %v3110, %v3109
        %v3184 = vpack.c.b16 %v3112, %v3111
        %v3185 = vpack.c.b16 %v3114, %v3113
        %v3186 = vpack.c.b16 %v3116, %v3115
        %v3187 = vpack.c.b16 %v3118, %v3117
        %v3188 = vpack.c.b16 %v3120, %v3119
        %v3189 = vpack.c.b16 %v3122, %v3121
        %v3190 = vpack.c.b16 %v3124, %v3123
        %v3191 = vpack.c.b16 %v3126, %v3125
        %v3192 = vpack.c.b16 %v3128, %v3127
        %3257 = vmatpush.bf16.msra.mxu0 %v3136
        %3258 = vmatpush.bf16.msra.mxu0 %v3135
        %3259 = vmatpush.bf16.msra.mxu0 %v3134
        %3260 = vmatpush.bf16.msra.mxu0 %v3133
        %3261 = vmatpush.bf16.msra.mxu0 %v3132
        %3262 = vmatpush.bf16.msra.mxu0 %v3131
        %3263 = vmatpush.bf16.msra.mxu0 %v3130
        %3264 = vmatpush.bf16.msra.mxu0 %v3129
        %3265 = vmatmul.bf16.gmra.mxu0 %v2709
        %v3266 = vpop.f32.mrf.mxu0
        %v3267 = vadd.f32 %v2871, %v3266
        %v3268 = vpop.f32.mrf.mxu0
        %v3269 = vadd.f32 %v2871, %v3268
        %3270 = vmatmul.bf16.gmra.mxu0 %v2717
        %v3271 = vpop.f32.mrf.mxu0
        %v3272 = vadd.f32 %v2871, %v3271
        %v3273 = vpop.f32.mrf.mxu0
        %v3274 = vadd.f32 %v2871, %v3273
        %3275 = vmatmul.bf16.gmra.mxu0 %v2725
        %v3276 = vpop.f32.mrf.mxu0
        %v3277 = vadd.f32 %v2871, %v3276
        %v3278 = vpop.f32.mrf.mxu0
        %v3279 = vadd.f32 %v2871, %v3278
        %3280 = vmatmul.bf16.gmra.mxu0 %v2733
        %v3281 = vpop.f32.mrf.mxu0
        %v3282 = vadd.f32 %v2871, %v3281
        %v3283 = vpop.f32.mrf.mxu0
        %v3284 = vadd.f32 %v2871, %v3283
        %3285 = vdwg.mxu0
        %3286 = vmatpush.bf16.msra.mxu0 %v3144
        %3287 = vmatpush.bf16.msra.mxu0 %v3143
        %3288 = vmatpush.bf16.msra.mxu0 %v3142
        %3289 = vmatpush.bf16.msra.mxu0 %v3141
        %3290 = vmatpush.bf16.msra.mxu0 %v3140
        %3291 = vmatpush.bf16.msra.mxu0 %v3139
        %3292 = vmatpush.bf16.msra.mxu0 %v3138
        %3293 = vmatpush.bf16.msra.mxu0 %v3137
        %3294 = vmatmul.bf16.gmra.mxu0 %v2710
        %v3295 = vpop.f32.mrf.mxu0
        %v3296 = vadd.f32 %v3267, %v3295
        %v3297 = vpop.f32.mrf.mxu0
        %v3298 = vadd.f32 %v3269, %v3297
        %3299 = vmatmul.bf16.gmra.mxu0 %v2718
        %v3300 = vpop.f32.mrf.mxu0
        %v3301 = vadd.f32 %v3272, %v3300
        %v3302 = vpop.f32.mrf.mxu0
        %v3303 = vadd.f32 %v3274, %v3302
        %3304 = vmatmul.bf16.gmra.mxu0 %v2726
        %v3305 = vpop.f32.mrf.mxu0
        %v3306 = vadd.f32 %v3277, %v3305
        %v3307 = vpop.f32.mrf.mxu0
        %v3308 = vadd.f32 %v3279, %v3307
        %3309 = vmatmul.bf16.gmra.mxu0 %v2734
        %v3310 = vpop.f32.mrf.mxu0
        %v3311 = vadd.f32 %v3282, %v3310
        %v3312 = vpop.f32.mrf.mxu0
        %v3313 = vadd.f32 %v3284, %v3312
        %3314 = vdwg.mxu0
        %3315 = vmatpush.bf16.msra.mxu0 %v3152
        %3316 = vmatpush.bf16.msra.mxu0 %v3151
        %3317 = vmatpush.bf16.msra.mxu0 %v3150
        %3318 = vmatpush.bf16.msra.mxu0 %v3149
        %3319 = vmatpush.bf16.msra.mxu0 %v3148
        %3320 = vmatpush.bf16.msra.mxu0 %v3147
        %3321 = vmatpush.bf16.msra.mxu0 %v3146
        %3322 = vmatpush.bf16.msra.mxu0 %v3145
        %3323 = vmatmul.bf16.gmra.mxu0 %v2711
        %v3324 = vpop.f32.mrf.mxu0
        %v3325 = vadd.f32 %v3296, %v3324
        %v3326 = vpop.f32.mrf.mxu0
        %v3327 = vadd.f32 %v3298, %v3326
        %3328 = vmatmul.bf16.gmra.mxu0 %v2719
        %v3329 = vpop.f32.mrf.mxu0
        %v3330 = vadd.f32 %v3301, %v3329
        %v3331 = vpop.f32.mrf.mxu0
        %v3332 = vadd.f32 %v3303, %v3331
        %3333 = vmatmul.bf16.gmra.mxu0 %v2727
        %v3334 = vpop.f32.mrf.mxu0
        %v3335 = vadd.f32 %v3306, %v3334
        %v3336 = vpop.f32.mrf.mxu0
        %v3337 = vadd.f32 %v3308, %v3336
        %3338 = vmatmul.bf16.gmra.mxu0 %v2735
        %v3339 = vpop.f32.mrf.mxu0
        %v3340 = vadd.f32 %v3311, %v3339
        %v3341 = vpop.f32.mrf.mxu0
        %v3342 = vadd.f32 %v3313, %v3341
        %3343 = vdwg.mxu0
        %3344 = vmatpush.bf16.msra.mxu0 %v3160
        %3345 = vmatpush.bf16.msra.mxu0 %v3159
        %3346 = vmatpush.bf16.msra.mxu0 %v3158
        %3347 = vmatpush.bf16.msra.mxu0 %v3157
        %3348 = vmatpush.bf16.msra.mxu0 %v3156
        %3349 = vmatpush.bf16.msra.mxu0 %v3155
        %3350 = vmatpush.bf16.msra.mxu0 %v3154
        %3351 = vmatpush.bf16.msra.mxu0 %v3153
        %3352 = vmatmul.bf16.gmra.mxu0 %v2712
        %v3353 = vpop.f32.mrf.mxu0
        %v3354 = vadd.f32 %v3325, %v3353
        %v3355 = vpop.f32.mrf.mxu0
        %v3356 = vadd.f32 %v3327, %v3355
        %3357 = vmatmul.bf16.gmra.mxu0 %v2720
        %v3358 = vpop.f32.mrf.mxu0
        %v3359 = vadd.f32 %v3330, %v3358
        %v3360 = vpop.f32.mrf.mxu0
        %v3361 = vadd.f32 %v3332, %v3360
        %3362 = vmatmul.bf16.gmra.mxu0 %v2728
        %v3363 = vpop.f32.mrf.mxu0
        %v3364 = vadd.f32 %v3335, %v3363
        %v3365 = vpop.f32.mrf.mxu0
        %v3366 = vadd.f32 %v3337, %v3365
        %3367 = vmatmul.bf16.gmra.mxu0 %v2736
        %v3368 = vpop.f32.mrf.mxu0
        %v3369 = vadd.f32 %v3340, %v3368
        %v3370 = vpop.f32.mrf.mxu0
        %v3371 = vadd.f32 %v3342, %v3370
        %3372 = vdwg.mxu0
        %3373 = vmatpush.bf16.msra.mxu0 %v3168
        %3374 = vmatpush.bf16.msra.mxu0 %v3167
        %3375 = vmatpush.bf16.msra.mxu0 %v3166
        %3376 = vmatpush.bf16.msra.mxu0 %v3165
        %3377 = vmatpush.bf16.msra.mxu0 %v3164
        %3378 = vmatpush.bf16.msra.mxu0 %v3163
        %3379 = vmatpush.bf16.msra.mxu0 %v3162
        %3380 = vmatpush.bf16.msra.mxu0 %v3161
        %3381 = vmatmul.bf16.gmra.mxu0 %v2713
        %v3382 = vpop.f32.mrf.mxu0
        %v3383 = vadd.f32 %v3354, %v3382
        %v3384 = vpop.f32.mrf.mxu0
        %v3385 = vadd.f32 %v3356, %v3384
        %3386 = vmatmul.bf16.gmra.mxu0 %v2721
        %v3387 = vpop.f32.mrf.mxu0
        %v3388 = vadd.f32 %v3359, %v3387
        %v3389 = vpop.f32.mrf.mxu0
        %v3390 = vadd.f32 %v3361, %v3389
        %3391 = vmatmul.bf16.gmra.mxu0 %v2729
        %v3392 = vpop.f32.mrf.mxu0
        %v3393 = vadd.f32 %v3364, %v3392
        %v3394 = vpop.f32.mrf.mxu0
        %v3395 = vadd.f32 %v3366, %v3394
        %3396 = vmatmul.bf16.gmra.mxu0 %v2737
        %v3397 = vpop.f32.mrf.mxu0
        %v3398 = vadd.f32 %v3369, %v3397
        %v3399 = vpop.f32.mrf.mxu0
        %v3400 = vadd.f32 %v3371, %v3399
        %3401 = vdwg.mxu0
        %3402 = vmatpush.bf16.msra.mxu0 %v3176
        %3403 = vmatpush.bf16.msra.mxu0 %v3175
        %3404 = vmatpush.bf16.msra.mxu0 %v3174
        %3405 = vmatpush.bf16.msra.mxu0 %v3173
        %3406 = vmatpush.bf16.msra.mxu0 %v3172
        %3407 = vmatpush.bf16.msra.mxu0 %v3171
        %3408 = vmatpush.bf16.msra.mxu0 %v3170
        %3409 = vmatpush.bf16.msra.mxu0 %v3169
        %3410 = vmatmul.bf16.gmra.mxu0 %v2714
        %v3411 = vpop.f32.mrf.mxu0
        %v3412 = vadd.f32 %v3383, %v3411
        %v3413 = vpop.f32.mrf.mxu0
        %v3414 = vadd.f32 %v3385, %v3413
        %3415 = vmatmul.bf16.gmra.mxu0 %v2722
        %v3416 = vpop.f32.mrf.mxu0
        %v3417 = vadd.f32 %v3388, %v3416
        %v3418 = vpop.f32.mrf.mxu0
        %v3419 = vadd.f32 %v3390, %v3418
        %3420 = vmatmul.bf16.gmra.mxu0 %v2730
        %v3421 = vpop.f32.mrf.mxu0
        %v3422 = vadd.f32 %v3393, %v3421
        %v3423 = vpop.f32.mrf.mxu0
        %v3424 = vadd.f32 %v3395, %v3423
        %3425 = vmatmul.bf16.gmra.mxu0 %v2738
        %v3426 = vpop.f32.mrf.mxu0
        %v3427 = vadd.f32 %v3398, %v3426
        %v3428 = vpop.f32.mrf.mxu0
        %v3429 = vadd.f32 %v3400, %v3428
        %3430 = vdwg.mxu0
        %3431 = vmatpush.bf16.msra.mxu0 %v3184
        %3432 = vmatpush.bf16.msra.mxu0 %v3183
        %3433 = vmatpush.bf16.msra.mxu0 %v3182
        %3434 = vmatpush.bf16.msra.mxu0 %v3181
        %3435 = vmatpush.bf16.msra.mxu0 %v3180
        %3436 = vmatpush.bf16.msra.mxu0 %v3179
        %3437 = vmatpush.bf16.msra.mxu0 %v3178
        %3438 = vmatpush.bf16.msra.mxu0 %v3177
        %3439 = vmatmul.bf16.gmra.mxu0 %v2715
        %v3440 = vpop.f32.mrf.mxu0
        %v3441 = vadd.f32 %v3412, %v3440
        %v3442 = vpop.f32.mrf.mxu0
        %v3443 = vadd.f32 %v3414, %v3442
        %3444 = vmatmul.bf16.gmra.mxu0 %v2723
        %v3445 = vpop.f32.mrf.mxu0
        %v3446 = vadd.f32 %v3417, %v3445
        %v3447 = vpop.f32.mrf.mxu0
        %v3448 = vadd.f32 %v3419, %v3447
        %3449 = vmatmul.bf16.gmra.mxu0 %v2731
        %v3450 = vpop.f32.mrf.mxu0
        %v3451 = vadd.f32 %v3422, %v3450
        %v3452 = vpop.f32.mrf.mxu0
        %v3453 = vadd.f32 %v3424, %v3452
        %3454 = vmatmul.bf16.gmra.mxu0 %v2739
        %v3455 = vpop.f32.mrf.mxu0
        %v3456 = vadd.f32 %v3427, %v3455
        %v3457 = vpop.f32.mrf.mxu0
        %v3458 = vadd.f32 %v3429, %v3457
        %3459 = vdwg.mxu0
        %3460 = vmatpush.bf16.msra.mxu0 %v3192
        %3461 = vmatpush.bf16.msra.mxu0 %v3191
        %3462 = vmatpush.bf16.msra.mxu0 %v3190
        %3463 = vmatpush.bf16.msra.mxu0 %v3189
        %3464 = vmatpush.bf16.msra.mxu0 %v3188
        %3465 = vmatpush.bf16.msra.mxu0 %v3187
        %3466 = vmatpush.bf16.msra.mxu0 %v3186
        %3467 = vmatpush.bf16.msra.mxu0 %v3185
        %3468 = vmatmul.bf16.gmra.mxu0 %v2716
        %v3469 = vpop.f32.mrf.mxu0
        %v3470 = vadd.f32 %v3441, %v3469
        %v3471 = vpop.f32.mrf.mxu0
        %v3472 = vadd.f32 %v3443, %v3471
        %3473 = vmatmul.bf16.gmra.mxu0 %v2724
        %v3474 = vpop.f32.mrf.mxu0
        %v3475 = vadd.f32 %v3446, %v3474
        %v3476 = vpop.f32.mrf.mxu0
        %v3477 = vadd.f32 %v3448, %v3476
        %3478 = vmatmul.bf16.gmra.mxu0 %v2732
        %v3479 = vpop.f32.mrf.mxu0
        %v3480 = vadd.f32 %v3451, %v3479
        %v3481 = vpop.f32.mrf.mxu0
        %v3482 = vadd.f32 %v3453, %v3481
        %3483 = vmatmul.bf16.gmra.mxu0 %v2740
        %v3484 = vpop.f32.mrf.mxu0
        %v3485 = vadd.f32 %v3456, %v3484
        %v3486 = vpop.f32.mrf.mxu0
        %v3487 = vadd.f32 %v3458, %v3486
        %3488 = vdwg.mxu0
        %3490 = vset.pattern.permute.xlu0 0
        %3491 = vperm.xlu0 %3490, %v3470
        %v3492 = vpop.permute.xlu0 %3491
        %3495 = vset.pattern.permute.xlu0 0
        %3496 = vperm.xlu0 %3495, %v3472
        %v3497 = vpop.permute.xlu0 %3496
        %3500 = vset.pattern.permute.xlu0 0
        %3501 = vperm.xlu0 %3500, %v3475
        %v3502 = vpop.permute.xlu0 %3501
        %3505 = vset.pattern.permute.xlu0 0
        %3506 = vperm.xlu0 %3505, %v3477
        %v3507 = vpop.permute.xlu0 %3506
        %3510 = vset.pattern.permute.xlu0 0
        %3511 = vperm.xlu0 %3510, %v3480
        %v3512 = vpop.permute.xlu0 %3511
        %3515 = vset.pattern.permute.xlu0 0
        %3516 = vperm.xlu0 %3515, %v3482
        %v3517 = vpop.permute.xlu0 %3516
        %3520 = vset.pattern.permute.xlu0 0
        %3521 = vperm.xlu0 %3520, %v3485
        %v3522 = vpop.permute.xlu0 %3521
        %3525 = vset.pattern.permute.xlu0 0
        %3526 = vperm.xlu0 %3525, %v3487
        %v3527 = vpop.permute.xlu0 %3526
        %vm3529 = vcmp.gt.f32.partialorder %v3470, %v3492
        %vm3530 = vcmp.gt.f32.partialorder %v3472, %v3497
        %vm3531 = vcmp.gt.f32.partialorder %v3475, %v3502
        %vm3532 = vcmp.gt.f32.partialorder %v3477, %v3507
        %vm3533 = vcmp.gt.f32.partialorder %v3480, %v3512
        %vm3534 = vcmp.gt.f32.partialorder %v3482, %v3517
        %vm3535 = vcmp.gt.f32.partialorder %v3485, %v3522
        %vm3536 = vcmp.gt.f32.partialorder %v3487, %v3527
        %v3537 = vsel %vm3529, 1.0, 0.0
        %v3538 = vsel %vm3530, 1.0, 0.0
        %v3539 = vsel %vm3531, 1.0, 0.0
        %v3540 = vsel %vm3532, 1.0, 0.0
        %v3541 = vsel %vm3533, 1.0, 0.0
        %v3542 = vsel %vm3534, 1.0, 0.0
        %v3543 = vsel %vm3535, 1.0, 0.0
        %v3544 = vsel %vm3536, 1.0, 0.0
        %3545 = vadd.xlane.f32.xlu0 %v3537
        %v3546 = vpop.xlane.xlu0 %3545
        %3547 = vadd.xlane.f32.xlu0 %v3538
        %v3548 = vpop.xlane.xlu0 %3547
        %3549 = vadd.xlane.f32.xlu0 %v3539
        %v3550 = vpop.xlane.xlu0 %3549
        %3551 = vadd.xlane.f32.xlu0 %v3540
        %v3552 = vpop.xlane.xlu0 %3551
        %3553 = vadd.xlane.f32.xlu0 %v3541
        %v3554 = vpop.xlane.xlu0 %3553
        %3555 = vadd.xlane.f32.xlu0 %v3542
        %v3556 = vpop.xlane.xlu0 %3555
        %3557 = vadd.xlane.f32.xlu0 %v3543
        %v3558 = vpop.xlane.xlu0 %3557
        %3559 = vadd.xlane.f32.xlu0 %v3544
        %v3560 = vpop.xlane.xlu0 %3559
        %v3561 = vlaneseq
        %v3562 = vand.u32 %v3561, 127
        %vm3563 = vcmp.eq.s32.totalorder %v3562, 0
        %vm3564 = vcmp.eq.f32.partialorder %v3546, 0.0
        %vm3565 = vcmp.eq.f32.partialorder %v3548, 0.0
        %vm3566 = vcmp.eq.f32.partialorder %v3550, 0.0
        %vm3567 = vcmp.eq.f32.partialorder %v3552, 0.0
        %vm3568 = vcmp.eq.f32.partialorder %v3554, 0.0
        %vm3569 = vcmp.eq.f32.partialorder %v3556, 0.0
        %vm3570 = vcmp.eq.f32.partialorder %v3558, 0.0
        %vm3571 = vcmp.eq.f32.partialorder %v3560, 0.0
        %v3572 = vsel %vm3564, 1.0, 0.0
        %v3573 = vsel %vm3565, 1.0, 0.0
        %v3574 = vsel %vm3566, 1.0, 0.0
        %v3575 = vsel %vm3567, 1.0, 0.0
        %v3576 = vsel %vm3568, 1.0, 0.0
        %v3577 = vsel %vm3569, 1.0, 0.0
        %v3578 = vsel %vm3570, 1.0, 0.0
        %v3579 = vsel %vm3571, 1.0, 0.0
        %v3580 = vsel %vm3563, %v3572, %v3537
        %v3581 = vsel %vm3563, %v3573, %v3538
        %v3582 = vsel %vm3563, %v3574, %v3539
        %v3583 = vsel %vm3563, %v3575, %v3540
        %v3584 = vsel %vm3563, %v3576, %v3541
        %v3585 = vsel %vm3563, %v3577, %v3542
        %v3586 = vsel %vm3563, %v3578, %v3543
        %v3587 = vsel %vm3563, %v3579, %v3544
        %3588 = vst [vmem:[%s466] sm:$0xff] %v3580
        %3589 = vst [vmem:[%s466 + $0x8] sm:$0xff] %v3581
        %3590 = vst [vmem:[%s466 + $0x10] sm:$0xff] %v3582
        %3591 = vst [vmem:[%s466 + $0x18] sm:$0xff] %v3583
        %3592 = vst [vmem:[%s466 + $0x20] sm:$0xff] %v3584
        %3593 = vst [vmem:[%s466 + $0x28] sm:$0xff] %v3585
        %3594 = vst [vmem:[%s466 + $0x30] sm:$0xff] %v3586
        %3595 = vst [vmem:[%s466 + $0x38] sm:$0xff] %v3587
        %s3596 = sand.u32 %s323, 1
        %s3597 = scalar_lea.sflag [#allocation4], %s3596
        %s3598 = sand.u32 %s323, 1
        %s3599 = smul.addr %s3598, 64
        %s3600 = scalar_lea.vmem [#allocation3], %s3599
        // Predicated region
        $region73: #{docre_core.1} parent=71 // pred_check
          %p3601 = pneg %p333
        $region74: #{docre_core.1} parent=71 // pred_check_branch
          %3603 = sbr.rel (%p3601) target = $region76
        $region75: #{docre_core.1} parent=71 // pred_region
          %s3604 = smul.u32 8, %s27
          %3606 = vsyncadd %s3597, 0
          %s3607 = smul.addr %s3604, 8
          %s3608 = scalar_lea.hbm %s13, %s3607
          %s3609 = sshll.u32 %s3600, 4
          %s3610 = int_to_ptr.vmem [resolvable:$true] %s3609
          %s3611 = sshll.u32 %s3608, 4
          %s3612 = int_to_ptr.hbm [resolvable:$true] %s3611
          %3617 = dma.vmem_to_hbm [thread:$0]  %s3610, 1024, %s3612, %s3597, 128, 128, 8
        $region76: #{docre_core.1} parent=71 // pred_fallthru
          _
      $region72: #{docre_core.1} parent=5 // pred_fallthru
        _
      %p3618 = scmp.le.s32.totalorder 2, %s22
      // Predicated region
      $region77: #{docre_core.1} parent=5 // pred_check
        %p3619 = pneg %p3618
      $region78: #{docre_core.1} parent=5 // pred_check_branch
        %3621 = sbr.rel (%p3619) target = $region80
      $region79: #{docre_core.1} parent=5 // pred_region
        %s3622 = ssub.s32 %s22, 2
        // Predicated region
        $region81: #{docre_core.1} parent=79 // pred_check
          %p3623 = pneg %p339
        $region82: #{docre_core.1} parent=79 // pred_check_branch
          %3625 = sbr.rel (%p3623) target = $region84
        $region83: #{docre_core.1} parent=79 // pred_region
          %s3626 = sand.u32 %s324, 1
          %s3627 = scalar_lea.sflag [#allocation4], %s3626
          %s3628 = sand.u32 %s324, 1
          %s3629 = smul.addr %s3628, 64
          %s3630 = scalar_lea.vmem [#allocation3], %s3629
          %3632 = dma.done %s3627, 1024
        $region84: #{docre_core.1} parent=79 // pred_fallthru
          _
      $region80: #{docre_core.1} parent=5 // pred_fallthru
        _
    $region6: #{docre_core.1} parent=1 // loop_footer
      %s26 = sadd.s32 1, %s22
    $region7: #{docre_core.1} parent=1 // loop_footer_branch
      %21 = sbr.rel target = $region3
    $region8: #{docre_core.1} parent=1 // loop_exit
      _
    %3633 = vsyncpa [#allocation4], 1
    %s3634 = scalar_lea.sflag [#allocation4], 1
    %3635 = vsyncpa %s3634, 1

</llo_original>
